<compile_context>
chip_gen: v5e
topology: v5e:2x2
jax: 0.10.0
libtpu: 0.0.40
codegen_flags: <defaults>
</compile_context>

<pallas_src>
import functools
import math

import jax
import jax.numpy as jnp
import numpy as np
from jax.experimental import pallas as pl
from jax.experimental.pallas import tpu as pltpu

N_ENC = 99       # keys[:, :99]  (hard-coded in the module)
N_SPLIT = 50     # att[..., :50] / att[..., 50:] split (hard-coded in the module)
GOC_SCALE = 1.0 / 25.0


def _scores_kernel(q_ref, enc_ref, new_ref, mask_ref,
                   wq_ref, bq_ref, wk_ref, bk_ref, wnk_ref, bnk_ref,
                   att_ref, natt_ref):
    """Projections + raw (masked-to-0) attention scores for one (batch, q-tile)."""
    h = att_ref.shape[1]
    d_k = wq_ref.shape[1] // h
    scale = 1.0 / math.sqrt(d_k)
    bf16 = jnp.bfloat16

    x = q_ref[0].astype(bf16)        # (Tq, D)
    enc = enc_ref[0].astype(bf16)    # (99, D)
    newr = new_ref[0].astype(bf16)   # (50, D)

    # Fused (all heads at once) projections: bf16 operands, f32 accumulation.
    q_all = jnp.dot(x, wq_ref[...].astype(bf16),
                    preferred_element_type=jnp.float32) + bq_ref[...]
    k_all = jnp.dot(enc, wk_ref[...].astype(bf16),
                    preferred_element_type=jnp.float32) + bk_ref[...]
    nk_all = jnp.dot(newr, wnk_ref[...].astype(bf16),
                     preferred_element_type=jnp.float32) + bnk_ref[...]

    m = mask_ref[0, 0]               # (Tq, 99); > 0 means masked
    mr = m[:, :N_SPLIT]              # region mask for the 50 new-region keys

    dn = (((1,), (1,)), ((), ()))    # contract feature axis of both (A @ B^T)
    for i in range(h):
        sl = slice(i * d_k, (i + 1) * d_k)
        q_h = q_all[:, sl].astype(bf16)
        k_h = k_all[:, sl].astype(bf16)
        nk_h = nk_all[:, sl].astype(bf16)
        att_h = jax.lax.dot_general(q_h, k_h, dn,
                                    preferred_element_type=jnp.float32) * scale
        natt_h = jax.lax.dot_general(q_h, nk_h, dn,
                                     preferred_element_type=jnp.float32) * scale
        att_ref[0, i] = jnp.where(m > 0, 0.0, att_h)     # masked_fill(mask, 0)
        natt_ref[0, i] = jnp.where(mr > 0, 0.0, natt_h)  # masked_fill(region_mask, 0)


def _output_kernel(shift_ref, att_ref, natt_ref, mask_ref, align_ref, v_ref,
                   wv_ref, bv_ref, wo_ref, bo_ref, o_ref):
    """Global-min shift, goc/align bias, masked softmax, @V and fc_o."""
    h = att_ref.shape[1]
    d_v = wv_ref.shape[1] // h
    bf16 = jnp.bfloat16

    s_att = shift_ref[0:1, 0:1]      # (1,1): min(att)     if negative else 0
    s_new = shift_ref[0:1, 1:2]      # (1,1): min(new_att) if negative else 0

    m = mask_ref[0, 0]               # (Tq, 99)
    mr = m[:, :N_SPLIT]

    # fc_v for this batch element (all heads fused), bf16 x bf16 -> f32.
    v_all = jnp.dot(v_ref[0].astype(bf16), wv_ref[...].astype(bf16),
                    preferred_element_type=jnp.float32) + bv_ref[...]   # (99, H*dv)

    ctx_heads = []
    for i in range(h):
        # func() shift + re-mask to 0 (matches torch ordering exactly).
        att_h = jnp.where(m > 0, 0.0, att_ref[0, i] - s_att)
        natt_h = jnp.where(mr > 0, 0.0, natt_ref[0, i] - s_new)

        # goatt = new_att @ align / 25 (kept f32: it feeds the logits directly).
        goatt_h = jnp.dot(natt_h, align_ref[0, i],
                          preferred_element_type=jnp.float32) * GOC_SCALE
        logits_h = jnp.concatenate(
            [att_h[:, :N_SPLIT], att_h[:, N_SPLIT:] + goatt_h], axis=-1)
        logits_h = jnp.where(m > 0, -jnp.inf, logits_h)

        mx = jnp.max(logits_h, axis=-1, keepdims=True)
        p = jnp.exp(logits_h - mx)
        p = p * pl.reciprocal(jnp.sum(p, axis=-1, keepdims=True), approx=True)

        v_h = v_all[:, i * d_v:(i + 1) * d_v].astype(bf16)               # (99, dv)
        ctx_heads.append(jnp.dot(p.astype(bf16), v_h,
                                 preferred_element_type=jnp.float32))    # (Tq, dv)

    ctx = jnp.concatenate(ctx_heads, axis=-1)                            # (Tq, H*dv)
    out = jnp.dot(ctx.astype(bf16), wo_ref[...].astype(bf16),
                  preferred_element_type=jnp.float32) + bo_ref[...]
    o_ref[0] = out.astype(o_ref.dtype)


def _round_up(x, m):
    return (x + m - 1) // m * m


def sdpa_with_goc(params, queries, keys, values, attention_mask, aligns,
                  *, q_block_max=256):
    """Forward of ScaledDotProductAttentionWithGoc (eval mode).

    params: dict with wq,bq,wk,bk,wv,bv,wo,bo,wnk,bnk; weight matrices stored
            as (in_features, out_features), i.e. transposed vs torch Linear.weight.
    attention_mask: bool, broadcastable to (B, 1, nq, 99); True = masked.
                    (per-head masks would need a trivial BlockSpec change)
    aligns: (B, H, 50, 49) float32.
    """
    f32 = jnp.float32
    b, nq, d_model = queries.shape
    n_new = keys.shape[1] - N_ENC
    assert n_new == N_SPLIT, "module hard-codes 50 new-region keys"
    assert values.shape[1] == N_ENC, "module assumes values match the 99 encoder keys"
    h = aligns.shape[1]
    hdk = params['wq'].shape[1]
    hdv = params['wv'].shape[1]
    assert hdk % h == 0 and hdv % h == 0
    n_g = N_ENC - N_SPLIT
    assert aligns.shape == (b, h, N_SPLIT, n_g)

    queries = queries.astype(f32)
    enc = keys[:, :N_ENC, :].astype(f32)
    newr = keys[:, N_ENC:, :].astype(f32)
    values = values.astype(f32)
    aligns = aligns.astype(f32)
    mask = jnp.broadcast_to(attention_mask, (b, 1, nq, N_ENC)).astype(f32)

    # Pad the query axis to a sublane-friendly tile size.
    tq = min(q_block_max, _round_up(nq, 8))
    nq_pad = _round_up(nq, tq)
    if nq_pad != nq:
        queries = jnp.pad(queries, ((0, 0), (0, nq_pad - nq), (0, 0)))
        mask = jnp.pad(mask, ((0, 0), (0, 0), (0, nq_pad - nq), (0, 0)))
    n_qb = nq_pad // tq

    wq, bq = params['wq'].astype(f32), params['bq'].reshape(1, hdk).astype(f32)
    wk, bk = params['wk'].astype(f32), params['bk'].reshape(1, hdk).astype(f32)
    wnk, bnk = params['wnk'].astype(f32), params['bnk'].reshape(1, hdk).astype(f32)
    wv, bv = params['wv'].astype(f32), params['bv'].reshape(1, hdv).astype(f32)
    wo, bo = params['wo'].astype(f32), params['bo'].reshape(1, d_model).astype(f32)

    cparams = pltpu.CompilerParams(
        dimension_semantics=("parallel", "parallel"),
        vmem_limit_bytes=32 * 1024 * 1024)

    def _pinned(shape):  # resident across the whole grid (fetched once)
        return pl.BlockSpec(shape, lambda bi, qi: (0,) * len(shape))

    # ---- pass 1: projections + raw masked scores --------------------------
    att0, natt0 = pl.pallas_call(
        _scores_kernel,
        out_shape=(
            jax.ShapeDtypeStruct((b, h, nq_pad, N_ENC), f32),
            jax.ShapeDtypeStruct((b, h, nq_pad, N_SPLIT), f32),
        ),
        grid_spec=pltpu.PrefetchScalarGridSpec(
            num_scalar_prefetch=0,
            grid=(b, n_qb),
            in_specs=[
                pl.BlockSpec((1, tq, d_model), lambda bi, qi: (bi, qi, 0)),
                pl.BlockSpec((1, N_ENC, d_model), lambda bi, qi: (bi, 0, 0)),
                pl.BlockSpec((1, N_SPLIT, d_model), lambda bi, qi: (bi, 0, 0)),
                pl.BlockSpec((1, 1, tq, N_ENC), lambda bi, qi: (bi, 0, qi, 0)),
                _pinned((d_model, hdk)), _pinned((1, hdk)),
                _pinned((d_model, hdk)), _pinned((1, hdk)),
                _pinned((d_model, hdk)), _pinned((1, hdk)),
            ],
            out_specs=(
                pl.BlockSpec((1, h, tq, N_ENC), lambda bi, qi: (bi, 0, qi, 0)),
                pl.BlockSpec((1, h, tq, N_SPLIT), lambda bi, qi: (bi, 0, qi, 0)),
            ),
        ),
        compiler_params=cparams,
    )(queries, enc, newr, mask, wq, bq, wk, bk, wnk, bnk)

    # ---- global-min shifts of torch's `func` (tiny reduction, valid rows only)
    m1 = jnp.min(att0[:, :, :nq, :])
    m2 = jnp.min(natt0[:, :, :nq, :])
    shifts = jnp.stack([jnp.minimum(m1, 0.0),
                        jnp.minimum(m2, 0.0)]).reshape(1, 2).astype(f32)

    # ---- pass 2: shift / goc bias / softmax / @V / fc_o --------------------
    out_pad = pl.pallas_call(
        _output_kernel,
        out_shape=jax.ShapeDtypeStruct((b, nq_pad, d_model), f32),
        grid_spec=pltpu.PrefetchScalarGridSpec(
            num_scalar_prefetch=0,
            grid=(b, n_qb),
            in_specs=[
                pl.BlockSpec((1, 2), lambda bi, qi: (0, 0)),
                pl.BlockSpec((1, h, tq, N_ENC), lambda bi, qi: (bi, 0, qi, 0)),
                pl.BlockSpec((1, h, tq, N_SPLIT), lambda bi, qi: (bi, 0, qi, 0)),
                pl.BlockSpec((1, 1, tq, N_ENC), lambda bi, qi: (bi, 0, qi, 0)),
                pl.BlockSpec((1, h, N_SPLIT, n_g), lambda bi, qi: (bi, 0, 0, 0)),
                pl.BlockSpec((1, N_ENC, d_model), lambda bi, qi: (bi, 0, 0)),
                _pinned((d_model, hdv)), _pinned((1, hdv)),
                _pinned((hdv, d_model)), _pinned((1, d_model)),
            ],
            out_specs=pl.BlockSpec((1, tq, d_model), lambda bi, qi: (bi, qi, 0)),
        ),
        compiler_params=cparams,
    )(shifts, att0, natt0, mask, aligns, values, wv, bv, wo, bo)

    return out_pad[:, :nq, :]


def reference_forward(params, queries, keys, values, attention_mask, aligns):
    """Pure-JAX reference matching the torch module exactly (f32)."""
    b, nq, d_model = queries.shape
    h = aligns.shape[1]
    d_k = params['wq'].shape[1] // h
    d_v = params['wv'].shape[1] // h
    enc = keys[:, :N_ENC, :]
    newr = keys[:, N_ENC:, :]
    nnew = newr.shape[1]
    nv = values.shape[1]

    q = (queries @ params['wq'] + params['bq']).reshape(b, nq, h, d_k).transpose(0, 2, 1, 3)
    k = (enc @ params['wk'] + params['bk']).reshape(b, N_ENC, h, d_k).transpose(0, 2, 3, 1)
    v = (values @ params['wv'] + params['bv']).reshape(b, nv, h, d_v).transpose(0, 2, 1, 3)

    att = jnp.matmul(q, k) / math.sqrt(d_k)
    att = jnp.where(attention_mask, 0.0, att)
    mn = jnp.min(att)
    att = jnp.where(mn < 0, att - mn, att)
    att = jnp.where(attention_mask, 0.0, att)
    attr, attg = att[..., :N_SPLIT], att[..., N_SPLIT:]

    new_k = (newr @ params['wnk'] + params['bnk']).reshape(b, nnew, h, d_k).transpose(0, 2, 3, 1)
    natt = jnp.matmul(q, new_k) / math.sqrt(d_k)
    rmask = attention_mask[..., :N_SPLIT]
    natt = jnp.where(rmask, 0.0, natt)
    mn2 = jnp.min(natt)
    natt = jnp.where(mn2 < 0, natt - mn2, natt)
    natt = jnp.where(rmask, 0.0, natt)

    goatt = jnp.matmul(natt, aligns) / 25.0
    logits = jnp.concatenate([attr, attg + goatt], axis=-1)
    logits = jnp.where(attention_mask, -jnp.inf, logits)
    p = jax.nn.softmax(logits, axis=-1)
    out = jnp.matmul(p, v).transpose(0, 2, 1, 3).reshape(b, nq, h * d_v)
    return out @ params['wo'] + params['bo']


if __name__ == "__main__":
    key = jax.random.PRNGKey(0)
    B, NQ, D_MODEL, H, D_K, D_V = 2, 16, 128, 4, 32, 32
    N_KEYS = N_ENC + N_SPLIT     # 149 = 99 encoder regions + 50 new regions
    NV = N_ENC                   # 99

    ks = jax.random.split(key, 16)

    def xavier(k, shape):
        fan_in, fan_out = shape
        return jax.random.normal(k, shape, jnp.float32) * math.sqrt(2.0 / (fan_in + fan_out))

    params = {
        'wq': xavier(ks[0], (D_MODEL, H * D_K)),
        'bq': jax.random.normal(ks[1], (H * D_K,), jnp.float32) * 0.01,
        'wk': xavier(ks[2], (D_MODEL, H * D_K)),
        'bk': jax.random.normal(ks[3], (H * D_K,), jnp.float32) * 0.01,
        'wv': xavier(ks[4], (D_MODEL, H * D_V)),
        'bv': jax.random.normal(ks[5], (H * D_V,), jnp.float32) * 0.01,
        'wo': xavier(ks[6], (H * D_V, D_MODEL)),
        'bo': jax.random.normal(ks[7], (D_MODEL,), jnp.float32) * 0.01,
        'wnk': xavier(ks[8], (D_MODEL, H * D_K)),
        'bnk': jax.random.normal(ks[9], (H * D_K,), jnp.float32) * 0.01,
    }

    queries = jax.random.normal(ks[10], (B, NQ, D_MODEL), jnp.float32) * 0.5
    keys_in = jax.random.normal(ks[11], (B, N_KEYS, D_MODEL), jnp.float32) * 0.5
    values = jax.random.normal(ks[12], (B, NV, D_MODEL), jnp.float32) * 0.5
    aligns = jax.random.normal(ks[13], (B, H, N_SPLIT, N_ENC - N_SPLIT), jnp.float32) * 0.1
    attention_mask = jax.random.bernoulli(ks[14], 0.15, (B, 1, 1, N_ENC))
    attention_mask = attention_mask.at[..., 0].set(False)   # keep >=1 visible key

    fwd = jax.jit(functools.partial(sdpa_with_goc, params))
    out = jax.block_until_ready(fwd(queries, keys_in, values, attention_mask, aligns))

    ref = reference_forward(params, queries, keys_in, values, attention_mask, aligns)
    np.testing.assert_allclose(np.asarray(out), np.asarray(ref), rtol=3e-2, atol=3e-2)
    print("KERNEL_OK")
</pallas_src>

<mosaic_0001>
module attributes {stable_mosaic.version = 11 : i64} {
  func.func @_scores_kernel(%arg0: i32, %arg1: i32, %arg2: memref<1x16x128xf32, #tpu.memory_space<vmem>>, %arg3: memref<1x99x128xf32, #tpu.memory_space<vmem>>, %arg4: memref<1x50x128xf32, #tpu.memory_space<vmem>>, %arg5: memref<1x1x16x99xf32, #tpu.memory_space<vmem>>, %arg6: memref<128x128xf32, #tpu.memory_space<vmem>>, %arg7: memref<1x128xf32, #tpu.memory_space<vmem>>, %arg8: memref<128x128xf32, #tpu.memory_space<vmem>>, %arg9: memref<1x128xf32, #tpu.memory_space<vmem>>, %arg10: memref<128x128xf32, #tpu.memory_space<vmem>>, %arg11: memref<1x128xf32, #tpu.memory_space<vmem>>, %arg12: memref<1x4x16x99xf32, #tpu.memory_space<vmem>>, %arg13: memref<1x4x16x50xf32, #tpu.memory_space<vmem>>) attributes {dimension_semantics = [#tpu.dimension_semantics<parallel>, #tpu.dimension_semantics<parallel>], iteration_bounds = array<i64: 2, 1>, scalar_prefetch = 0 : i64, scratch_operands = 0 : i64, tpu.core_type = #tpu.core_type<tc>, window_params = [{transform_indices = @transform_0, window_bounds = array<i64: 1, 16, 128>}, {transform_indices = @transform_1, window_bounds = array<i64: 1, 99, 128>}, {transform_indices = @transform_2, window_bounds = array<i64: 1, 50, 128>}, {transform_indices = @transform_3, window_bounds = array<i64: 1, 1, 16, 99>}, {pipeline_mode = #tpu.pipeline_mode<synchronous>, transform_indices = @transform_4, window_bounds = array<i64: 128, 128>}, {pipeline_mode = #tpu.pipeline_mode<synchronous>, transform_indices = @transform_5, window_bounds = array<i64: 1, 128>}, {pipeline_mode = #tpu.pipeline_mode<synchronous>, transform_indices = @transform_6, window_bounds = array<i64: 128, 128>}, {pipeline_mode = #tpu.pipeline_mode<synchronous>, transform_indices = @transform_7, window_bounds = array<i64: 1, 128>}, {pipeline_mode = #tpu.pipeline_mode<synchronous>, transform_indices = @transform_8, window_bounds = array<i64: 128, 128>}, {pipeline_mode = #tpu.pipeline_mode<synchronous>, transform_indices = @transform_9, window_bounds = array<i64: 1, 128>}, {transform_indices = @transform_10, window_bounds = array<i64: 1, 4, 16, 99>}, {transform_indices = @transform_11, window_bounds = array<i64: 1, 4, 16, 50>}]} {
    %c0 = arith.constant 0 : index
    %c0_0 = arith.constant 0 : index
    %c0_1 = arith.constant 0 : index
    %0 = vector.load %arg2[%c0, %c0_0, %c0_1] : memref<1x16x128xf32, #tpu.memory_space<vmem>>, vector<1x16x128xf32>
    %1 = vector.shape_cast %0 : vector<1x16x128xf32> to vector<16x128xf32>
    %2 = arith.truncf %1 : vector<16x128xf32> to vector<16x128xbf16>
    %c0_2 = arith.constant 0 : index
    %c0_3 = arith.constant 0 : index
    %c0_4 = arith.constant 0 : index
    %3 = vector.load %arg3[%c0_2, %c0_3, %c0_4] : memref<1x99x128xf32, #tpu.memory_space<vmem>>, vector<1x99x128xf32>
    %4 = vector.shape_cast %3 : vector<1x99x128xf32> to vector<99x128xf32>
    %5 = arith.truncf %4 : vector<99x128xf32> to vector<99x128xbf16>
    %c0_5 = arith.constant 0 : index
    %c0_6 = arith.constant 0 : index
    %c0_7 = arith.constant 0 : index
    %6 = vector.load %arg4[%c0_5, %c0_6, %c0_7] : memref<1x50x128xf32, #tpu.memory_space<vmem>>, vector<1x50x128xf32>
    %7 = vector.shape_cast %6 : vector<1x50x128xf32> to vector<50x128xf32>
    %8 = arith.truncf %7 : vector<50x128xf32> to vector<50x128xbf16>
    %c0_8 = arith.constant 0 : index
    %c0_9 = arith.constant 0 : index
    %9 = vector.load %arg6[%c0_8, %c0_9] : memref<128x128xf32, #tpu.memory_space<vmem>>, vector<128x128xf32>
    %10 = arith.truncf %9 : vector<128x128xf32> to vector<128x128xbf16>
    %cst = arith.constant dense<0.000000e+00> : vector<16x128xf32>
    %11 = tpu.matmul %2, %10, %cst {dimension_numbers = #tpu.dot_dimension_numbers<[1], [0], [0], [1], [0, 0, 1, 1], [], []>} : vector<16x128xbf16>, vector<128x128xbf16>, vector<16x128xf32> -> vector<16x128xf32>
    %c0_10 = arith.constant 0 : index
    %c0_11 = arith.constant 0 : index
    %12 = vector.load %arg7[%c0_10, %c0_11] : memref<1x128xf32, #tpu.memory_space<vmem>>, vector<1x128xf32>
    %13 = vector.broadcast %12 : vector<1x128xf32> to vector<16x128xf32>
    %14 = arith.addf %11, %13 : vector<16x128xf32>
    %c0_12 = arith.constant 0 : index
    %c0_13 = arith.constant 0 : index
    %15 = vector.load %arg8[%c0_12, %c0_13] : memref<128x128xf32, #tpu.memory_space<vmem>>, vector<128x128xf32>
    %16 = arith.truncf %15 : vector<128x128xf32> to vector<128x128xbf16>
    %cst_14 = arith.constant dense<0.000000e+00> : vector<99x128xf32>
    %17 = tpu.matmul %5, %16, %cst_14 {dimension_numbers = #tpu.dot_dimension_numbers<[1], [0], [0], [1], [0, 0, 1, 1], [], []>} : vector<99x128xbf16>, vector<128x128xbf16>, vector<99x128xf32> -> vector<99x128xf32>
    %c0_15 = arith.constant 0 : index
    %c0_16 = arith.constant 0 : index
    %18 = vector.load %arg9[%c0_15, %c0_16] : memref<1x128xf32, #tpu.memory_space<vmem>>, vector<1x128xf32>
    %19 = vector.broadcast %18 : vector<1x128xf32> to vector<99x128xf32>
    %20 = arith.addf %17, %19 : vector<99x128xf32>
    %c0_17 = arith.constant 0 : index
    %c0_18 = arith.constant 0 : index
    %21 = vector.load %arg10[%c0_17, %c0_18] : memref<128x128xf32, #tpu.memory_space<vmem>>, vector<128x128xf32>
    %22 = arith.truncf %21 : vector<128x128xf32> to vector<128x128xbf16>
    %cst_19 = arith.constant dense<0.000000e+00> : vector<50x128xf32>
    %23 = tpu.matmul %8, %22, %cst_19 {dimension_numbers = #tpu.dot_dimension_numbers<[1], [0], [0], [1], [0, 0, 1, 1], [], []>} : vector<50x128xbf16>, vector<128x128xbf16>, vector<50x128xf32> -> vector<50x128xf32>
    %c0_20 = arith.constant 0 : index
    %c0_21 = arith.constant 0 : index
    %24 = vector.load %arg11[%c0_20, %c0_21] : memref<1x128xf32, #tpu.memory_space<vmem>>, vector<1x128xf32>
    %25 = vector.broadcast %24 : vector<1x128xf32> to vector<50x128xf32>
    %26 = arith.addf %23, %25 : vector<50x128xf32>
    %c0_22 = arith.constant 0 : index
    %c0_23 = arith.constant 0 : index
    %c0_24 = arith.constant 0 : index
    %c0_25 = arith.constant 0 : index
    %27 = vector.load %arg5[%c0_22, %c0_23, %c0_24, %c0_25] : memref<1x1x16x99xf32, #tpu.memory_space<vmem>>, vector<1x1x16x99xf32>
    %28 = vector.shape_cast %27 : vector<1x1x16x99xf32> to vector<16x99xf32>
    %29 = vector.extract_strided_slice %28 {offsets = [0, 0], sizes = [16, 50], strides = [1, 1]} : vector<16x99xf32> to vector<16x50xf32>
    %30 = vector.extract_strided_slice %14 {offsets = [0, 0], sizes = [16, 32], strides = [1, 1]} : vector<16x128xf32> to vector<16x32xf32>
    %31 = arith.truncf %30 : vector<16x32xf32> to vector<16x32xbf16>
    %32 = vector.extract_strided_slice %20 {offsets = [0, 0], sizes = [99, 32], strides = [1, 1]} : vector<99x128xf32> to vector<99x32xf32>
    %33 = arith.truncf %32 : vector<99x32xf32> to vector<99x32xbf16>
    %34 = vector.extract_strided_slice %26 {offsets = [0, 0], sizes = [50, 32], strides = [1, 1]} : vector<50x128xf32> to vector<50x32xf32>
    %35 = arith.truncf %34 : vector<50x32xf32> to vector<50x32xbf16>
    %cst_26 = arith.constant dense<0.000000e+00> : vector<16x99xf32>
    %36 = tpu.matmul %31, %33, %cst_26 {dimension_numbers = #tpu.dot_dimension_numbers<[1], [1], [0], [0], [0, 0, 1, 0], [], []>} : vector<16x32xbf16>, vector<99x32xbf16>, vector<16x99xf32> -> vector<16x99xf32>
    %cst_27 = arith.constant 0.176776692 : f32
    %37 = vector.broadcast %cst_27 : f32 to vector<16x99xf32>
    %38 = arith.mulf %36, %37 : vector<16x99xf32>
    %cst_28 = arith.constant dense<0.000000e+00> : vector<16x50xf32>
    %39 = tpu.matmul %31, %35, %cst_28 {dimension_numbers = #tpu.dot_dimension_numbers<[1], [1], [0], [0], [0, 0, 1, 0], [], []>} : vector<16x32xbf16>, vector<50x32xbf16>, vector<16x50xf32> -> vector<16x50xf32>
    %cst_29 = arith.constant 0.176776692 : f32
    %40 = vector.broadcast %cst_29 : f32 to vector<16x50xf32>
    %41 = arith.mulf %39, %40 : vector<16x50xf32>
    %cst_30 = arith.constant 0.000000e+00 : f32
    %42 = vector.broadcast %cst_30 : f32 to vector<16x99xf32>
    %43 = arith.cmpf ogt, %28, %42 : vector<16x99xf32>
    %cst_31 = arith.constant 0.000000e+00 : f32
    %44 = vector.broadcast %cst_31 : f32 to vector<16x99xf32>
    %45 = arith.select %43, %44, %38 : vector<16x99xi1>, vector<16x99xf32>
    %c0_32 = arith.constant 0 : index
    %c0_33 = arith.constant 0 : index
    %c0_34 = arith.constant 0 : index
    %c0_35 = arith.constant 0 : index
    %46 = vector.load %arg12[%c0_32, %c0_33, %c0_34, %c0_35] : memref<1x4x16x99xf32, #tpu.memory_space<vmem>>, vector<1x1x16x99xf32>
    %47 = vector.shape_cast %46 : vector<1x1x16x99xf32> to vector<16x99xf32>
    %48 = vector.shape_cast %45 : vector<16x99xf32> to vector<1x1x16x99xf32>
    tpu.vector_store %arg12[%c0_32, %c0_33, %c0_34, %c0_35], %48 {strides = array<i32>} : memref<1x4x16x99xf32, #tpu.memory_space<vmem>>, vector<1x1x16x99xf32>,
    %cst_36 = arith.constant 0.000000e+00 : f32
    %49 = vector.broadcast %cst_36 : f32 to vector<16x50xf32>
    %50 = arith.cmpf ogt, %29, %49 : vector<16x50xf32>
    %cst_37 = arith.constant 0.000000e+00 : f32
    %51 = vector.broadcast %cst_37 : f32 to vector<16x50xf32>
    %52 = arith.select %50, %51, %41 : vector<16x50xi1>, vector<16x50xf32>
    %c0_38 = arith.constant 0 : index
    %c0_39 = arith.constant 0 : index
    %c0_40 = arith.constant 0 : index
    %c0_41 = arith.constant 0 : index
    %53 = vector.load %arg13[%c0_38, %c0_39, %c0_40, %c0_41] : memref<1x4x16x50xf32, #tpu.memory_space<vmem>>, vector<1x1x16x50xf32>
    %54 = vector.shape_cast %53 : vector<1x1x16x50xf32> to vector<16x50xf32>
    %55 = vector.shape_cast %52 : vector<16x50xf32> to vector<1x1x16x50xf32>
    tpu.vector_store %arg13[%c0_38, %c0_39, %c0_40, %c0_41], %55 {strides = array<i32>} : memref<1x4x16x50xf32, #tpu.memory_space<vmem>>, vector<1x1x16x50xf32>,
    %56 = vector.extract_strided_slice %14 {offsets = [0, 32], sizes = [16, 32], strides = [1, 1]} : vector<16x128xf32> to vector<16x32xf32>
    %57 = arith.truncf %56 : vector<16x32xf32> to vector<16x32xbf16>
    %58 = vector.extract_strided_slice %20 {offsets = [0, 32], sizes = [99, 32], strides = [1, 1]} : vector<99x128xf32> to vector<99x32xf32>
    %59 = arith.truncf %58 : vector<99x32xf32> to vector<99x32xbf16>
    %60 = vector.extract_strided_slice %26 {offsets = [0, 32], sizes = [50, 32], strides = [1, 1]} : vector<50x128xf32> to vector<50x32xf32>
    %61 = arith.truncf %60 : vector<50x32xf32> to vector<50x32xbf16>
    %cst_42 = arith.constant dense<0.000000e+00> : vector<16x99xf32>
    %62 = tpu.matmul %57, %59, %cst_42 {dimension_numbers = #tpu.dot_dimension_numbers<[1], [1], [0], [0], [0, 0, 1, 0], [], []>} : vector<16x32xbf16>, vector<99x32xbf16>, vector<16x99xf32> -> vector<16x99xf32>
    %cst_43 = arith.constant 0.176776692 : f32
    %63 = vector.broadcast %cst_43 : f32 to vector<16x99xf32>
    %64 = arith.mulf %62, %63 : vector<16x99xf32>
    %cst_44 = arith.constant dense<0.000000e+00> : vector<16x50xf32>
    %65 = tpu.matmul %57, %61, %cst_44 {dimension_numbers = #tpu.dot_dimension_numbers<[1], [1], [0], [0], [0, 0, 1, 0], [], []>} : vector<16x32xbf16>, vector<50x32xbf16>, vector<16x50xf32> -> vector<16x50xf32>
    %cst_45 = arith.constant 0.176776692 : f32
    %66 = vector.broadcast %cst_45 : f32 to vector<16x50xf32>
    %67 = arith.mulf %65, %66 : vector<16x50xf32>
    %cst_46 = arith.constant 0.000000e+00 : f32
    %68 = vector.broadcast %cst_46 : f32 to vector<16x99xf32>
    %69 = arith.cmpf ogt, %28, %68 : vector<16x99xf32>
    %cst_47 = arith.constant 0.000000e+00 : f32
    %70 = vector.broadcast %cst_47 : f32 to vector<16x99xf32>
    %71 = arith.select %69, %70, %64 : vector<16x99xi1>, vector<16x99xf32>
    %c0_48 = arith.constant 0 : index
    %c1 = arith.constant 1 : index
    %c0_49 = arith.constant 0 : index
    %c0_50 = arith.constant 0 : index
    %72 = vector.load %arg12[%c0_48, %c1, %c0_49, %c0_50] : memref<1x4x16x99xf32, #tpu.memory_space<vmem>>, vector<1x1x16x99xf32>
    %73 = vector.shape_cast %72 : vector<1x1x16x99xf32> to vector<16x99xf32>
    %74 = vector.shape_cast %71 : vector<16x99xf32> to vector<1x1x16x99xf32>
    tpu.vector_store %arg12[%c0_48, %c1, %c0_49, %c0_50], %74 {strides = array<i32>} : memref<1x4x16x99xf32, #tpu.memory_space<vmem>>, vector<1x1x16x99xf32>,
    %cst_51 = arith.constant 0.000000e+00 : f32
    %75 = vector.broadcast %cst_51 : f32 to vector<16x50xf32>
    %76 = arith.cmpf ogt, %29, %75 : vector<16x50xf32>
    %cst_52 = arith.constant 0.000000e+00 : f32
    %77 = vector.broadcast %cst_52 : f32 to vector<16x50xf32>
    %78 = arith.select %76, %77, %67 : vector<16x50xi1>, vector<16x50xf32>
    %c0_53 = arith.constant 0 : index
    %c1_54 = arith.constant 1 : index
    %c0_55 = arith.constant 0 : index
    %c0_56 = arith.constant 0 : index
    %79 = vector.load %arg13[%c0_53, %c1_54, %c0_55, %c0_56] : memref<1x4x16x50xf32, #tpu.memory_space<vmem>>, vector<1x1x16x50xf32>
    %80 = vector.shape_cast %79 : vector<1x1x16x50xf32> to vector<16x50xf32>
    %81 = vector.shape_cast %78 : vector<16x50xf32> to vector<1x1x16x50xf32>
    tpu.vector_store %arg13[%c0_53, %c1_54, %c0_55, %c0_56], %81 {strides = array<i32>} : memref<1x4x16x50xf32, #tpu.memory_space<vmem>>, vector<1x1x16x50xf32>,
    %82 = vector.extract_strided_slice %14 {offsets = [0, 64], sizes = [16, 32], strides = [1, 1]} : vector<16x128xf32> to vector<16x32xf32>
    %83 = arith.truncf %82 : vector<16x32xf32> to vector<16x32xbf16>
    %84 = vector.extract_strided_slice %20 {offsets = [0, 64], sizes = [99, 32], strides = [1, 1]} : vector<99x128xf32> to vector<99x32xf32>
    %85 = arith.truncf %84 : vector<99x32xf32> to vector<99x32xbf16>
    %86 = vector.extract_strided_slice %26 {offsets = [0, 64], sizes = [50, 32], strides = [1, 1]} : vector<50x128xf32> to vector<50x32xf32>
    %87 = arith.truncf %86 : vector<50x32xf32> to vector<50x32xbf16>
    %cst_57 = arith.constant dense<0.000000e+00> : vector<16x99xf32>
    %88 = tpu.matmul %83, %85, %cst_57 {dimension_numbers = #tpu.dot_dimension_numbers<[1], [1], [0], [0], [0, 0, 1, 0], [], []>} : vector<16x32xbf16>, vector<99x32xbf16>, vector<16x99xf32> -> vector<16x99xf32>
    %cst_58 = arith.constant 0.176776692 : f32
    %89 = vector.broadcast %cst_58 : f32 to vector<16x99xf32>
    %90 = arith.mulf %88, %89 : vector<16x99xf32>
    %cst_59 = arith.constant dense<0.000000e+00> : vector<16x50xf32>
    %91 = tpu.matmul %83, %87, %cst_59 {dimension_numbers = #tpu.dot_dimension_numbers<[1], [1], [0], [0], [0, 0, 1, 0], [], []>} : vector<16x32xbf16>, vector<50x32xbf16>, vector<16x50xf32> -> vector<16x50xf32>
    %cst_60 = arith.constant 0.176776692 : f32
    %92 = vector.broadcast %cst_60 : f32 to vector<16x50xf32>
    %93 = arith.mulf %91, %92 : vector<16x50xf32>
    %cst_61 = arith.constant 0.000000e+00 : f32
    %94 = vector.broadcast %cst_61 : f32 to vector<16x99xf32>
    %95 = arith.cmpf ogt, %28, %94 : vector<16x99xf32>
    %cst_62 = arith.constant 0.000000e+00 : f32
    %96 = vector.broadcast %cst_62 : f32 to vector<16x99xf32>
    %97 = arith.select %95, %96, %90 : vector<16x99xi1>, vector<16x99xf32>
    %c0_63 = arith.constant 0 : index
    %c2 = arith.constant 2 : index
    %c0_64 = arith.constant 0 : index
    %c0_65 = arith.constant 0 : index
    %98 = vector.load %arg12[%c0_63, %c2, %c0_64, %c0_65] : memref<1x4x16x99xf32, #tpu.memory_space<vmem>>, vector<1x1x16x99xf32>
    %99 = vector.shape_cast %98 : vector<1x1x16x99xf32> to vector<16x99xf32>
    %100 = vector.shape_cast %97 : vector<16x99xf32> to vector<1x1x16x99xf32>
    tpu.vector_store %arg12[%c0_63, %c2, %c0_64, %c0_65], %100 {strides = array<i32>} : memref<1x4x16x99xf32, #tpu.memory_space<vmem>>, vector<1x1x16x99xf32>,
    %cst_66 = arith.constant 0.000000e+00 : f32
    %101 = vector.broadcast %cst_66 : f32 to vector<16x50xf32>
    %102 = arith.cmpf ogt, %29, %101 : vector<16x50xf32>
    %cst_67 = arith.constant 0.000000e+00 : f32
    %103 = vector.broadcast %cst_67 : f32 to vector<16x50xf32>
    %104 = arith.select %102, %103, %93 : vector<16x50xi1>, vector<16x50xf32>
    %c0_68 = arith.constant 0 : index
    %c2_69 = arith.constant 2 : index
    %c0_70 = arith.constant 0 : index
    %c0_71 = arith.constant 0 : index
    %105 = vector.load %arg13[%c0_68, %c2_69, %c0_70, %c0_71] : memref<1x4x16x50xf32, #tpu.memory_space<vmem>>, vector<1x1x16x50xf32>
    %106 = vector.shape_cast %105 : vector<1x1x16x50xf32> to vector<16x50xf32>
    %107 = vector.shape_cast %104 : vector<16x50xf32> to vector<1x1x16x50xf32>
    tpu.vector_store %arg13[%c0_68, %c2_69, %c0_70, %c0_71], %107 {strides = array<i32>} : memref<1x4x16x50xf32, #tpu.memory_space<vmem>>, vector<1x1x16x50xf32>,
    %108 = vector.extract_strided_slice %14 {offsets = [0, 96], sizes = [16, 32], strides = [1, 1]} : vector<16x128xf32> to vector<16x32xf32>
    %109 = arith.truncf %108 : vector<16x32xf32> to vector<16x32xbf16>
    %110 = vector.extract_strided_slice %20 {offsets = [0, 96], sizes = [99, 32], strides = [1, 1]} : vector<99x128xf32> to vector<99x32xf32>
    %111 = arith.truncf %110 : vector<99x32xf32> to vector<99x32xbf16>
    %112 = vector.extract_strided_slice %26 {offsets = [0, 96], sizes = [50, 32], strides = [1, 1]} : vector<50x128xf32> to vector<50x32xf32>
    %113 = arith.truncf %112 : vector<50x32xf32> to vector<50x32xbf16>
    %cst_72 = arith.constant dense<0.000000e+00> : vector<16x99xf32>
    %114 = tpu.matmul %109, %111, %cst_72 {dimension_numbers = #tpu.dot_dimension_numbers<[1], [1], [0], [0], [0, 0, 1, 0], [], []>} : vector<16x32xbf16>, vector<99x32xbf16>, vector<16x99xf32> -> vector<16x99xf32>
    %cst_73 = arith.constant 0.176776692 : f32
    %115 = vector.broadcast %cst_73 : f32 to vector<16x99xf32>
    %116 = arith.mulf %114, %115 : vector<16x99xf32>
    %cst_74 = arith.constant dense<0.000000e+00> : vector<16x50xf32>
    %117 = tpu.matmul %109, %113, %cst_74 {dimension_numbers = #tpu.dot_dimension_numbers<[1], [1], [0], [0], [0, 0, 1, 0], [], []>} : vector<16x32xbf16>, vector<50x32xbf16>, vector<16x50xf32> -> vector<16x50xf32>
    %cst_75 = arith.constant 0.176776692 : f32
    %118 = vector.broadcast %cst_75 : f32 to vector<16x50xf32>
    %119 = arith.mulf %117, %118 : vector<16x50xf32>
    %cst_76 = arith.constant 0.000000e+00 : f32
    %120 = vector.broadcast %cst_76 : f32 to vector<16x99xf32>
    %121 = arith.cmpf ogt, %28, %120 : vector<16x99xf32>
    %cst_77 = arith.constant 0.000000e+00 : f32
    %122 = vector.broadcast %cst_77 : f32 to vector<16x99xf32>
    %123 = arith.select %121, %122, %116 : vector<16x99xi1>, vector<16x99xf32>
    %c0_78 = arith.constant 0 : index
    %c3 = arith.constant 3 : index
    %c0_79 = arith.constant 0 : index
    %c0_80 = arith.constant 0 : index
    %124 = vector.load %arg12[%c0_78, %c3, %c0_79, %c0_80] : memref<1x4x16x99xf32, #tpu.memory_space<vmem>>, vector<1x1x16x99xf32>
    %125 = vector.shape_cast %124 : vector<1x1x16x99xf32> to vector<16x99xf32>
    %126 = vector.shape_cast %123 : vector<16x99xf32> to vector<1x1x16x99xf32>
    tpu.vector_store %arg12[%c0_78, %c3, %c0_79, %c0_80], %126 {strides = array<i32>} : memref<1x4x16x99xf32, #tpu.memory_space<vmem>>, vector<1x1x16x99xf32>,
    %cst_81 = arith.constant 0.000000e+00 : f32
    %127 = vector.broadcast %cst_81 : f32 to vector<16x50xf32>
    %128 = arith.cmpf ogt, %29, %127 : vector<16x50xf32>
    %cst_82 = arith.constant 0.000000e+00 : f32
    %129 = vector.broadcast %cst_82 : f32 to vector<16x50xf32>
    %130 = arith.select %128, %129, %119 : vector<16x50xi1>, vector<16x50xf32>
    %c0_83 = arith.constant 0 : index
    %c3_84 = arith.constant 3 : index
    %c0_85 = arith.constant 0 : index
    %c0_86 = arith.constant 0 : index
    %131 = vector.load %arg13[%c0_83, %c3_84, %c0_85, %c0_86] : memref<1x4x16x50xf32, #tpu.memory_space<vmem>>, vector<1x1x16x50xf32>
    %132 = vector.shape_cast %131 : vector<1x1x16x50xf32> to vector<16x50xf32>
    %133 = vector.shape_cast %130 : vector<16x50xf32> to vector<1x1x16x50xf32>
    tpu.vector_store %arg13[%c0_83, %c3_84, %c0_85, %c0_86], %133 {strides = array<i32>} : memref<1x4x16x50xf32, #tpu.memory_space<vmem>>, vector<1x1x16x50xf32>,
    return
  }
  func.func @transform_0(%arg0: i32, %arg1: i32) -> (i32, i32, i32) {
    %c0_i32 = arith.constant 0 : i32
    %c0_i32_0 = arith.constant 0 : i32
    return %arg0, %arg1, %c0_i32 : i32, i32, i32
  }
  func.func @transform_1(%arg0: i32, %arg1: i32) -> (i32, i32, i32) {
    %c0_i32 = arith.constant 0 : i32
    %c0_i32_0 = arith.constant 0 : i32
    %c0_i32_1 = arith.constant 0 : i32
    return %arg0, %c0_i32, %c0_i32_0 : i32, i32, i32
  }
  func.func @transform_2(%arg0: i32, %arg1: i32) -> (i32, i32, i32) {
    %c0_i32 = arith.constant 0 : i32
    %c0_i32_0 = arith.constant 0 : i32
    %c0_i32_1 = arith.constant 0 : i32
    return %arg0, %c0_i32, %c0_i32_0 : i32, i32, i32
  }
  func.func @transform_3(%arg0: i32, %arg1: i32) -> (i32, i32, i32, i32) {
    %c0_i32 = arith.constant 0 : i32
    %c0_i32_0 = arith.constant 0 : i32
    %c0_i32_1 = arith.constant 0 : i32
    return %arg0, %c0_i32, %arg1, %c0_i32_0 : i32, i32, i32, i32
  }
  func.func @transform_4(%arg0: i32, %arg1: i32) -> (i32, i32) {
    %c0_i32 = arith.constant 0 : i32
    %c0_i32_0 = arith.constant 0 : i32
    %c0_i32_1 = arith.constant 0 : i32
    return %c0_i32, %c0_i32_0 : i32, i32
  }
  func.func @transform_5(%arg0: i32, %arg1: i32) -> (i32, i32) {
    %c0_i32 = arith.constant 0 : i32
    %c0_i32_0 = arith.constant 0 : i32
    %c0_i32_1 = arith.constant 0 : i32
    return %c0_i32, %c0_i32_0 : i32, i32
  }
  func.func @transform_6(%arg0: i32, %arg1: i32) -> (i32, i32) {
    %c0_i32 = arith.constant 0 : i32
    %c0_i32_0 = arith.constant 0 : i32
    %c0_i32_1 = arith.constant 0 : i32
    return %c0_i32, %c0_i32_0 : i32, i32
  }
  func.func @transform_7(%arg0: i32, %arg1: i32) -> (i32, i32) {
    %c0_i32 = arith.constant 0 : i32
    %c0_i32_0 = arith.constant 0 : i32
    %c0_i32_1 = arith.constant 0 : i32
    return %c0_i32, %c0_i32_0 : i32, i32
  }
  func.func @transform_8(%arg0: i32, %arg1: i32) -> (i32, i32) {
    %c0_i32 = arith.constant 0 : i32
    %c0_i32_0 = arith.constant 0 : i32
    %c0_i32_1 = arith.constant 0 : i32
    return %c0_i32, %c0_i32_0 : i32, i32
  }
  func.func @transform_9(%arg0: i32, %arg1: i32) -> (i32, i32) {
    %c0_i32 = arith.constant 0 : i32
    %c0_i32_0 = arith.constant 0 : i32
    %c0_i32_1 = arith.constant 0 : i32
    return %c0_i32, %c0_i32_0 : i32, i32
  }
  func.func @transform_10(%arg0: i32, %arg1: i32) -> (i32, i32, i32, i32) {
    %c0_i32 = arith.constant 0 : i32
    %c0_i32_0 = arith.constant 0 : i32
    %c0_i32_1 = arith.constant 0 : i32
    return %arg0, %c0_i32, %arg1, %c0_i32_0 : i32, i32, i32, i32
  }
  func.func @transform_11(%arg0: i32, %arg1: i32) -> (i32, i32, i32, i32) {
    %c0_i32 = arith.constant 0 : i32
    %c0_i32_0 = arith.constant 0 : i32
    %c0_i32_1 = arith.constant 0 : i32
    return %arg0, %c0_i32, %arg1, %c0_i32_0 : i32, i32, i32, i32
  }
}

module attributes {stable_mosaic.version = 11 : i64} {
  func.func @_output_kernel(%arg0: i32, %arg1: i32, %arg2: memref<1x2xf32, #tpu.memory_space<vmem>>, %arg3: memref<1x4x16x99xf32, #tpu.memory_space<vmem>>, %arg4: memref<1x4x16x50xf32, #tpu.memory_space<vmem>>, %arg5: memref<1x1x16x99xf32, #tpu.memory_space<vmem>>, %arg6: memref<1x4x50x49xf32, #tpu.memory_space<vmem>>, %arg7: memref<1x99x128xf32, #tpu.memory_space<vmem>>, %arg8: memref<128x128xf32, #tpu.memory_space<vmem>>, %arg9: memref<1x128xf32, #tpu.memory_space<vmem>>, %arg10: memref<128x128xf32, #tpu.memory_space<vmem>>, %arg11: memref<1x128xf32, #tpu.memory_space<vmem>>, %arg12: memref<1x16x128xf32, #tpu.memory_space<vmem>>) attributes {dimension_semantics = [#tpu.dimension_semantics<parallel>, #tpu.dimension_semantics<parallel>], iteration_bounds = array<i64: 2, 1>, scalar_prefetch = 0 : i64, scratch_operands = 0 : i64, tpu.core_type = #tpu.core_type<tc>, window_params = [{pipeline_mode = #tpu.pipeline_mode<synchronous>, transform_indices = @transform_0, window_bounds = array<i64: 1, 2>}, {transform_indices = @transform_1, window_bounds = array<i64: 1, 4, 16, 99>}, {transform_indices = @transform_2, window_bounds = array<i64: 1, 4, 16, 50>}, {transform_indices = @transform_3, window_bounds = array<i64: 1, 1, 16, 99>}, {transform_indices = @transform_4, window_bounds = array<i64: 1, 4, 50, 49>}, {transform_indices = @transform_5, window_bounds = array<i64: 1, 99, 128>}, {pipeline_mode = #tpu.pipeline_mode<synchronous>, transform_indices = @transform_6, window_bounds = array<i64: 128, 128>}, {pipeline_mode = #tpu.pipeline_mode<synchronous>, transform_indices = @transform_7, window_bounds = array<i64: 1, 128>}, {pipeline_mode = #tpu.pipeline_mode<synchronous>, transform_indices = @transform_8, window_bounds = array<i64: 128, 128>}, {pipeline_mode = #tpu.pipeline_mode<synchronous>, transform_indices = @transform_9, window_bounds = array<i64: 1, 128>}, {transform_indices = @transform_10, window_bounds = array<i64: 1, 16, 128>}]} {
    %c0 = arith.constant 0 : index
    %c0_0 = arith.constant 0 : index
    %0 = vector.load %arg2[%c0, %c0_0] : memref<1x2xf32, #tpu.memory_space<vmem>>, vector<1x1xf32>
    %c0_1 = arith.constant 0 : index
    %c1 = arith.constant 1 : index
    %1 = vector.load %arg2[%c0_1, %c1] : memref<1x2xf32, #tpu.memory_space<vmem>>, vector<1x1xf32>
    %c0_2 = arith.constant 0 : index
    %c0_3 = arith.constant 0 : index
    %c0_4 = arith.constant 0 : index
    %c0_5 = arith.constant 0 : index
    %2 = vector.load %arg5[%c0_2, %c0_3, %c0_4, %c0_5] : memref<1x1x16x99xf32, #tpu.memory_space<vmem>>, vector<1x1x16x99xf32>
    %3 = vector.shape_cast %2 : vector<1x1x16x99xf32> to vector<16x99xf32>
    %4 = vector.extract_strided_slice %3 {offsets = [0, 0], sizes = [16, 50], strides = [1, 1]} : vector<16x99xf32> to vector<16x50xf32>
    %c0_6 = arith.constant 0 : index
    %c0_7 = arith.constant 0 : index
    %c0_8 = arith.constant 0 : index
    %5 = vector.load %arg7[%c0_6, %c0_7, %c0_8] : memref<1x99x128xf32, #tpu.memory_space<vmem>>, vector<1x99x128xf32>
    %6 = vector.shape_cast %5 : vector<1x99x128xf32> to vector<99x128xf32>
    %7 = arith.truncf %6 : vector<99x128xf32> to vector<99x128xbf16>
    %c0_9 = arith.constant 0 : index
    %c0_10 = arith.constant 0 : index
    %8 = vector.load %arg8[%c0_9, %c0_10] : memref<128x128xf32, #tpu.memory_space<vmem>>, vector<128x128xf32>
    %9 = arith.truncf %8 : vector<128x128xf32> to vector<128x128xbf16>
    %cst = arith.constant dense<0.000000e+00> : vector<99x128xf32>
    %10 = tpu.matmul %7, %9, %cst {dimension_numbers = #tpu.dot_dimension_numbers<[1], [0], [0], [1], [0, 0, 1, 1], [], []>} : vector<99x128xbf16>, vector<128x128xbf16>, vector<99x128xf32> -> vector<99x128xf32>
    %c0_11 = arith.constant 0 : index
    %c0_12 = arith.constant 0 : index
    %11 = vector.load %arg9[%c0_11, %c0_12] : memref<1x128xf32, #tpu.memory_space<vmem>>, vector<1x128xf32>
    %12 = vector.broadcast %11 : vector<1x128xf32> to vector<99x128xf32>
    %13 = arith.addf %10, %12 : vector<99x128xf32>
    %cst_13 = arith.constant 0.000000e+00 : f32
    %14 = vector.broadcast %cst_13 : f32 to vector<16x99xf32>
    %15 = arith.cmpf ogt, %3, %14 : vector<16x99xf32>
    %c0_14 = arith.constant 0 : index
    %c0_15 = arith.constant 0 : index
    %c0_16 = arith.constant 0 : index
    %c0_17 = arith.constant 0 : index
    %16 = vector.load %arg3[%c0_14, %c0_15, %c0_16, %c0_17] : memref<1x4x16x99xf32, #tpu.memory_space<vmem>>, vector<1x1x16x99xf32>
    %17 = vector.shape_cast %16 : vector<1x1x16x99xf32> to vector<16x99xf32>
    %18 = vector.broadcast %0 : vector<1x1xf32> to vector<16x99xf32>
    %19 = arith.subf %17, %18 : vector<16x99xf32>
    %cst_18 = arith.constant 0.000000e+00 : f32
    %20 = vector.broadcast %cst_18 : f32 to vector<16x99xf32>
    %21 = arith.select %15, %20, %19 : vector<16x99xi1>, vector<16x99xf32>
    %cst_19 = arith.constant 0.000000e+00 : f32
    %22 = vector.broadcast %cst_19 : f32 to vector<16x50xf32>
    %23 = arith.cmpf ogt, %4, %22 : vector<16x50xf32>
    %c0_20 = arith.constant 0 : index
    %c0_21 = arith.constant 0 : index
    %c0_22 = arith.constant 0 : index
    %c0_23 = arith.constant 0 : index
    %24 = vector.load %arg4[%c0_20, %c0_21, %c0_22, %c0_23] : memref<1x4x16x50xf32, #tpu.memory_space<vmem>>, vector<1x1x16x50xf32>
    %25 = vector.shape_cast %24 : vector<1x1x16x50xf32> to vector<16x50xf32>
    %26 = vector.broadcast %1 : vector<1x1xf32> to vector<16x50xf32>
    %27 = arith.subf %25, %26 : vector<16x50xf32>
    %cst_24 = arith.constant 0.000000e+00 : f32
    %28 = vector.broadcast %cst_24 : f32 to vector<16x50xf32>
    %29 = arith.select %23, %28, %27 : vector<16x50xi1>, vector<16x50xf32>
    %c0_25 = arith.constant 0 : index
    %c0_26 = arith.constant 0 : index
    %c0_27 = arith.constant 0 : index
    %c0_28 = arith.constant 0 : index
    %30 = vector.load %arg6[%c0_25, %c0_26, %c0_27, %c0_28] : memref<1x4x50x49xf32, #tpu.memory_space<vmem>>, vector<1x1x50x49xf32>
    %31 = vector.shape_cast %30 : vector<1x1x50x49xf32> to vector<50x49xf32>
    %cst_29 = arith.constant dense<0.000000e+00> : vector<16x49xf32>
    %32 = tpu.matmul %29, %31, %cst_29 {dimension_numbers = #tpu.dot_dimension_numbers<[1], [0], [0], [1], [0, 0, 1, 1], [], []>} : vector<16x50xf32>, vector<50x49xf32>, vector<16x49xf32> -> vector<16x49xf32>
    %cst_30 = arith.constant 4.000000e-02 : f32
    %33 = vector.broadcast %cst_30 : f32 to vector<16x49xf32>
    %34 = arith.mulf %32, %33 : vector<16x49xf32>
    %35 = vector.extract_strided_slice %21 {offsets = [0, 0], sizes = [16, 50], strides = [1, 1]} : vector<16x99xf32> to vector<16x50xf32>
    %36 = vector.extract_strided_slice %21 {offsets = [0, 50], sizes = [16, 49], strides = [1, 1]} : vector<16x99xf32> to vector<16x49xf32>
    %37 = arith.addf %36, %34 : vector<16x49xf32>
    %38 = tpu.concatenate %35, %37 in 1 : vector<16x50xf32>, vector<16x49xf32> -> vector<16x99xf32>
    %cst_31 = arith.constant 0.000000e+00 : f32
    %39 = vector.broadcast %cst_31 : f32 to vector<16x99xf32>
    %40 = arith.cmpf ogt, %3, %39 : vector<16x99xf32>
    %cst_32 = arith.constant 0xFF800000 : f32
    %41 = vector.broadcast %cst_32 : f32 to vector<16x99xf32>
    %42 = arith.select %40, %41, %38 : vector<16x99xi1>, vector<16x99xf32>
    %cst_33 = arith.constant dense<0xFF800000> : vector<16xf32>
    %43 = vector.multi_reduction <maximumf>, %42, %cst_33 [1] : vector<16x99xf32> to vector<16xf32>
    %44 = vector.shape_cast %43 : vector<16xf32> to vector<16x1xf32>
    %45 = vector.broadcast %44 : vector<16x1xf32> to vector<16x99xf32>
    %46 = arith.subf %42, %45 : vector<16x99xf32>
    %47 = math.exp %46 : vector<16x99xf32>
    %cst_34 = arith.constant dense<0.000000e+00> : vector<16xf32>
    %48 = vector.multi_reduction <add>, %47, %cst_34 [1] : vector<16x99xf32> to vector<16xf32>
    %49 = vector.shape_cast %48 : vector<16xf32> to vector<16x1xf32>
    %50 = tpu.reciprocal %49 {approx = true} : vector<16x1xf32> -> vector<16x1xf32>
    %51 = vector.broadcast %50 : vector<16x1xf32> to vector<16x99xf32>
    %52 = arith.mulf %47, %51 : vector<16x99xf32>
    %53 = vector.extract_strided_slice %13 {offsets = [0, 0], sizes = [99, 32], strides = [1, 1]} : vector<99x128xf32> to vector<99x32xf32>
    %54 = arith.truncf %53 : vector<99x32xf32> to vector<99x32xbf16>
    %55 = arith.truncf %52 : vector<16x99xf32> to vector<16x99xbf16>
    %cst_35 = arith.constant dense<0.000000e+00> : vector<16x32xf32>
    %56 = tpu.matmul %55, %54, %cst_35 {dimension_numbers = #tpu.dot_dimension_numbers<[1], [0], [0], [1], [0, 0, 1, 1], [], []>} : vector<16x99xbf16>, vector<99x32xbf16>, vector<16x32xf32> -> vector<16x32xf32>
    %cst_36 = arith.constant 0.000000e+00 : f32
    %57 = vector.broadcast %cst_36 : f32 to vector<16x99xf32>
    %58 = arith.cmpf ogt, %3, %57 : vector<16x99xf32>
    %c0_37 = arith.constant 0 : index
    %c1_38 = arith.constant 1 : index
    %c0_39 = arith.constant 0 : index
    %c0_40 = arith.constant 0 : index
    %59 = vector.load %arg3[%c0_37, %c1_38, %c0_39, %c0_40] : memref<1x4x16x99xf32, #tpu.memory_space<vmem>>, vector<1x1x16x99xf32>
    %60 = vector.shape_cast %59 : vector<1x1x16x99xf32> to vector<16x99xf32>
    %61 = vector.broadcast %0 : vector<1x1xf32> to vector<16x99xf32>
    %62 = arith.subf %60, %61 : vector<16x99xf32>
    %cst_41 = arith.constant 0.000000e+00 : f32
    %63 = vector.broadcast %cst_41 : f32 to vector<16x99xf32>
    %64 = arith.select %58, %63, %62 : vector<16x99xi1>, vector<16x99xf32>
    %cst_42 = arith.constant 0.000000e+00 : f32
    %65 = vector.broadcast %cst_42 : f32 to vector<16x50xf32>
    %66 = arith.cmpf ogt, %4, %65 : vector<16x50xf32>
    %c0_43 = arith.constant 0 : index
    %c1_44 = arith.constant 1 : index
    %c0_45 = arith.constant 0 : index
    %c0_46 = arith.constant 0 : index
    %67 = vector.load %arg4[%c0_43, %c1_44, %c0_45, %c0_46] : memref<1x4x16x50xf32, #tpu.memory_space<vmem>>, vector<1x1x16x50xf32>
    %68 = vector.shape_cast %67 : vector<1x1x16x50xf32> to vector<16x50xf32>
    %69 = vector.broadcast %1 : vector<1x1xf32> to vector<16x50xf32>
    %70 = arith.subf %68, %69 : vector<16x50xf32>
    %cst_47 = arith.constant 0.000000e+00 : f32
    %71 = vector.broadcast %cst_47 : f32 to vector<16x50xf32>
    %72 = arith.select %66, %71, %70 : vector<16x50xi1>, vector<16x50xf32>
    %c0_48 = arith.constant 0 : index
    %c1_49 = arith.constant 1 : index
    %c0_50 = arith.constant 0 : index
    %c0_51 = arith.constant 0 : index
    %73 = vector.load %arg6[%c0_48, %c1_49, %c0_50, %c0_51] : memref<1x4x50x49xf32, #tpu.memory_space<vmem>>, vector<1x1x50x49xf32>
    %74 = vector.shape_cast %73 : vector<1x1x50x49xf32> to vector<50x49xf32>
    %cst_52 = arith.constant dense<0.000000e+00> : vector<16x49xf32>
    %75 = tpu.matmul %72, %74, %cst_52 {dimension_numbers = #tpu.dot_dimension_numbers<[1], [0], [0], [1], [0, 0, 1, 1], [], []>} : vector<16x50xf32>, vector<50x49xf32>, vector<16x49xf32> -> vector<16x49xf32>
    %cst_53 = arith.constant 4.000000e-02 : f32
    %76 = vector.broadcast %cst_53 : f32 to vector<16x49xf32>
    %77 = arith.mulf %75, %76 : vector<16x49xf32>
    %78 = vector.extract_strided_slice %64 {offsets = [0, 0], sizes = [16, 50], strides = [1, 1]} : vector<16x99xf32> to vector<16x50xf32>
    %79 = vector.extract_strided_slice %64 {offsets = [0, 50], sizes = [16, 49], strides = [1, 1]} : vector<16x99xf32> to vector<16x49xf32>
    %80 = arith.addf %79, %77 : vector<16x49xf32>
    %81 = tpu.concatenate %78, %80 in 1 : vector<16x50xf32>, vector<16x49xf32> -> vector<16x99xf32>
    %cst_54 = arith.constant 0.000000e+00 : f32
    %82 = vector.broadcast %cst_54 : f32 to vector<16x99xf32>
    %83 = arith.cmpf ogt, %3, %82 : vector<16x99xf32>
    %cst_55 = arith.constant 0xFF800000 : f32
    %84 = vector.broadcast %cst_55 : f32 to vector<16x99xf32>
    %85 = arith.select %83, %84, %81 : vector<16x99xi1>, vector<16x99xf32>
    %cst_56 = arith.constant dense<0xFF800000> : vector<16xf32>
    %86 = vector.multi_reduction <maximumf>, %85, %cst_56 [1] : vector<16x99xf32> to vector<16xf32>
    %87 = vector.shape_cast %86 : vector<16xf32> to vector<16x1xf32>
    %88 = vector.broadcast %87 : vector<16x1xf32> to vector<16x99xf32>
    %89 = arith.subf %85, %88 : vector<16x99xf32>
    %90 = math.exp %89 : vector<16x99xf32>
    %cst_57 = arith.constant dense<0.000000e+00> : vector<16xf32>
    %91 = vector.multi_reduction <add>, %90, %cst_57 [1] : vector<16x99xf32> to vector<16xf32>
    %92 = vector.shape_cast %91 : vector<16xf32> to vector<16x1xf32>
    %93 = tpu.reciprocal %92 {approx = true} : vector<16x1xf32> -> vector<16x1xf32>
    %94 = vector.broadcast %93 : vector<16x1xf32> to vector<16x99xf32>
    %95 = arith.mulf %90, %94 : vector<16x99xf32>
    %96 = vector.extract_strided_slice %13 {offsets = [0, 32], sizes = [99, 32], strides = [1, 1]} : vector<99x128xf32> to vector<99x32xf32>
    %97 = arith.truncf %96 : vector<99x32xf32> to vector<99x32xbf16>
    %98 = arith.truncf %95 : vector<16x99xf32> to vector<16x99xbf16>
    %cst_58 = arith.constant dense<0.000000e+00> : vector<16x32xf32>
    %99 = tpu.matmul %98, %97, %cst_58 {dimension_numbers = #tpu.dot_dimension_numbers<[1], [0], [0], [1], [0, 0, 1, 1], [], []>} : vector<16x99xbf16>, vector<99x32xbf16>, vector<16x32xf32> -> vector<16x32xf32>
    %cst_59 = arith.constant 0.000000e+00 : f32
    %100 = vector.broadcast %cst_59 : f32 to vector<16x99xf32>
    %101 = arith.cmpf ogt, %3, %100 : vector<16x99xf32>
    %c0_60 = arith.constant 0 : index
    %c2 = arith.constant 2 : index
    %c0_61 = arith.constant 0 : index
    %c0_62 = arith.constant 0 : index
    %102 = vector.load %arg3[%c0_60, %c2, %c0_61, %c0_62] : memref<1x4x16x99xf32, #tpu.memory_space<vmem>>, vector<1x1x16x99xf32>
    %103 = vector.shape_cast %102 : vector<1x1x16x99xf32> to vector<16x99xf32>
    %104 = vector.broadcast %0 : vector<1x1xf32> to vector<16x99xf32>
    %105 = arith.subf %103, %104 : vector<16x99xf32>
    %cst_63 = arith.constant 0.000000e+00 : f32
    %106 = vector.broadcast %cst_63 : f32 to vector<16x99xf32>
    %107 = arith.select %101, %106, %105 : vector<16x99xi1>, vector<16x99xf32>
    %cst_64 = arith.constant 0.000000e+00 : f32
    %108 = vector.broadcast %cst_64 : f32 to vector<16x50xf32>
    %109 = arith.cmpf ogt, %4, %108 : vector<16x50xf32>
    %c0_65 = arith.constant 0 : index
    %c2_66 = arith.constant 2 : index
    %c0_67 = arith.constant 0 : index
    %c0_68 = arith.constant 0 : index
    %110 = vector.load %arg4[%c0_65, %c2_66, %c0_67, %c0_68] : memref<1x4x16x50xf32, #tpu.memory_space<vmem>>, vector<1x1x16x50xf32>
    %111 = vector.shape_cast %110 : vector<1x1x16x50xf32> to vector<16x50xf32>
    %112 = vector.broadcast %1 : vector<1x1xf32> to vector<16x50xf32>
    %113 = arith.subf %111, %112 : vector<16x50xf32>
    %cst_69 = arith.constant 0.000000e+00 : f32
    %114 = vector.broadcast %cst_69 : f32 to vector<16x50xf32>
    %115 = arith.select %109, %114, %113 : vector<16x50xi1>, vector<16x50xf32>
    %c0_70 = arith.constant 0 : index
    %c2_71 = arith.constant 2 : index
    %c0_72 = arith.constant 0 : index
    %c0_73 = arith.constant 0 : index
    %116 = vector.load %arg6[%c0_70, %c2_71, %c0_72, %c0_73] : memref<1x4x50x49xf32, #tpu.memory_space<vmem>>, vector<1x1x50x49xf32>
    %117 = vector.shape_cast %116 : vector<1x1x50x49xf32> to vector<50x49xf32>
    %cst_74 = arith.constant dense<0.000000e+00> : vector<16x49xf32>
    %118 = tpu.matmul %115, %117, %cst_74 {dimension_numbers = #tpu.dot_dimension_numbers<[1], [0], [0], [1], [0, 0, 1, 1], [], []>} : vector<16x50xf32>, vector<50x49xf32>, vector<16x49xf32> -> vector<16x49xf32>
    %cst_75 = arith.constant 4.000000e-02 : f32
    %119 = vector.broadcast %cst_75 : f32 to vector<16x49xf32>
    %120 = arith.mulf %118, %119 : vector<16x49xf32>
    %121 = vector.extract_strided_slice %107 {offsets = [0, 0], sizes = [16, 50], strides = [1, 1]} : vector<16x99xf32> to vector<16x50xf32>
    %122 = vector.extract_strided_slice %107 {offsets = [0, 50], sizes = [16, 49], strides = [1, 1]} : vector<16x99xf32> to vector<16x49xf32>
    %123 = arith.addf %122, %120 : vector<16x49xf32>
    %124 = tpu.concatenate %121, %123 in 1 : vector<16x50xf32>, vector<16x49xf32> -> vector<16x99xf32>
    %cst_76 = arith.constant 0.000000e+00 : f32
    %125 = vector.broadcast %cst_76 : f32 to vector<16x99xf32>
    %126 = arith.cmpf ogt, %3, %125 : vector<16x99xf32>
    %cst_77 = arith.constant 0xFF800000 : f32
    %127 = vector.broadcast %cst_77 : f32 to vector<16x99xf32>
    %128 = arith.select %126, %127, %124 : vector<16x99xi1>, vector<16x99xf32>
    %cst_78 = arith.constant dense<0xFF800000> : vector<16xf32>
    %129 = vector.multi_reduction <maximumf>, %128, %cst_78 [1] : vector<16x99xf32> to vector<16xf32>
    %130 = vector.shape_cast %129 : vector<16xf32> to vector<16x1xf32>
    %131 = vector.broadcast %130 : vector<16x1xf32> to vector<16x99xf32>
    %132 = arith.subf %128, %131 : vector<16x99xf32>
    %133 = math.exp %132 : vector<16x99xf32>
    %cst_79 = arith.constant dense<0.000000e+00> : vector<16xf32>
    %134 = vector.multi_reduction <add>, %133, %cst_79 [1] : vector<16x99xf32> to vector<16xf32>
    %135 = vector.shape_cast %134 : vector<16xf32> to vector<16x1xf32>
    %136 = tpu.reciprocal %135 {approx = true} : vector<16x1xf32> -> vector<16x1xf32>
    %137 = vector.broadcast %136 : vector<16x1xf32> to vector<16x99xf32>
    %138 = arith.mulf %133, %137 : vector<16x99xf32>
    %139 = vector.extract_strided_slice %13 {offsets = [0, 64], sizes = [99, 32], strides = [1, 1]} : vector<99x128xf32> to vector<99x32xf32>
    %140 = arith.truncf %139 : vector<99x32xf32> to vector<99x32xbf16>
    %141 = arith.truncf %138 : vector<16x99xf32> to vector<16x99xbf16>
    %cst_80 = arith.constant dense<0.000000e+00> : vector<16x32xf32>
    %142 = tpu.matmul %141, %140, %cst_80 {dimension_numbers = #tpu.dot_dimension_numbers<[1], [0], [0], [1], [0, 0, 1, 1], [], []>} : vector<16x99xbf16>, vector<99x32xbf16>, vector<16x32xf32> -> vector<16x32xf32>
    %cst_81 = arith.constant 0.000000e+00 : f32
    %143 = vector.broadcast %cst_81 : f32 to vector<16x99xf32>
    %144 = arith.cmpf ogt, %3, %143 : vector<16x99xf32>
    %c0_82 = arith.constant 0 : index
    %c3 = arith.constant 3 : index
    %c0_83 = arith.constant 0 : index
    %c0_84 = arith.constant 0 : index
    %145 = vector.load %arg3[%c0_82, %c3, %c0_83, %c0_84] : memref<1x4x16x99xf32, #tpu.memory_space<vmem>>, vector<1x1x16x99xf32>
    %146 = vector.shape_cast %145 : vector<1x1x16x99xf32> to vector<16x99xf32>
    %147 = vector.broadcast %0 : vector<1x1xf32> to vector<16x99xf32>
    %148 = arith.subf %146, %147 : vector<16x99xf32>
    %cst_85 = arith.constant 0.000000e+00 : f32
    %149 = vector.broadcast %cst_85 : f32 to vector<16x99xf32>
    %150 = arith.select %144, %149, %148 : vector<16x99xi1>, vector<16x99xf32>
    %cst_86 = arith.constant 0.000000e+00 : f32
    %151 = vector.broadcast %cst_86 : f32 to vector<16x50xf32>
    %152 = arith.cmpf ogt, %4, %151 : vector<16x50xf32>
    %c0_87 = arith.constant 0 : index
    %c3_88 = arith.constant 3 : index
    %c0_89 = arith.constant 0 : index
    %c0_90 = arith.constant 0 : index
    %153 = vector.load %arg4[%c0_87, %c3_88, %c0_89, %c0_90] : memref<1x4x16x50xf32, #tpu.memory_space<vmem>>, vector<1x1x16x50xf32>
    %154 = vector.shape_cast %153 : vector<1x1x16x50xf32> to vector<16x50xf32>
    %155 = vector.broadcast %1 : vector<1x1xf32> to vector<16x50xf32>
    %156 = arith.subf %154, %155 : vector<16x50xf32>
    %cst_91 = arith.constant 0.000000e+00 : f32
    %157 = vector.broadcast %cst_91 : f32 to vector<16x50xf32>
    %158 = arith.select %152, %157, %156 : vector<16x50xi1>, vector<16x50xf32>
    %c0_92 = arith.constant 0 : index
    %c3_93 = arith.constant 3 : index
    %c0_94 = arith.constant 0 : index
    %c0_95 = arith.constant 0 : index
    %159 = vector.load %arg6[%c0_92, %c3_93, %c0_94, %c0_95] : memref<1x4x50x49xf32, #tpu.memory_space<vmem>>, vector<1x1x50x49xf32>
    %160 = vector.shape_cast %159 : vector<1x1x50x49xf32> to vector<50x49xf32>
    %cst_96 = arith.constant dense<0.000000e+00> : vector<16x49xf32>
    %161 = tpu.matmul %158, %160, %cst_96 {dimension_numbers = #tpu.dot_dimension_numbers<[1], [0], [0], [1], [0, 0, 1, 1], [], []>} : vector<16x50xf32>, vector<50x49xf32>, vector<16x49xf32> -> vector<16x49xf32>
    %cst_97 = arith.constant 4.000000e-02 : f32
    %162 = vector.broadcast %cst_97 : f32 to vector<16x49xf32>
    %163 = arith.mulf %161, %162 : vector<16x49xf32>
    %164 = vector.extract_strided_slice %150 {offsets = [0, 0], sizes = [16, 50], strides = [1, 1]} : vector<16x99xf32> to vector<16x50xf32>
    %165 = vector.extract_strided_slice %150 {offsets = [0, 50], sizes = [16, 49], strides = [1, 1]} : vector<16x99xf32> to vector<16x49xf32>
    %166 = arith.addf %165, %163 : vector<16x49xf32>
    %167 = tpu.concatenate %164, %166 in 1 : vector<16x50xf32>, vector<16x49xf32> -> vector<16x99xf32>
    %cst_98 = arith.constant 0.000000e+00 : f32
    %168 = vector.broadcast %cst_98 : f32 to vector<16x99xf32>
    %169 = arith.cmpf ogt, %3, %168 : vector<16x99xf32>
    %cst_99 = arith.constant 0xFF800000 : f32
    %170 = vector.broadcast %cst_99 : f32 to vector<16x99xf32>
    %171 = arith.select %169, %170, %167 : vector<16x99xi1>, vector<16x99xf32>
    %cst_100 = arith.constant dense<0xFF800000> : vector<16xf32>
    %172 = vector.multi_reduction <maximumf>, %171, %cst_100 [1] : vector<16x99xf32> to vector<16xf32>
    %173 = vector.shape_cast %172 : vector<16xf32> to vector<16x1xf32>
    %174 = vector.broadcast %173 : vector<16x1xf32> to vector<16x99xf32>
    %175 = arith.subf %171, %174 : vector<16x99xf32>
    %176 = math.exp %175 : vector<16x99xf32>
    %cst_101 = arith.constant dense<0.000000e+00> : vector<16xf32>
    %177 = vector.multi_reduction <add>, %176, %cst_101 [1] : vector<16x99xf32> to vector<16xf32>
    %178 = vector.shape_cast %177 : vector<16xf32> to vector<16x1xf32>
    %179 = tpu.reciprocal %178 {approx = true} : vector<16x1xf32> -> vector<16x1xf32>
    %180 = vector.broadcast %179 : vector<16x1xf32> to vector<16x99xf32>
    %181 = arith.mulf %176, %180 : vector<16x99xf32>
    %182 = vector.extract_strided_slice %13 {offsets = [0, 96], sizes = [99, 32], strides = [1, 1]} : vector<99x128xf32> to vector<99x32xf32>
    %183 = arith.truncf %182 : vector<99x32xf32> to vector<99x32xbf16>
    %184 = arith.truncf %181 : vector<16x99xf32> to vector<16x99xbf16>
    %cst_102 = arith.constant dense<0.000000e+00> : vector<16x32xf32>
    %185 = tpu.matmul %184, %183, %cst_102 {dimension_numbers = #tpu.dot_dimension_numbers<[1], [0], [0], [1], [0, 0, 1, 1], [], []>} : vector<16x99xbf16>, vector<99x32xbf16>, vector<16x32xf32> -> vector<16x32xf32>
    %186 = tpu.concatenate %56, %99, %142, %185 in 1 : vector<16x32xf32>, vector<16x32xf32>, vector<16x32xf32>, vector<16x32xf32> -> vector<16x128xf32>
    %187 = arith.truncf %186 : vector<16x128xf32> to vector<16x128xbf16>
    %c0_103 = arith.constant 0 : index
    %c0_104 = arith.constant 0 : index
    %188 = vector.load %arg10[%c0_103, %c0_104] : memref<128x128xf32, #tpu.memory_space<vmem>>, vector<128x128xf32>
    %189 = arith.truncf %188 : vector<128x128xf32> to vector<128x128xbf16>
    %cst_105 = arith.constant dense<0.000000e+00> : vector<16x128xf32>
    %190 = tpu.matmul %187, %189, %cst_105 {dimension_numbers = #tpu.dot_dimension_numbers<[1], [0], [0], [1], [0, 0, 1, 1], [], []>} : vector<16x128xbf16>, vector<128x128xbf16>, vector<16x128xf32> -> vector<16x128xf32>
    %c0_106 = arith.constant 0 : index
    %c0_107 = arith.constant 0 : index
    %191 = vector.load %arg11[%c0_106, %c0_107] : memref<1x128xf32, #tpu.memory_space<vmem>>, vector<1x128xf32>
    %192 = vector.broadcast %191 : vector<1x128xf32> to vector<16x128xf32>
    %193 = arith.addf %190, %192 : vector<16x128xf32>
    %c0_108 = arith.constant 0 : index
    %c0_109 = arith.constant 0 : index
    %c0_110 = arith.constant 0 : index
    %194 = vector.load %arg12[%c0_108, %c0_109, %c0_110] : memref<1x16x128xf32, #tpu.memory_space<vmem>>, vector<1x16x128xf32>
    %195 = vector.shape_cast %194 : vector<1x16x128xf32> to vector<16x128xf32>
    %196 = vector.shape_cast %193 : vector<16x128xf32> to vector<1x16x128xf32>
    tpu.vector_store %arg12[%c0_108, %c0_109, %c0_110], %196 {strides = array<i32>} : memref<1x16x128xf32, #tpu.memory_space<vmem>>, vector<1x16x128xf32>,
    return
  }
  func.func @transform_0(%arg0: i32, %arg1: i32) -> (i32, i32) {
    %c0_i32 = arith.constant 0 : i32
    %c0_i32_0 = arith.constant 0 : i32
    %c0_i32_1 = arith.constant 0 : i32
    return %c0_i32, %c0_i32_0 : i32, i32
  }
  func.func @transform_1(%arg0: i32, %arg1: i32) -> (i32, i32, i32, i32) {
    %c0_i32 = arith.constant 0 : i32
    %c0_i32_0 = arith.constant 0 : i32
    %c0_i32_1 = arith.constant 0 : i32
    return %arg0, %c0_i32, %arg1, %c0_i32_0 : i32, i32, i32, i32
  }
  func.func @transform_2(%arg0: i32, %arg1: i32) -> (i32, i32, i32, i32) {
    %c0_i32 = arith.constant 0 : i32
    %c0_i32_0 = arith.constant 0 : i32
    %c0_i32_1 = arith.constant 0 : i32
    return %arg0, %c0_i32, %arg1, %c0_i32_0 : i32, i32, i32, i32
  }
  func.func @transform_3(%arg0: i32, %arg1: i32) -> (i32, i32, i32, i32) {
    %c0_i32 = arith.constant 0 : i32
    %c0_i32_0 = arith.constant 0 : i32
    %c0_i32_1 = arith.constant 0 : i32
    return %arg0, %c0_i32, %arg1, %c0_i32_0 : i32, i32, i32, i32
  }
  func.func @transform_4(%arg0: i32, %arg1: i32) -> (i32, i32, i32, i32) {
    %c0_i32 = arith.constant 0 : i32
    %c0_i32_0 = arith.constant 0 : i32
    %c0_i32_1 = arith.constant 0 : i32
    %c0_i32_2 = arith.constant 0 : i32
    return %arg0, %c0_i32, %c0_i32_0, %c0_i32_1 : i32, i32, i32, i32
  }
  func.func @transform_5(%arg0: i32, %arg1: i32) -> (i32, i32, i32) {
    %c0_i32 = arith.constant 0 : i32
    %c0_i32_0 = arith.constant 0 : i32
    %c0_i32_1 = arith.constant 0 : i32
    return %arg0, %c0_i32, %c0_i32_0 : i32, i32, i32
  }
  func.func @transform_6(%arg0: i32, %arg1: i32) -> (i32, i32) {
    %c0_i32 = arith.constant 0 : i32
    %c0_i32_0 = arith.constant 0 : i32
    %c0_i32_1 = arith.constant 0 : i32
    return %c0_i32, %c0_i32_0 : i32, i32
  }
  func.func @transform_7(%arg0: i32, %arg1: i32) -> (i32, i32) {
    %c0_i32 = arith.constant 0 : i32
    %c0_i32_0 = arith.constant 0 : i32
    %c0_i32_1 = arith.constant 0 : i32
    return %c0_i32, %c0_i32_0 : i32, i32
  }
  func.func @transform_8(%arg0: i32, %arg1: i32) -> (i32, i32) {
    %c0_i32 = arith.constant 0 : i32
    %c0_i32_0 = arith.constant 0 : i32
    %c0_i32_1 = arith.constant 0 : i32
    return %c0_i32, %c0_i32_0 : i32, i32
  }
  func.func @transform_9(%arg0: i32, %arg1: i32) -> (i32, i32) {
    %c0_i32 = arith.constant 0 : i32
    %c0_i32_0 = arith.constant 0 : i32
    %c0_i32_1 = arith.constant 0 : i32
    return %c0_i32, %c0_i32_0 : i32, i32
  }
  func.func @transform_10(%arg0: i32, %arg1: i32) -> (i32, i32, i32) {
    %c0_i32 = arith.constant 0 : i32
    %c0_i32_0 = arith.constant 0 : i32
    return %arg0, %arg1, %c0_i32 : i32, i32, i32
  }
}

</mosaic_0001>

<llo_original>
// kernel: sdpa_with_goc.3
$region0: #{sdpa_with_goc.3}
  #allocation0 [shape = 'u32[]', space=smem, size = 0x4, offset = 0x4, fixed_abs, tag = 'smem constant byte address 0x4 - core index']
  #allocation1 [shape = 'u32[72,128]{1,0:T(1,128)}', space=vmem, size = 0x9000, scoped, tag = 'internal scratch']
  %s0 = inlined_call_operand.vmem [shape: f32[1,2], index: 0, kind: input, shape index: {}]
  %s1 = inlined_call_operand.vmem [shape: f32[2,4,16,99], index: 1, kind: input, shape index: {}]
  %s2 = inlined_call_operand.vmem [shape: f32[2,4,16,50], index: 2, kind: input, shape index: {}]
  %s3 = inlined_call_operand.vmem [shape: f32[2,1,16,99], index: 3, kind: input, shape index: {}]
  %s4 = inlined_call_operand.vmem [shape: f32[2,4,50,49], index: 4, kind: input, shape index: {}]
  %s5 = inlined_call_operand.vmem [shape: f32[2,99,128], index: 5, kind: input, shape index: {}]
  %s6 = inlined_call_operand.vmem [shape: f32[128,128], index: 6, kind: input, shape index: {}]
  %s7 = inlined_call_operand.vmem [shape: f32[1,128], index: 7, kind: input, shape index: {}]
  %s8 = inlined_call_operand.vmem [shape: f32[128,128], index: 8, kind: input, shape index: {}]
  %s9 = inlined_call_operand.vmem [shape: f32[1,128], index: 9, kind: input, shape index: {}]
  %s10 = inlined_call_operand.hbm [shape: f32[2,16,128], index: 10, kind: output, shape index: {}]
  %s11 = sld [smem:[#allocation0]]
  $region73: #{sdpa_with_goc.3} parent=0
    _
  %s13 = ssub.s32 1, %s11
  %s14 = scalar_select 0, %s13, %s11
  $region1: #{sdpa_with_goc.3} parent=0
    #allocation2 [shape = 'u8[16384]{0}', space=vmem, size = 0x4000, scoped, tag = 'output window, operand 0']
    #allocation3 [shape = 's32[2]{0}', space=sflag, size = 0x8, scoped, tag = 'scoped memory for sdpa_with_goc.3']
    %15 = vsyncpa [#allocation3], 0
    %s16 = scalar_lea.sflag [#allocation3], 1
    %17 = vsyncpa %s16, 0
    loop: start=0, step=1, limit=4
    $region2: #{sdpa_with_goc.3} parent=1 // loop_pre_header
      _
    $region3: #{sdpa_with_goc.3} parent=1 // loop_header
      %s19 = sphi 0, %s23
      %p20 = scmp.ge.s32.totalorder %s19, 4
      %s26 = sphi 0, %s38
      %s27 = sphi 0, %s34
      %s28 = sphi 0, %s26
      %s29 = sphi 0, %s27
      %s30 = sphi 0, %s28
      %s31 = sphi 0, %s29
      %s39 = sphi 0, %s39
      %s41 = sphi 0, %s39
      %s42 = sphi 0, %s41
      %s56 = sphi 0, %s42
      %s64 = sphi 0, %s66
      %s67 = sphi 0, %s64
      %s68 = sphi 0, %s67
      %s84 = sphi 0, %s68
      %s92 = sphi 0, %s94
      %s95 = sphi 0, %s92
      %s96 = sphi 0, %s95
      %s112 = sphi 0, %s96
      %s120 = sphi 0, %s122
      %s123 = sphi 0, %s120
      %s124 = sphi 0, %s123
      %s140 = sphi 0, %s124
      %s146 = sphi 0, %s148
      %s149 = sphi 0, %s146
      %s150 = sphi 0, %s149
      %s166 = sphi 0, %s150
      %s172 = sphi 0, %s174
      %s175 = sphi 0, %s172
      %s176 = sphi 0, %s175
      %s192 = sphi 0, %s176
      %s196 = sphi 0, %s196
      %s198 = sphi 0, %s196
      %s199 = sphi 0, %s198
      %s213 = sphi 0, %s199
      %s217 = sphi 0, %s217
      %s219 = sphi 0, %s217
      %s220 = sphi 0, %s219
      %s234 = sphi 0, %s220
      %s238 = sphi 0, %s238
      %s240 = sphi 0, %s238
      %s241 = sphi 0, %s240
      %s255 = sphi 0, %s241
      %s259 = sphi 0, %s259
      %s261 = sphi 0, %s259
      %s262 = sphi 0, %s261
      %s276 = sphi 0, %s262
      %s284 = sphi 0, %s286
      %s287 = sphi 0, %s284
      %s288 = sphi 0, %s287
      %s304 = sphi 0, %s288
    $region4: #{sdpa_with_goc.3} parent=1 // loop_header_branch
      %22 = sbr.rel (%p20) target = $region8
    $region5: #{sdpa_with_goc.3} parent=1 // loop_body
      %s24 = ssub.s32 %s19, 1
      %s25 = ssub.s32 %s19, 2
      %s32 = sadd.s32 1, %s27
      %p33 = scmp.ge.s32.totalorder %s32, 1
      %s34 = scalar_select %p33, 0, %s32
      %s35 = sadd.s32 1, %s26
      %s36 = scalar_select %p33, %s35, %s26
      %p37 = scmp.ge.s32.totalorder %s36, 2
      %s38 = scalar_select %p37, 0, %s36
      %s40 = sadd.s32 %s39, 1
      %p43 = scmp.eq.s32.totalorder %s19, 1
      %p44 = scmp.ne.s32.totalorder %s39, %s41
      %p45 = scmp.eq.s32.totalorder %s19, 0
      %p46 = por %p44, %p45
      %p47 = scmp.ne.s32.totalorder %s39, %s41
      %p48 = scmp.eq.s32.totalorder %s24, 1
      %p49 = por %p47, %p48
      %p50 = scmp.ne.s32.totalorder %s41, %s42
      %p51 = scmp.eq.s32.totalorder %s24, 0
      %p52 = por %p50, %p51
      %p53 = scmp.ne.s32.totalorder %s41, %s42
      %p54 = scmp.eq.s32.totalorder %s25, 1
      %p55 = por %p53, %p54
      %p57 = scmp.ne.s32.totalorder %s42, %s56
      %p58 = scmp.eq.s32.totalorder %s25, 0
      %p59 = por %p57, %p58
      %s60 = ssub.s32 %s26, %s38
      %s61 = ssub.s32 %s27, %s34
      %s62 = sor.u32 %s60, %s61
      %p63 = scmp.eq.s32.totalorder %s62, 0
      %s65 = sadd.s32 %s64, 1
      %s66 = scalar_select %p63, %s64, %s65
      %p69 = pneg %p63
      %p70 = scmp.eq.s32.totalorder %s19, 1
      %p71 = por %p69, %p70
      %p72 = scmp.ne.s32.totalorder %s64, %s67
      %p73 = scmp.eq.s32.totalorder %s19, 0
      %p74 = por %p72, %p73
      %p75 = scmp.ne.s32.totalorder %s64, %s67
      %p76 = scmp.eq.s32.totalorder %s24, 1
      %p77 = por %p75, %p76
      %p78 = scmp.ne.s32.totalorder %s67, %s68
      %p79 = scmp.eq.s32.totalorder %s24, 0
      %p80 = por %p78, %p79
      %p81 = scmp.ne.s32.totalorder %s67, %s68
      %p82 = scmp.eq.s32.totalorder %s25, 1
      %p83 = por %p81, %p82
      %p85 = scmp.ne.s32.totalorder %s68, %s84
      %p86 = scmp.eq.s32.totalorder %s25, 0
      %p87 = por %p85, %p86
      %s88 = ssub.s32 %s26, %s38
      %s89 = ssub.s32 %s27, %s34
      %s90 = sor.u32 %s88, %s89
      %p91 = scmp.eq.s32.totalorder %s90, 0
      %s93 = sadd.s32 %s92, 1
      %s94 = scalar_select %p91, %s92, %s93
      %p97 = pneg %p91
      %p98 = scmp.eq.s32.totalorder %s19, 1
      %p99 = por %p97, %p98
      %p100 = scmp.ne.s32.totalorder %s92, %s95
      %p101 = scmp.eq.s32.totalorder %s19, 0
      %p102 = por %p100, %p101
      %p103 = scmp.ne.s32.totalorder %s92, %s95
      %p104 = scmp.eq.s32.totalorder %s24, 1
      %p105 = por %p103, %p104
      %p106 = scmp.ne.s32.totalorder %s95, %s96
      %p107 = scmp.eq.s32.totalorder %s24, 0
      %p108 = por %p106, %p107
      %p109 = scmp.ne.s32.totalorder %s95, %s96
      %p110 = scmp.eq.s32.totalorder %s25, 1
      %p111 = por %p109, %p110
      %p113 = scmp.ne.s32.totalorder %s96, %s112
      %p114 = scmp.eq.s32.totalorder %s25, 0
      %p115 = por %p113, %p114
      %s116 = ssub.s32 %s26, %s38
      %s117 = ssub.s32 %s27, %s34
      %s118 = sor.u32 %s116, %s117
      %p119 = scmp.eq.s32.totalorder %s118, 0
      %s121 = sadd.s32 %s120, 1
      %s122 = scalar_select %p119, %s120, %s121
      %p125 = pneg %p119
      %p126 = scmp.eq.s32.totalorder %s19, 1
      %p127 = por %p125, %p126
      %p128 = scmp.ne.s32.totalorder %s120, %s123
      %p129 = scmp.eq.s32.totalorder %s19, 0
      %p130 = por %p128, %p129
      %p131 = scmp.ne.s32.totalorder %s120, %s123
      %p132 = scmp.eq.s32.totalorder %s24, 1
      %p133 = por %p131, %p132
      %p134 = scmp.ne.s32.totalorder %s123, %s124
      %p135 = scmp.eq.s32.totalorder %s24, 0
      %p136 = por %p134, %p135
      %p137 = scmp.ne.s32.totalorder %s123, %s124
      %p138 = scmp.eq.s32.totalorder %s25, 1
      %p139 = por %p137, %p138
      %p141 = scmp.ne.s32.totalorder %s124, %s140
      %p142 = scmp.eq.s32.totalorder %s25, 0
      %p143 = por %p141, %p142
      %s144 = ssub.s32 %s26, %s38
      %p145 = scmp.eq.s32.totalorder %s144, 0
      %s147 = sadd.s32 %s146, 1
      %s148 = scalar_select %p145, %s146, %s147
      %p151 = pneg %p145
      %p152 = scmp.eq.s32.totalorder %s19, 1
      %p153 = por %p151, %p152
      %p154 = scmp.ne.s32.totalorder %s146, %s149
      %p155 = scmp.eq.s32.totalorder %s19, 0
      %p156 = por %p154, %p155
      %p157 = scmp.ne.s32.totalorder %s146, %s149
      %p158 = scmp.eq.s32.totalorder %s24, 1
      %p159 = por %p157, %p158
      %p160 = scmp.ne.s32.totalorder %s149, %s150
      %p161 = scmp.eq.s32.totalorder %s24, 0
      %p162 = por %p160, %p161
      %p163 = scmp.ne.s32.totalorder %s149, %s150
      %p164 = scmp.eq.s32.totalorder %s25, 1
      %p165 = por %p163, %p164
      %p167 = scmp.ne.s32.totalorder %s150, %s166
      %p168 = scmp.eq.s32.totalorder %s25, 0
      %p169 = por %p167, %p168
      %s170 = ssub.s32 %s26, %s38
      %p171 = scmp.eq.s32.totalorder %s170, 0
      %s173 = sadd.s32 %s172, 1
      %s174 = scalar_select %p171, %s172, %s173
      %p177 = pneg %p171
      %p178 = scmp.eq.s32.totalorder %s19, 1
      %p179 = por %p177, %p178
      %p180 = scmp.ne.s32.totalorder %s172, %s175
      %p181 = scmp.eq.s32.totalorder %s19, 0
      %p182 = por %p180, %p181
      %p183 = scmp.ne.s32.totalorder %s172, %s175
      %p184 = scmp.eq.s32.totalorder %s24, 1
      %p185 = por %p183, %p184
      %p186 = scmp.ne.s32.totalorder %s175, %s176
      %p187 = scmp.eq.s32.totalorder %s24, 0
      %p188 = por %p186, %p187
      %p189 = scmp.ne.s32.totalorder %s175, %s176
      %p190 = scmp.eq.s32.totalorder %s25, 1
      %p191 = por %p189, %p190
      %p193 = scmp.ne.s32.totalorder %s176, %s192
      %p194 = scmp.eq.s32.totalorder %s25, 0
      %p195 = por %p193, %p194
      %s197 = sadd.s32 %s196, 1
      %p200 = scmp.eq.s32.totalorder %s19, 1
      %p201 = scmp.ne.s32.totalorder %s196, %s198
      %p202 = scmp.eq.s32.totalorder %s19, 0
      %p203 = por %p201, %p202
      %p204 = scmp.ne.s32.totalorder %s196, %s198
      %p205 = scmp.eq.s32.totalorder %s24, 1
      %p206 = por %p204, %p205
      %p207 = scmp.ne.s32.totalorder %s198, %s199
      %p208 = scmp.eq.s32.totalorder %s24, 0
      %p209 = por %p207, %p208
      %p210 = scmp.ne.s32.totalorder %s198, %s199
      %p211 = scmp.eq.s32.totalorder %s25, 1
      %p212 = por %p210, %p211
      %p214 = scmp.ne.s32.totalorder %s199, %s213
      %p215 = scmp.eq.s32.totalorder %s25, 0
      %p216 = por %p214, %p215
      %s218 = sadd.s32 %s217, 1
      %p221 = scmp.eq.s32.totalorder %s19, 1
      %p222 = scmp.ne.s32.totalorder %s217, %s219
      %p223 = scmp.eq.s32.totalorder %s19, 0
      %p224 = por %p222, %p223
      %p225 = scmp.ne.s32.totalorder %s217, %s219
      %p226 = scmp.eq.s32.totalorder %s24, 1
      %p227 = por %p225, %p226
      %p228 = scmp.ne.s32.totalorder %s219, %s220
      %p229 = scmp.eq.s32.totalorder %s24, 0
      %p230 = por %p228, %p229
      %p231 = scmp.ne.s32.totalorder %s219, %s220
      %p232 = scmp.eq.s32.totalorder %s25, 1
      %p233 = por %p231, %p232
      %p235 = scmp.ne.s32.totalorder %s220, %s234
      %p236 = scmp.eq.s32.totalorder %s25, 0
      %p237 = por %p235, %p236
      %s239 = sadd.s32 %s238, 1
      %p242 = scmp.eq.s32.totalorder %s19, 1
      %p243 = scmp.ne.s32.totalorder %s238, %s240
      %p244 = scmp.eq.s32.totalorder %s19, 0
      %p245 = por %p243, %p244
      %p246 = scmp.ne.s32.totalorder %s238, %s240
      %p247 = scmp.eq.s32.totalorder %s24, 1
      %p248 = por %p246, %p247
      %p249 = scmp.ne.s32.totalorder %s240, %s241
      %p250 = scmp.eq.s32.totalorder %s24, 0
      %p251 = por %p249, %p250
      %p252 = scmp.ne.s32.totalorder %s240, %s241
      %p253 = scmp.eq.s32.totalorder %s25, 1
      %p254 = por %p252, %p253
      %p256 = scmp.ne.s32.totalorder %s241, %s255
      %p257 = scmp.eq.s32.totalorder %s25, 0
      %p258 = por %p256, %p257
      %s260 = sadd.s32 %s259, 1
      %p263 = scmp.eq.s32.totalorder %s19, 1
      %p264 = scmp.ne.s32.totalorder %s259, %s261
      %p265 = scmp.eq.s32.totalorder %s19, 0
      %p266 = por %p264, %p265
      %p267 = scmp.ne.s32.totalorder %s259, %s261
      %p268 = scmp.eq.s32.totalorder %s24, 1
      %p269 = por %p267, %p268
      %p270 = scmp.ne.s32.totalorder %s261, %s262
      %p271 = scmp.eq.s32.totalorder %s24, 0
      %p272 = por %p270, %p271
      %p273 = scmp.ne.s32.totalorder %s261, %s262
      %p274 = scmp.eq.s32.totalorder %s25, 1
      %p275 = por %p273, %p274
      %p277 = scmp.ne.s32.totalorder %s262, %s276
      %p278 = scmp.eq.s32.totalorder %s25, 0
      %p279 = por %p277, %p278
      %s280 = ssub.s32 %s26, %s38
      %s281 = ssub.s32 %s27, %s34
      %s282 = sor.u32 %s280, %s281
      %p283 = scmp.eq.s32.totalorder %s282, 0
      %s285 = sadd.s32 %s284, 1
      %s286 = scalar_select %p283, %s284, %s285
      %p289 = pneg %p283
      %p290 = scmp.eq.s32.totalorder %s19, 1
      %p291 = por %p289, %p290
      %p292 = scmp.ne.s32.totalorder %s284, %s287
      %p293 = scmp.eq.s32.totalorder %s19, 0
      %p294 = por %p292, %p293
      %p295 = scmp.ne.s32.totalorder %s284, %s287
      %p296 = scmp.eq.s32.totalorder %s24, 1
      %p297 = por %p295, %p296
      %p298 = scmp.ne.s32.totalorder %s287, %s288
      %p299 = scmp.eq.s32.totalorder %s24, 0
      %p300 = por %p298, %p299
      %p301 = scmp.ne.s32.totalorder %s287, %s288
      %p302 = scmp.eq.s32.totalorder %s25, 1
      %p303 = por %p301, %p302
      %p305 = scmp.ne.s32.totalorder %s288, %s304
      %p306 = scmp.eq.s32.totalorder %s25, 0
      %p307 = por %p305, %p306
      %p308 = scmp.le.s32.totalorder 1, %s19
      %p309 = scmp.lt.s32.totalorder %s19, 3
      %p310 = pnand %p308, %p309
      %p311 = pneg %p310
      // Predicated region
      $region9: #{sdpa_with_goc.3} parent=5 // pred_check
        _
      $region10: #{sdpa_with_goc.3} parent=5 // pred_check_branch
        %313 = sbr.rel (%p310) target = $region12
      $region11: #{sdpa_with_goc.3} parent=5 // pred_region
        %s314 = ssub.s32 %s19, 1
        // Predicated region
        $region13: #{sdpa_with_goc.3} parent=11 // pred_check
          %p315 = pneg %p52
        $region14: #{sdpa_with_goc.3} parent=11 // pred_check_branch
          %317 = sbr.rel (%p315) target = $region16
        $region15: #{sdpa_with_goc.3} parent=11 // pred_region
          _
        $region16: #{sdpa_with_goc.3} parent=11 // pred_fallthru
          _
        // Predicated region
        $region17: #{sdpa_with_goc.3} parent=11 // pred_check
          %p318 = pneg %p209
        $region18: #{sdpa_with_goc.3} parent=11 // pred_check_branch
          %320 = sbr.rel (%p318) target = $region20
        $region19: #{sdpa_with_goc.3} parent=11 // pred_region
          _
        $region20: #{sdpa_with_goc.3} parent=11 // pred_fallthru
          _
        // Predicated region
        $region21: #{sdpa_with_goc.3} parent=11 // pred_check
          %p321 = pneg %p230
        $region22: #{sdpa_with_goc.3} parent=11 // pred_check_branch
          %323 = sbr.rel (%p321) target = $region24
        $region23: #{sdpa_with_goc.3} parent=11 // pred_region
          _
        $region24: #{sdpa_with_goc.3} parent=11 // pred_fallthru
          _
        // Predicated region
        $region25: #{sdpa_with_goc.3} parent=11 // pred_check
          %p324 = pneg %p251
        $region26: #{sdpa_with_goc.3} parent=11 // pred_check_branch
          %326 = sbr.rel (%p324) target = $region28
        $region27: #{sdpa_with_goc.3} parent=11 // pred_region
          _
        $region28: #{sdpa_with_goc.3} parent=11 // pred_fallthru
          _
        // Predicated region
        $region29: #{sdpa_with_goc.3} parent=11 // pred_check
          %p327 = pneg %p272
        $region30: #{sdpa_with_goc.3} parent=11 // pred_check_branch
          %329 = sbr.rel (%p327) target = $region32
        $region31: #{sdpa_with_goc.3} parent=11 // pred_region
          _
        $region32: #{sdpa_with_goc.3} parent=11 // pred_fallthru
          _
      $region12: #{sdpa_with_goc.3} parent=5 // pred_fallthru
        _
      %p330 = scmp.lt.s32.totalorder %s19, 2
      // Predicated region
      $region33: #{sdpa_with_goc.3} parent=5 // pred_check
        %p331 = pneg %p330
      $region34: #{sdpa_with_goc.3} parent=5 // pred_check_branch
        %333 = sbr.rel (%p331) target = $region36
      $region35: #{sdpa_with_goc.3} parent=5 // pred_region
        // Predicated region
        $region37: #{sdpa_with_goc.3} parent=35 // pred_check
          %p334 = pneg %p74
        $region38: #{sdpa_with_goc.3} parent=35 // pred_check_branch
          %336 = sbr.rel (%p334) target = $region40
        $region39: #{sdpa_with_goc.3} parent=35 // pred_region
          %s337 = smul.u32 2, %s27
          %p338 = scmp.lt.s32.totalorder %s26, 1
          %s339 = scalar_select %p338, %s26, 1
          %p340 = scmp.lt.s32.totalorder %s337, 1
          %s341 = scalar_select %p340, %s337, 1
          %s342 = smul.addr %s339, 8
          %s343 = sadd.s32 %s341, %s342
          %s344 = smul.addr %s343, 8
          %s345 = scalar_lea.vmem %s1, %s344
          %s346 = smul.u32 2, %s27
        $region40: #{sdpa_with_goc.3} parent=35 // pred_fallthru
          _
        // Predicated region
        $region41: #{sdpa_with_goc.3} parent=35 // pred_check
          %p347 = pneg %p102
        $region42: #{sdpa_with_goc.3} parent=35 // pred_check_branch
          %349 = sbr.rel (%p347) target = $region44
        $region43: #{sdpa_with_goc.3} parent=35 // pred_region
          %s350 = smul.u32 2, %s27
          %p351 = scmp.lt.s32.totalorder %s26, 1
          %s352 = scalar_select %p351, %s26, 1
          %p353 = scmp.lt.s32.totalorder %s350, 1
          %s354 = scalar_select %p353, %s350, 1
          %s355 = smul.addr %s352, 8
          %s356 = sadd.s32 %s354, %s355
          %s357 = smul.addr %s356, 8
          %s358 = scalar_lea.vmem %s2, %s357
          %s359 = smul.u32 2, %s27
        $region44: #{sdpa_with_goc.3} parent=35 // pred_fallthru
          _
        // Predicated region
        $region45: #{sdpa_with_goc.3} parent=35 // pred_check
          %p360 = pneg %p130
        $region46: #{sdpa_with_goc.3} parent=35 // pred_check_branch
          %362 = sbr.rel (%p360) target = $region48
        $region47: #{sdpa_with_goc.3} parent=35 // pred_region
          %s363 = smul.u32 2, %s27
          %p364 = scmp.lt.s32.totalorder %s26, 1
          %s365 = scalar_select %p364, %s26, 1
          %p366 = scmp.lt.s32.totalorder %s363, 1
          %s367 = scalar_select %p366, %s363, 1
          %s368 = smul.addr %s365, 2
          %s369 = sadd.s32 %s367, %s368
          %s370 = smul.addr %s369, 8
          %s371 = scalar_lea.vmem %s3, %s370
          %s372 = smul.u32 2, %s27
        $region48: #{sdpa_with_goc.3} parent=35 // pred_fallthru
          _
        // Predicated region
        $region49: #{sdpa_with_goc.3} parent=35 // pred_check
          %p373 = pneg %p156
        $region50: #{sdpa_with_goc.3} parent=35 // pred_check_branch
          %375 = sbr.rel (%p373) target = $region52
        $region51: #{sdpa_with_goc.3} parent=35 // pred_region
          %p376 = scmp.lt.s32.totalorder %s26, 1
          %s377 = scalar_select %p376, %s26, 1
          %s378 = smul.addr %s377, 28
          %s379 = smul.addr %s378, 8
          %s380 = scalar_lea.vmem %s4, %s379
        $region52: #{sdpa_with_goc.3} parent=35 // pred_fallthru
          _
        // Predicated region
        $region53: #{sdpa_with_goc.3} parent=35 // pred_check
          %p381 = pneg %p182
        $region54: #{sdpa_with_goc.3} parent=35 // pred_check_branch
          %383 = sbr.rel (%p381) target = $region56
        $region55: #{sdpa_with_goc.3} parent=35 // pred_region
          %p384 = scmp.lt.s32.totalorder %s26, 1
          %s385 = scalar_select %p384, %s26, 1
          %s386 = smul.addr %s385, 13
          %s387 = smul.addr %s386, 8
          %s388 = scalar_lea.vmem %s5, %s387
        $region56: #{sdpa_with_goc.3} parent=35 // pred_fallthru
          _
      $region36: #{sdpa_with_goc.3} parent=5 // pred_fallthru
        _
      %p389 = scmp.le.s32.totalorder 1, %s19
      %p390 = scmp.lt.s32.totalorder %s19, 3
      %p391 = pnand %p389, %p390
      %p392 = pneg %p391
      // Predicated region
      $region57: #{sdpa_with_goc.3} parent=5 // pred_check
        _
      $region58: #{sdpa_with_goc.3} parent=5 // pred_check_branch
        %394 = sbr.rel (%p391) target = $region60
      $region59: #{sdpa_with_goc.3} parent=5 // pred_region
        %s395 = ssub.s32 %s19, 1
        %p396 = pneg %p52
        %p397 = pneg %p49
        %s398 = smul.u32 2, %s29
        %p399 = scmp.lt.s32.totalorder %s28, 1
        %s400 = scalar_select %p399, %s28, 1
        %p401 = scmp.lt.s32.totalorder %s398, 1
        %s402 = scalar_select %p401, %s398, 1
        %s403 = smul.addr %s400, 8
        %s404 = sadd.s32 %s402, %s403
        %s405 = smul.addr %s404, 8
        %s406 = scalar_lea.vmem %s1, %s405
        %p407 = pneg %p80
        %p408 = pneg %p77
        %s409 = smul.u32 2, %s29
        %p410 = scmp.lt.s32.totalorder %s28, 1
        %s411 = scalar_select %p410, %s28, 1
        %p412 = scmp.lt.s32.totalorder %s409, 1
        %s413 = scalar_select %p412, %s409, 1
        %s414 = smul.addr %s411, 8
        %s415 = sadd.s32 %s413, %s414
        %s416 = smul.addr %s415, 8
        %s417 = scalar_lea.vmem %s2, %s416
        %p418 = pneg %p108
        %p419 = pneg %p105
        %s420 = smul.u32 2, %s29
        %p421 = scmp.lt.s32.totalorder %s28, 1
        %s422 = scalar_select %p421, %s28, 1
        %p423 = scmp.lt.s32.totalorder %s420, 1
        %s424 = scalar_select %p423, %s420, 1
        %s425 = smul.addr %s422, 2
        %s426 = sadd.s32 %s424, %s425
        %s427 = smul.addr %s426, 8
        %s428 = scalar_lea.vmem %s3, %s427
        %p429 = pneg %p136
        %p430 = pneg %p133
        %p431 = scmp.lt.s32.totalorder %s28, 1
        %s432 = scalar_select %p431, %s28, 1
        %s433 = smul.addr %s432, 28
        %s434 = smul.addr %s433, 8
        %s435 = scalar_lea.vmem %s4, %s434
        %p436 = pneg %p162
        %p437 = pneg %p159
        %p438 = scmp.lt.s32.totalorder %s28, 1
        %s439 = scalar_select %p438, %s28, 1
        %s440 = smul.addr %s439, 13
        %s441 = smul.addr %s440, 8
        %s442 = scalar_lea.vmem %s5, %s441
        %p443 = pneg %p188
        %p444 = pneg %p185
        %p445 = pneg %p209
        %p446 = pneg %p206
        %p447 = pneg %p230
        %p448 = pneg %p227
        %p449 = pneg %p251
        %p450 = pneg %p248
        %p451 = pneg %p272
        %p452 = pneg %p269
        %p453 = pneg %p300
        %p454 = pneg %p297
        %s455 = sand.u32 %s287, 1
        %s456 = scalar_lea.sflag [#allocation3], %s455
        %s457 = sand.u32 %s287, 1
        %s458 = smul.addr %s457, 16
        %s459 = scalar_lea.vmem [#allocation2], %s458
        %s460 = smul.u32 2, %s29
        %p461 = scmp.lt.s32.totalorder %s28, 1
        %s462 = scalar_select %p461, %s28, 1
        %p463 = scmp.lt.s32.totalorder %s460, 1
        %s464 = scalar_select %p463, %s460, 1
        %s465 = smul.addr %s462, 8
        %s466 = sadd.s32 %s464, %s465
        %s467 = smul.addr %s466, 8
        %s468 = scalar_lea.vmem %s1, %s467
        %s469 = smul.u32 2, %s29
        %s470 = smul.u32 2, %s29
        %p471 = scmp.lt.s32.totalorder %s28, 1
        %s472 = scalar_select %p471, %s28, 1
        %p473 = scmp.lt.s32.totalorder %s470, 1
        %s474 = scalar_select %p473, %s470, 1
        %s475 = smul.addr %s472, 8
        %s476 = sadd.s32 %s474, %s475
        %s477 = smul.addr %s476, 8
        %s478 = scalar_lea.vmem %s2, %s477
        %s479 = smul.u32 2, %s29
        %s480 = smul.u32 2, %s29
        %p481 = scmp.lt.s32.totalorder %s28, 1
        %s482 = scalar_select %p481, %s28, 1
        %p483 = scmp.lt.s32.totalorder %s480, 1
        %s484 = scalar_select %p483, %s480, 1
        %s485 = smul.addr %s482, 2
        %s486 = sadd.s32 %s484, %s485
        %s487 = smul.addr %s486, 8
        %s488 = scalar_lea.vmem %s3, %s487
        %s489 = smul.u32 2, %s29
        %p490 = scmp.lt.s32.totalorder %s28, 1
        %s491 = scalar_select %p490, %s28, 1
        %s492 = smul.addr %s491, 28
        %s493 = smul.addr %s492, 8
        %s494 = scalar_lea.vmem %s4, %s493
        %p495 = scmp.lt.s32.totalorder %s28, 1
        %s496 = scalar_select %p495, %s28, 1
        %s497 = smul.addr %s496, 13
        %s498 = smul.addr %s497, 8
        %s499 = scalar_lea.vmem %s5, %s498
        %s500 = smul.u32 2, %s29
        %v502 = vld [vmem:[%s0] sm:$0x1]
        %v503 = vld [vmem:[%s488] sm:$0xff]
        %v504 = vld [vmem:[%s488 + $0x8] sm:$0xff]
        %v505 = vld [vmem:[%s499] sm:$0xff]
        %v506 = vld [vmem:[%s499 + $0x8] sm:$0xff]
        %v507 = vld [vmem:[%s499 + $0x10] sm:$0xff]
        %v508 = vld [vmem:[%s499 + $0x18] sm:$0xff]
        %v509 = vld [vmem:[%s499 + $0x20] sm:$0xff]
        %v510 = vld [vmem:[%s499 + $0x28] sm:$0xff]
        %v511 = vld [vmem:[%s499 + $0x30] sm:$0xff]
        %v512 = vld [vmem:[%s499 + $0x38] sm:$0xff]
        %v513 = vld [vmem:[%s499 + $0x40] sm:$0xff]
        %v514 = vld [vmem:[%s499 + $0x48] sm:$0xff]
        %v515 = vld [vmem:[%s499 + $0x50] sm:$0xff]
        %v516 = vld [vmem:[%s499 + $0x58] sm:$0xff]
        %v517 = vld [vmem:[%s499 + $0x60] sm:$0x7]
        %v518 = vpack.c.bf16 %v506, %v505
        %v519 = vpack.c.bf16 %v508, %v507
        %v520 = vpack.c.bf16 %v510, %v509
        %v521 = vpack.c.bf16 %v512, %v511
        %v522 = vpack.c.bf16 %v514, %v513
        %v523 = vpack.c.bf16 %v516, %v515
        %v524 = vpack.c.bf16 %v517, %v517
        %v525 = vld [vmem:[%s6] sm:$0xff]
        %v526 = vld [vmem:[%s6 + $0x8] sm:$0xff]
        %v527 = vld [vmem:[%s6 + $0x10] sm:$0xff]
        %v528 = vld [vmem:[%s6 + $0x18] sm:$0xff]
        %v529 = vld [vmem:[%s6 + $0x20] sm:$0xff]
        %v530 = vld [vmem:[%s6 + $0x28] sm:$0xff]
        %v531 = vld [vmem:[%s6 + $0x30] sm:$0xff]
        %v532 = vld [vmem:[%s6 + $0x38] sm:$0xff]
        %v533 = vld [vmem:[%s6 + $0x40] sm:$0xff]
        %v534 = vld [vmem:[%s6 + $0x48] sm:$0xff]
        %v535 = vld [vmem:[%s6 + $0x50] sm:$0xff]
        %v536 = vld [vmem:[%s6 + $0x58] sm:$0xff]
        %v537 = vld [vmem:[%s6 + $0x60] sm:$0xff]
        %v538 = vld [vmem:[%s6 + $0x68] sm:$0xff]
        %v539 = vld [vmem:[%s6 + $0x70] sm:$0xff]
        %v540 = vld [vmem:[%s6 + $0x78] sm:$0xff]
        %v541 = vpack.c.bf16 %v526, %v525
        %v542 = vpack.c.bf16 %v528, %v527
        %v543 = vpack.c.bf16 %v530, %v529
        %v544 = vpack.c.bf16 %v532, %v531
        %v545 = vpack.c.bf16 %v534, %v533
        %v546 = vpack.c.bf16 %v536, %v535
        %v547 = vpack.c.bf16 %v538, %v537
        %v548 = vpack.c.bf16 %v540, %v539
        %v549 = vld [vmem:[%s7] sm:$0x1]
        %v551 = vperm.slane %v549, 0
        %553 = vmatpush.bf16.msra.mxu0 %v548
        %554 = vmatpush.bf16.msra.mxu0 %v547
        %555 = vmatpush.bf16.msra.mxu0 %v546
        %556 = vmatpush.bf16.msra.mxu0 %v545
        %557 = vmatpush.bf16.msra.mxu0 %v544
        %558 = vmatpush.bf16.msra.mxu0 %v543
        %559 = vmatpush.bf16.msra.mxu0 %v542
        %560 = vmatpush.bf16.msra.mxu0 %v541
        %561 = vmatmul.bf16.gmra.mxu0 %v518
        %v562 = vpop.f32.mrf.mxu0
        %v563 = vadd.f32 %v551, %v562
        %v564 = vpop.f32.mrf.mxu0
        %v565 = vadd.f32 %v551, %v564
        %566 = vmatmul.bf16.gmra.mxu0 %v519
        %v567 = vpop.f32.mrf.mxu0
        %v568 = vadd.f32 %v551, %v567
        %v569 = vpop.f32.mrf.mxu0
        %v570 = vadd.f32 %v551, %v569
        %571 = vmatmul.bf16.gmra.mxu0 %v520
        %v572 = vpop.f32.mrf.mxu0
        %v573 = vadd.f32 %v551, %v572
        %v574 = vpop.f32.mrf.mxu0
        %v575 = vadd.f32 %v551, %v574
        %576 = vmatmul.bf16.gmra.mxu0 %v521
        %v577 = vpop.f32.mrf.mxu0
        %v578 = vadd.f32 %v551, %v577
        %v579 = vpop.f32.mrf.mxu0
        %v580 = vadd.f32 %v551, %v579
        %581 = vmatmul.bf16.gmra.mxu0 %v522
        %v582 = vpop.f32.mrf.mxu0
        %v583 = vadd.f32 %v551, %v582
        %v584 = vpop.f32.mrf.mxu0
        %v585 = vadd.f32 %v551, %v584
        %586 = vmatmul.bf16.gmra.mxu0 %v523
        %v587 = vpop.f32.mrf.mxu0
        %v588 = vadd.f32 %v551, %v587
        %v589 = vpop.f32.mrf.mxu0
        %v590 = vadd.f32 %v551, %v589
        %591 = vmatmul.bf16.gmra.mxu0 %v524
        %v592 = vpop.f32.mrf.mxu0
        %v593 = vadd.f32 %v551, %v592
        %v594 = vpop.f32.mrf.mxu0
        %595 = vdwg.mxu0
        %vm596 = vcmp.gt.f32.partialorder %v503, 0.0
        %vm597 = vcmp.gt.f32.partialorder %v504, 0.0
        %v598 = vld [vmem:[%s468] sm:$0xff]
        %v599 = vld [vmem:[%s468 + $0x8] sm:$0xff]
        %v601 = vperm.slane %v502, 0
        %602 = vset.pattern.permute.xlu0 0
        %603 = vperm.xlu0 %602, %v601
        %v604 = vpop.permute.xlu0 %603
        %v606 = vsub.f32 %v598, %v604
        %v607 = vsub.f32 %v599, %v604
        %v608 = vsel %vm596, 0.0, %v606
        %v609 = vsel %vm597, 0.0, %v607
        %v610 = vld [vmem:[%s478] sm:$0xff]
        %v611 = vld [vmem:[%s478 + $0x8] sm:$0xff]
        %612 = vset.pattern.permute.xlu0 1
        %613 = vperm.xlu0 %612, %v601
        %v614 = vpop.permute.xlu0 %613
        %v616 = vsub.f32 %v610, %v614
        %v617 = vsub.f32 %v611, %v614
        %v618 = vsel %vm596, 0.0, %v616
        %v619 = vsel %vm597, 0.0, %v617
        %v620 = vld [vmem:[%s494] sm:$0xff]
        %v621 = vld [vmem:[%s494 + $0x8] sm:$0xff]
        %v622 = vld [vmem:[%s494 + $0x10] sm:$0xff]
        %v623 = vld [vmem:[%s494 + $0x18] sm:$0xff]
        %v624 = vld [vmem:[%s494 + $0x20] sm:$0xff]
        %v625 = vld [vmem:[%s494 + $0x28] sm:$0xff]
        %v626 = vld [vmem:[%s494 + $0x30] sm:$0x3]
        %vm627 = vcmask 408576
        %v629 = vsel %vm627, %v618, 0
        %v632 = vsel %vm627, %v619, 0
        %vm634 = vcmask 1041408
        %v636 = vsel %vm634, %v626, 0
        %638 = vmatpush.msra.mxu0 0.0
        %639 = vmatpush.msra.mxu0 0.0
        %640 = vmatpush.msra.mxu0 0.0
        %641 = vmatpush.msra.mxu0 0.0
        %642 = vmatpush.msra.mxu0 0.0
        %643 = vmatpush.msra.mxu0 0.0
        %644 = vmatpush.msra.mxu0 0.0
        %645 = vmatpush.msra.mxu0 0.0
        %646 = vmatpush.msra.mxu0 0.0
        %647 = vmatpush.msra.mxu0 %v636
        %648 = vmatpush.msra.mxu0 %v625
        %649 = vmatpush.msra.mxu0 %v624
        %650 = vmatpush.msra.mxu0 %v623
        %651 = vmatpush.msra.mxu0 %v622
        %652 = vmatpush.msra.mxu0 %v621
        %653 = vmatpush.msra.mxu0 %v620
        %654 = vmatmul.f32.gmra.mxu0 %v629
        %v655 = vpop.f32.mrf.mxu0
        %v656 = vadd.f32 0.0, %v655
        %657 = vmatmul.f32.gmra.mxu0 %v632
        %v658 = vpop.f32.mrf.mxu0
        %v659 = vadd.f32 0.0, %v658
        %660 = vdwg.mxu0
        %v661 = vmul.f32 %v656, 0.04
        %v662 = vmul.f32 %v659, 0.04
        %665 = vrot.lane.b32.xlu0 %v661, 50
        %v666 = vpop.permute.xlu0 %665
        %667 = vrot.lane.b32.xlu0 %v662, 50
        %v668 = vpop.permute.xlu0 %667
        %v671 = vadd.f32 %v608, %v666
        %v672 = vadd.f32 %v609, %v668
        %v673 = vsel %vm627, %v608, %v671
        %v674 = vsel %vm627, %v609, %v672
        %v675 = vsel %vm596, -inf, %v673
        %v676 = vsel %vm597, -inf, %v674
        %vm677 = vcmask 809984
        %v678 = vsel %vm677, %v675, -inf
        %679 = vmax.xlane.f32.xlu0 %v678
        %v680 = vpop.xlane.xlu0 %679
        %v681 = vsel %vm677, %v676, -inf
        %682 = vmax.xlane.f32.xlu0 %v681
        %v683 = vpop.xlane.xlu0 %682
        %v684 = vsub.f32 %v675, %v680
        %v685 = vsub.f32 %v676, %v683
        %v686 = vmul.f32 %v684, 1.442695
        %v687 = vpow.pop %v686
        %v688 = vmul.f32 %v685, 1.442695
        %v689 = vpow.pop %v688
        %v690 = vsel %vm677, %v687, 0.0
        %691 = vadd.xlane.f32.xlu0 %v690
        %v692 = vpop.xlane.xlu0 %691
        %v693 = vsel %vm677, %v689, 0.0
        %694 = vadd.xlane.f32.xlu0 %v693
        %v695 = vpop.xlane.xlu0 %694
        %v696 = vrcp.pop %v692
        %v697 = vrcp.pop %v695
        %v698 = vmul.f32 %v687, %v696
        %v699 = vmul.f32 %v689, %v697
        %v700 = vpack.c.bf16 %v565, %v563
        %v701 = vpack.c.bf16 %v570, %v568
        %v702 = vpack.c.bf16 %v575, %v573
        %v703 = vpack.c.bf16 %v580, %v578
        %v704 = vpack.c.bf16 %v585, %v583
        %v705 = vpack.c.bf16 %v590, %v588
        %v706 = vpack.c.bf16 %v593, %v593
        %v707 = vpack.c.bf16 %v699, %v698
        %v709 = vsel %vm677, %v707, 0
        %vm711 = vcmask 1040384
        %v712 = vsel %vm711, 4294967295, 65535
        %v713 = vsel %vm634, %v712, 0
        %v715 = vand.u32 %v706, %v713
        %717 = vmatpush.bf16.msra.mxu0 0
        %718 = vmatpush.bf16.msra.mxu0 %v715
        %719 = vmatpush.bf16.msra.mxu0 %v705
        %720 = vmatpush.bf16.msra.mxu0 %v704
        %721 = vmatpush.bf16.msra.mxu0 %v703
        %722 = vmatpush.bf16.msra.mxu0 %v702
        %723 = vmatpush.bf16.msra.mxu0 %v701
        %724 = vmatpush.bf16.msra.mxu0 %v700
        %725 = vmatmul.bf16.gmra.mxu0 %v709
        %v726 = vpop.f32.mrf.mxu0
        %v727 = vadd.f32 0.0, %v726
        %v728 = vpop.f32.mrf.mxu0
        %v729 = vadd.f32 0.0, %v728
        %730 = vdwg.mxu0
        %s731 = scalar_lea.vmem %s468, 16
        %v732 = vld [vmem:[%s731] sm:$0xff]
        %v733 = vld [vmem:[%s731 + $0x8] sm:$0xff]
        %v734 = vsub.f32 %v732, %v604
        %v735 = vsub.f32 %v733, %v604
        %v736 = vsel %vm596, 0.0, %v734
        %v737 = vsel %vm597, 0.0, %v735
        %s738 = scalar_lea.vmem %s478, 16
        %v739 = vld [vmem:[%s738] sm:$0xff]
        %v740 = vld [vmem:[%s738 + $0x8] sm:$0xff]
        %v741 = vsub.f32 %v739, %v614
        %v742 = vsub.f32 %v740, %v614
        %v743 = vsel %vm596, 0.0, %v741
        %v744 = vsel %vm597, 0.0, %v742
        %s745 = scalar_lea.vmem %s494, 56
        %v746 = vld [vmem:[%s745] sm:$0xff]
        %v747 = vld [vmem:[%s745 + $0x8] sm:$0xff]
        %v748 = vld [vmem:[%s745 + $0x10] sm:$0xff]
        %v749 = vld [vmem:[%s745 + $0x18] sm:$0xff]
        %v750 = vld [vmem:[%s745 + $0x20] sm:$0xff]
        %v751 = vld [vmem:[%s745 + $0x28] sm:$0xff]
        %v752 = vld [vmem:[%s745 + $0x30] sm:$0x3]
        %v754 = vsel %vm627, %v743, 0
        %v757 = vsel %vm627, %v744, 0
        %v760 = vsel %vm634, %v752, 0
        %762 = vmatpush.msra.mxu0 0.0
        %763 = vmatpush.msra.mxu0 0.0
        %764 = vmatpush.msra.mxu0 0.0
        %765 = vmatpush.msra.mxu0 0.0
        %766 = vmatpush.msra.mxu0 0.0
        %767 = vmatpush.msra.mxu0 0.0
        %768 = vmatpush.msra.mxu0 0.0
        %769 = vmatpush.msra.mxu0 0.0
        %770 = vmatpush.msra.mxu0 0.0
        %771 = vmatpush.msra.mxu0 %v760
        %772 = vmatpush.msra.mxu0 %v751
        %773 = vmatpush.msra.mxu0 %v750
        %774 = vmatpush.msra.mxu0 %v749
        %775 = vmatpush.msra.mxu0 %v748
        %776 = vmatpush.msra.mxu0 %v747
        %777 = vmatpush.msra.mxu0 %v746
        %778 = vmatmul.f32.gmra.mxu0 %v754
        %v779 = vpop.f32.mrf.mxu0
        %v780 = vadd.f32 0.0, %v779
        %781 = vmatmul.f32.gmra.mxu0 %v757
        %v782 = vpop.f32.mrf.mxu0
        %v783 = vadd.f32 0.0, %v782
        %784 = vdwg.mxu0
        %v785 = vmul.f32 %v780, 0.04
        %v786 = vmul.f32 %v783, 0.04
        %789 = vrot.lane.b32.xlu0 %v785, 50
        %v790 = vpop.permute.xlu0 %789
        %791 = vrot.lane.b32.xlu0 %v786, 50
        %v792 = vpop.permute.xlu0 %791
        %v795 = vadd.f32 %v736, %v790
        %v796 = vadd.f32 %v737, %v792
        %v797 = vsel %vm627, %v736, %v795
        %v798 = vsel %vm627, %v737, %v796
        %v799 = vsel %vm596, -inf, %v797
        %v800 = vsel %vm597, -inf, %v798
        %v801 = vsel %vm677, %v799, -inf
        %802 = vmax.xlane.f32.xlu0 %v801
        %v803 = vpop.xlane.xlu0 %802
        %v804 = vsel %vm677, %v800, -inf
        %805 = vmax.xlane.f32.xlu0 %v804
        %v806 = vpop.xlane.xlu0 %805
        %v807 = vsub.f32 %v799, %v803
        %v808 = vsub.f32 %v800, %v806
        %v809 = vmul.f32 %v807, 1.442695
        %v810 = vpow.pop %v809
        %v811 = vmul.f32 %v808, 1.442695
        %v812 = vpow.pop %v811
        %v813 = vsel %vm677, %v810, 0.0
        %814 = vadd.xlane.f32.xlu0 %v813
        %v815 = vpop.xlane.xlu0 %814
        %v816 = vsel %vm677, %v812, 0.0
        %817 = vadd.xlane.f32.xlu0 %v816
        %v818 = vpop.xlane.xlu0 %817
        %v819 = vrcp.pop %v815
        %v820 = vrcp.pop %v818
        %v821 = vmul.f32 %v810, %v819
        %v822 = vmul.f32 %v812, %v820
        %v823 = vpack.c.bf16 %v822, %v821
        %831 = vrot.lane.b32.xlu0 %v700, 96
        %v832 = vpop.permute.xlu0 %831
        %833 = vrot.lane.b32.xlu0 %v701, 96
        %v834 = vpop.permute.xlu0 %833
        %835 = vrot.lane.b32.xlu0 %v702, 96
        %v836 = vpop.permute.xlu0 %835
        %837 = vrot.lane.b32.xlu0 %v703, 96
        %v838 = vpop.permute.xlu0 %837
        %839 = vrot.lane.b32.xlu0 %v704, 96
        %v840 = vpop.permute.xlu0 %839
        %841 = vrot.lane.b32.xlu0 %v705, 96
        %v842 = vpop.permute.xlu0 %841
        %843 = vrot.lane.b32.xlu0 %v706, 96
        %v844 = vpop.permute.xlu0 %843
        %v852 = vsel %vm677, %v823, 0
        %v855 = vand.u32 %v844, %v713
        %857 = vmatpush.bf16.msra.mxu0 0
        %858 = vmatpush.bf16.msra.mxu0 %v855
        %859 = vmatpush.bf16.msra.mxu0 %v842
        %860 = vmatpush.bf16.msra.mxu0 %v840
        %861 = vmatpush.bf16.msra.mxu0 %v838
        %862 = vmatpush.bf16.msra.mxu0 %v836
        %863 = vmatpush.bf16.msra.mxu0 %v834
        %864 = vmatpush.bf16.msra.mxu0 %v832
        %865 = vmatmul.bf16.gmra.mxu0 %v852
        %v866 = vpop.f32.mrf.mxu0
        %v867 = vadd.f32 0.0, %v866
        %v868 = vpop.f32.mrf.mxu0
        %v869 = vadd.f32 0.0, %v868
        %870 = vdwg.mxu0
        %s871 = scalar_lea.vmem %s468, 32
        %v872 = vld [vmem:[%s871] sm:$0xff]
        %v873 = vld [vmem:[%s871 + $0x8] sm:$0xff]
        %v874 = vsub.f32 %v872, %v604
        %v875 = vsub.f32 %v873, %v604
        %v876 = vsel %vm596, 0.0, %v874
        %v877 = vsel %vm597, 0.0, %v875
        %s878 = scalar_lea.vmem %s478, 32
        %v879 = vld [vmem:[%s878] sm:$0xff]
        %v880 = vld [vmem:[%s878 + $0x8] sm:$0xff]
        %v881 = vsub.f32 %v879, %v614
        %v882 = vsub.f32 %v880, %v614
        %v883 = vsel %vm596, 0.0, %v881
        %v884 = vsel %vm597, 0.0, %v882
        %s885 = scalar_lea.vmem %s494, 112
        %v886 = vld [vmem:[%s885] sm:$0xff]
        %v887 = vld [vmem:[%s885 + $0x8] sm:$0xff]
        %v888 = vld [vmem:[%s885 + $0x10] sm:$0xff]
        %v889 = vld [vmem:[%s885 + $0x18] sm:$0xff]
        %v890 = vld [vmem:[%s885 + $0x20] sm:$0xff]
        %v891 = vld [vmem:[%s885 + $0x28] sm:$0xff]
        %v892 = vld [vmem:[%s885 + $0x30] sm:$0x3]
        %v894 = vsel %vm627, %v883, 0
        %v897 = vsel %vm627, %v884, 0
        %v900 = vsel %vm634, %v892, 0
        %902 = vmatpush.msra.mxu0 0.0
        %903 = vmatpush.msra.mxu0 0.0
        %904 = vmatpush.msra.mxu0 0.0
        %905 = vmatpush.msra.mxu0 0.0
        %906 = vmatpush.msra.mxu0 0.0
        %907 = vmatpush.msra.mxu0 0.0
        %908 = vmatpush.msra.mxu0 0.0
        %909 = vmatpush.msra.mxu0 0.0
        %910 = vmatpush.msra.mxu0 0.0
        %911 = vmatpush.msra.mxu0 %v900
        %912 = vmatpush.msra.mxu0 %v891
        %913 = vmatpush.msra.mxu0 %v890
        %914 = vmatpush.msra.mxu0 %v889
        %915 = vmatpush.msra.mxu0 %v888
        %916 = vmatpush.msra.mxu0 %v887
        %917 = vmatpush.msra.mxu0 %v886
        %918 = vmatmul.f32.gmra.mxu0 %v894
        %v919 = vpop.f32.mrf.mxu0
        %v920 = vadd.f32 0.0, %v919
        %921 = vmatmul.f32.gmra.mxu0 %v897
        %v922 = vpop.f32.mrf.mxu0
        %v923 = vadd.f32 0.0, %v922
        %924 = vdwg.mxu0
        %v925 = vmul.f32 %v920, 0.04
        %v926 = vmul.f32 %v923, 0.04
        %929 = vrot.lane.b32.xlu0 %v925, 50
        %v930 = vpop.permute.xlu0 %929
        %931 = vrot.lane.b32.xlu0 %v926, 50
        %v932 = vpop.permute.xlu0 %931
        %v935 = vadd.f32 %v876, %v930
        %v936 = vadd.f32 %v877, %v932
        %v937 = vsel %vm627, %v876, %v935
        %v938 = vsel %vm627, %v877, %v936
        %v939 = vsel %vm596, -inf, %v937
        %v940 = vsel %vm597, -inf, %v938
        %v941 = vsel %vm677, %v939, -inf
        %942 = vmax.xlane.f32.xlu0 %v941
        %v943 = vpop.xlane.xlu0 %942
        %v944 = vsel %vm677, %v940, -inf
        %945 = vmax.xlane.f32.xlu0 %v944
        %v946 = vpop.xlane.xlu0 %945
        %v947 = vsub.f32 %v939, %v943
        %v948 = vsub.f32 %v940, %v946
        %v949 = vmul.f32 %v947, 1.442695
        %v950 = vpow.pop %v949
        %v951 = vmul.f32 %v948, 1.442695
        %v952 = vpow.pop %v951
        %v953 = vsel %vm677, %v950, 0.0
        %954 = vadd.xlane.f32.xlu0 %v953
        %v955 = vpop.xlane.xlu0 %954
        %v956 = vsel %vm677, %v952, 0.0
        %957 = vadd.xlane.f32.xlu0 %v956
        %v958 = vpop.xlane.xlu0 %957
        %v959 = vrcp.pop %v955
        %v960 = vrcp.pop %v958
        %v961 = vmul.f32 %v950, %v959
        %v962 = vmul.f32 %v952, %v960
        %v963 = vpack.c.bf16 %v962, %v961
        %964 = vrot.lane.b32.xlu0 %v700, 64
        %v965 = vpop.permute.xlu0 %964
        %966 = vrot.lane.b32.xlu0 %v701, 64
        %v967 = vpop.permute.xlu0 %966
        %968 = vrot.lane.b32.xlu0 %v702, 64
        %v969 = vpop.permute.xlu0 %968
        %970 = vrot.lane.b32.xlu0 %v703, 64
        %v971 = vpop.permute.xlu0 %970
        %972 = vrot.lane.b32.xlu0 %v704, 64
        %v973 = vpop.permute.xlu0 %972
        %974 = vrot.lane.b32.xlu0 %v705, 64
        %v975 = vpop.permute.xlu0 %974
        %976 = vrot.lane.b32.xlu0 %v706, 64
        %v977 = vpop.permute.xlu0 %976
        %v985 = vsel %vm677, %v963, 0
        %v988 = vand.u32 %v977, %v713
        %990 = vmatpush.bf16.msra.mxu0 0
        %991 = vmatpush.bf16.msra.mxu0 %v988
        %992 = vmatpush.bf16.msra.mxu0 %v975
        %993 = vmatpush.bf16.msra.mxu0 %v973
        %994 = vmatpush.bf16.msra.mxu0 %v971
        %995 = vmatpush.bf16.msra.mxu0 %v969
        %996 = vmatpush.bf16.msra.mxu0 %v967
        %997 = vmatpush.bf16.msra.mxu0 %v965
        %998 = vmatmul.bf16.gmra.mxu0 %v985
        %v999 = vpop.f32.mrf.mxu0
        %v1000 = vadd.f32 0.0, %v999
        %v1001 = vpop.f32.mrf.mxu0
        %v1002 = vadd.f32 0.0, %v1001
        %1003 = vdwg.mxu0
        %s1004 = scalar_lea.vmem %s468, 48
        %v1005 = vld [vmem:[%s1004] sm:$0xff]
        %v1006 = vld [vmem:[%s1004 + $0x8] sm:$0xff]
        %v1007 = vsub.f32 %v1005, %v604
        %v1008 = vsub.f32 %v1006, %v604
        %v1009 = vsel %vm596, 0.0, %v1007
        %v1010 = vsel %vm597, 0.0, %v1008
        %s1011 = scalar_lea.vmem %s478, 48
        %v1012 = vld [vmem:[%s1011] sm:$0xff]
        %v1013 = vld [vmem:[%s1011 + $0x8] sm:$0xff]
        %v1014 = vsub.f32 %v1012, %v614
        %v1015 = vsub.f32 %v1013, %v614
        %v1016 = vsel %vm596, 0.0, %v1014
        %v1017 = vsel %vm597, 0.0, %v1015
        %s1018 = scalar_lea.vmem %s494, 168
        %v1019 = vld [vmem:[%s1018] sm:$0xff]
        %v1020 = vld [vmem:[%s1018 + $0x8] sm:$0xff]
        %v1021 = vld [vmem:[%s1018 + $0x10] sm:$0xff]
        %v1022 = vld [vmem:[%s1018 + $0x18] sm:$0xff]
        %v1023 = vld [vmem:[%s1018 + $0x20] sm:$0xff]
        %v1024 = vld [vmem:[%s1018 + $0x28] sm:$0xff]
        %v1025 = vld [vmem:[%s1018 + $0x30] sm:$0x3]
        %v1027 = vsel %vm627, %v1016, 0
        %v1030 = vsel %vm627, %v1017, 0
        %v1033 = vsel %vm634, %v1025, 0
        %1035 = vmatpush.msra.mxu0 0.0
        %1036 = vmatpush.msra.mxu0 0.0
        %1037 = vmatpush.msra.mxu0 0.0
        %1038 = vmatpush.msra.mxu0 0.0
        %1039 = vmatpush.msra.mxu0 0.0
        %1040 = vmatpush.msra.mxu0 0.0
        %1041 = vmatpush.msra.mxu0 0.0
        %1042 = vmatpush.msra.mxu0 0.0
        %1043 = vmatpush.msra.mxu0 0.0
        %1044 = vmatpush.msra.mxu0 %v1033
        %1045 = vmatpush.msra.mxu0 %v1024
        %1046 = vmatpush.msra.mxu0 %v1023
        %1047 = vmatpush.msra.mxu0 %v1022
        %1048 = vmatpush.msra.mxu0 %v1021
        %1049 = vmatpush.msra.mxu0 %v1020
        %1050 = vmatpush.msra.mxu0 %v1019
        %1051 = vmatmul.f32.gmra.mxu0 %v1027
        %v1052 = vpop.f32.mrf.mxu0
        %v1053 = vadd.f32 0.0, %v1052
        %1054 = vmatmul.f32.gmra.mxu0 %v1030
        %v1055 = vpop.f32.mrf.mxu0
        %v1056 = vadd.f32 0.0, %v1055
        %1057 = vdwg.mxu0
        %v1058 = vmul.f32 %v1053, 0.04
        %v1059 = vmul.f32 %v1056, 0.04
        %1062 = vrot.lane.b32.xlu0 %v1058, 50
        %v1063 = vpop.permute.xlu0 %1062
        %1064 = vrot.lane.b32.xlu0 %v1059, 50
        %v1065 = vpop.permute.xlu0 %1064
        %v1068 = vadd.f32 %v1009, %v1063
        %v1069 = vadd.f32 %v1010, %v1065
        %v1070 = vsel %vm627, %v1009, %v1068
        %v1071 = vsel %vm627, %v1010, %v1069
        %v1072 = vsel %vm596, -inf, %v1070
        %v1073 = vsel %vm597, -inf, %v1071
        %v1074 = vsel %vm677, %v1072, -inf
        %1075 = vmax.xlane.f32.xlu0 %v1074
        %v1076 = vpop.xlane.xlu0 %1075
        %v1077 = vsel %vm677, %v1073, -inf
        %1078 = vmax.xlane.f32.xlu0 %v1077
        %v1079 = vpop.xlane.xlu0 %1078
        %v1080 = vsub.f32 %v1072, %v1076
        %v1081 = vsub.f32 %v1073, %v1079
        %v1082 = vmul.f32 %v1080, 1.442695
        %v1083 = vpow.pop %v1082
        %v1084 = vmul.f32 %v1081, 1.442695
        %v1085 = vpow.pop %v1084
        %v1086 = vsel %vm677, %v1083, 0.0
        %1087 = vadd.xlane.f32.xlu0 %v1086
        %v1088 = vpop.xlane.xlu0 %1087
        %v1089 = vsel %vm677, %v1085, 0.0
        %1090 = vadd.xlane.f32.xlu0 %v1089
        %v1091 = vpop.xlane.xlu0 %1090
        %v1092 = vrcp.pop %v1088
        %v1093 = vrcp.pop %v1091
        %v1094 = vmul.f32 %v1083, %v1092
        %v1095 = vmul.f32 %v1085, %v1093
        %v1096 = vpack.c.bf16 %v1095, %v1094
        %1097 = vrot.lane.b32.xlu0 %v700, 32
        %v1098 = vpop.permute.xlu0 %1097
        %1099 = vrot.lane.b32.xlu0 %v701, 32
        %v1100 = vpop.permute.xlu0 %1099
        %1101 = vrot.lane.b32.xlu0 %v702, 32
        %v1102 = vpop.permute.xlu0 %1101
        %1103 = vrot.lane.b32.xlu0 %v703, 32
        %v1104 = vpop.permute.xlu0 %1103
        %1105 = vrot.lane.b32.xlu0 %v704, 32
        %v1106 = vpop.permute.xlu0 %1105
        %1107 = vrot.lane.b32.xlu0 %v705, 32
        %v1108 = vpop.permute.xlu0 %1107
        %1109 = vrot.lane.b32.xlu0 %v706, 32
        %v1110 = vpop.permute.xlu0 %1109
        %v1118 = vsel %vm677, %v1096, 0
        %v1121 = vand.u32 %v1110, %v713
        %1123 = vmatpush.bf16.msra.mxu0 0
        %1124 = vmatpush.bf16.msra.mxu0 %v1121
        %1125 = vmatpush.bf16.msra.mxu0 %v1108
        %1126 = vmatpush.bf16.msra.mxu0 %v1106
        %1127 = vmatpush.bf16.msra.mxu0 %v1104
        %1128 = vmatpush.bf16.msra.mxu0 %v1102
        %1129 = vmatpush.bf16.msra.mxu0 %v1100
        %1130 = vmatpush.bf16.msra.mxu0 %v1098
        %1131 = vmatmul.bf16.gmra.mxu0 %v1118
        %v1132 = vpop.f32.mrf.mxu0
        %v1133 = vadd.f32 0.0, %v1132
        %v1134 = vpop.f32.mrf.mxu0
        %v1135 = vadd.f32 0.0, %v1134
        %1136 = vdwg.mxu0
        %1139 = vrot.lane.b32.xlu0 %v867, 32
        %v1140 = vpop.permute.xlu0 %1139
        %1141 = vrot.lane.b32.xlu0 %v869, 32
        %v1142 = vpop.permute.xlu0 %1141
        %1147 = vrot.lane.b32.xlu0 %v1000, 64
        %v1148 = vpop.permute.xlu0 %1147
        %1149 = vrot.lane.b32.xlu0 %v1002, 64
        %v1150 = vpop.permute.xlu0 %1149
        %1155 = vrot.lane.b32.xlu0 %v1133, 96
        %v1156 = vpop.permute.xlu0 %1155
        %1157 = vrot.lane.b32.xlu0 %v1135, 96
        %v1158 = vpop.permute.xlu0 %1157
        %vm1161 = vcmask 261120
        %v1162 = vsel %vm1161, %v727, %v1140
        %v1163 = vsel %vm1161, %v729, %v1142
        %vm1164 = vcmask 523264
        %v1165 = vsel %vm1164, %v1162, %v1148
        %v1166 = vsel %vm1164, %v1163, %v1150
        %vm1167 = vcmask 785408
        %v1168 = vsel %vm1167, %v1165, %v1156
        %v1169 = vsel %vm1167, %v1166, %v1158
        %v1170 = vpack.c.bf16 %v1169, %v1168
        %v1171 = vld [vmem:[%s8] sm:$0xff]
        %v1172 = vld [vmem:[%s8 + $0x8] sm:$0xff]
        %v1173 = vld [vmem:[%s8 + $0x10] sm:$0xff]
        %v1174 = vld [vmem:[%s8 + $0x18] sm:$0xff]
        %v1175 = vld [vmem:[%s8 + $0x20] sm:$0xff]
        %v1176 = vld [vmem:[%s8 + $0x28] sm:$0xff]
        %v1177 = vld [vmem:[%s8 + $0x30] sm:$0xff]
        %v1178 = vld [vmem:[%s8 + $0x38] sm:$0xff]
        %v1179 = vld [vmem:[%s8 + $0x40] sm:$0xff]
        %v1180 = vld [vmem:[%s8 + $0x48] sm:$0xff]
        %v1181 = vld [vmem:[%s8 + $0x50] sm:$0xff]
        %v1182 = vld [vmem:[%s8 + $0x58] sm:$0xff]
        %v1183 = vld [vmem:[%s8 + $0x60] sm:$0xff]
        %v1184 = vld [vmem:[%s8 + $0x68] sm:$0xff]
        %v1185 = vld [vmem:[%s8 + $0x70] sm:$0xff]
        %v1186 = vld [vmem:[%s8 + $0x78] sm:$0xff]
        %v1187 = vpack.c.bf16 %v1172, %v1171
        %v1188 = vpack.c.bf16 %v1174, %v1173
        %v1189 = vpack.c.bf16 %v1176, %v1175
        %v1190 = vpack.c.bf16 %v1178, %v1177
        %v1191 = vpack.c.bf16 %v1180, %v1179
        %v1192 = vpack.c.bf16 %v1182, %v1181
        %v1193 = vpack.c.bf16 %v1184, %v1183
        %v1194 = vpack.c.bf16 %v1186, %v1185
        %v1195 = vld [vmem:[%s9] sm:$0x1]
        %v1197 = vperm.slane %v1195, 0
        %1199 = vmatpush.bf16.msra.mxu0 %v1194
        %1200 = vmatpush.bf16.msra.mxu0 %v1193
        %1201 = vmatpush.bf16.msra.mxu0 %v1192
        %1202 = vmatpush.bf16.msra.mxu0 %v1191
        %1203 = vmatpush.bf16.msra.mxu0 %v1190
        %1204 = vmatpush.bf16.msra.mxu0 %v1189
        %1205 = vmatpush.bf16.msra.mxu0 %v1188
        %1206 = vmatpush.bf16.msra.mxu0 %v1187
        %1207 = vmatmul.bf16.gmra.mxu0 %v1170
        %v1208 = vpop.f32.mrf.mxu0
        %v1209 = vadd.f32 %v1197, %v1208
        %v1210 = vpop.f32.mrf.mxu0
        %v1211 = vadd.f32 %v1197, %v1210
        %1212 = vdwg.mxu0
        %1213 = vst [vmem:[%s459] sm:$0xff] %v1209
        %1214 = vst [vmem:[%s459 + $0x8] sm:$0xff] %v1211
        %s1215 = sand.u32 %s287, 1
        %s1216 = scalar_lea.sflag [#allocation3], %s1215
        %s1217 = sand.u32 %s287, 1
        %s1218 = smul.addr %s1217, 16
        %s1219 = scalar_lea.vmem [#allocation2], %s1218
        // Predicated region
        $region61: #{sdpa_with_goc.3} parent=59 // pred_check
          %p1220 = pneg %p297
        $region62: #{sdpa_with_goc.3} parent=59 // pred_check_branch
          %1222 = sbr.rel (%p1220) target = $region64
        $region63: #{sdpa_with_goc.3} parent=59 // pred_region
          %s1223 = smul.u32 2, %s29
          %1225 = vsyncadd %s1216, 0
          %s1226 = smul.addr %s28, 2
          %s1227 = sadd.s32 %s1223, %s1226
          %s1228 = smul.addr %s1227, 8
          %s1229 = scalar_lea.hbm %s10, %s1228
          %s1230 = sshll.u32 %s1219, 4
          %s1231 = int_to_ptr.vmem [resolvable:$true] %s1230
          %s1232 = sshll.u32 %s1229, 4
          %s1233 = int_to_ptr.hbm [resolvable:$true] %s1232
          %1238 = dma.vmem_to_hbm [thread:$0]  %s1231, 256, %s1233, %s1216, 128, 128, 8
        $region64: #{sdpa_with_goc.3} parent=59 // pred_fallthru
          _
      $region60: #{sdpa_with_goc.3} parent=5 // pred_fallthru
        _
      %p1239 = scmp.le.s32.totalorder 2, %s19
      // Predicated region
      $region65: #{sdpa_with_goc.3} parent=5 // pred_check
        %p1240 = pneg %p1239
      $region66: #{sdpa_with_goc.3} parent=5 // pred_check_branch
        %1242 = sbr.rel (%p1240) target = $region68
      $region67: #{sdpa_with_goc.3} parent=5 // pred_region
        %s1243 = ssub.s32 %s19, 2
        // Predicated region
        $region69: #{sdpa_with_goc.3} parent=67 // pred_check
          %p1244 = pneg %p303
        $region70: #{sdpa_with_goc.3} parent=67 // pred_check_branch
          %1246 = sbr.rel (%p1244) target = $region72
        $region71: #{sdpa_with_goc.3} parent=67 // pred_region
          %s1247 = sand.u32 %s288, 1
          %s1248 = scalar_lea.sflag [#allocation3], %s1247
          %s1249 = sand.u32 %s288, 1
          %s1250 = smul.addr %s1249, 16
          %s1251 = scalar_lea.vmem [#allocation2], %s1250
          %1253 = dma.done %s1248, 256
        $region72: #{sdpa_with_goc.3} parent=67 // pred_fallthru
          _
      $region68: #{sdpa_with_goc.3} parent=5 // pred_fallthru
        _
    $region6: #{sdpa_with_goc.3} parent=1 // loop_footer
      %s23 = sadd.s32 1, %s19
    $region7: #{sdpa_with_goc.3} parent=1 // loop_footer_branch
      %18 = sbr.rel target = $region3
    $region8: #{sdpa_with_goc.3} parent=1 // loop_exit
      _
    %1254 = vsyncpa [#allocation3], 1
    %s1255 = scalar_lea.sflag [#allocation3], 1
    %1256 = vsyncpa %s1255, 1

// kernel: sdpa_with_goc.2
$region0: #{sdpa_with_goc.2}
  #allocation0 [shape = 'u32[]', space=smem, size = 0x4, offset = 0x4, fixed_abs, tag = 'smem constant byte address 0x4 - core index']
  #allocation1 [shape = 'u32[72,128]{1,0:T(1,128)}', space=vmem, size = 0x9000, scoped, tag = 'internal scratch']
  %s0 = inlined_call_operand.vmem [shape: f32[2,16,128], index: 0, kind: input, shape index: {}]
  %s1 = inlined_call_operand.vmem [shape: f32[2,99,128], index: 1, kind: input, shape index: {}]
  %s2 = inlined_call_operand.vmem [shape: f32[2,50,128], index: 2, kind: input, shape index: {}]
  %s3 = inlined_call_operand.vmem [shape: f32[2,1,16,99], index: 3, kind: input, shape index: {}]
  %s4 = inlined_call_operand.vmem [shape: f32[128,128], index: 4, kind: input, shape index: {}]
  %s5 = inlined_call_operand.vmem [shape: f32[1,128], index: 5, kind: input, shape index: {}]
  %s6 = inlined_call_operand.vmem [shape: f32[128,128], index: 6, kind: input, shape index: {}]
  %s7 = inlined_call_operand.vmem [shape: f32[1,128], index: 7, kind: input, shape index: {}]
  %s8 = inlined_call_operand.vmem [shape: f32[128,128], index: 8, kind: input, shape index: {}]
  %s9 = inlined_call_operand.vmem [shape: f32[1,128], index: 9, kind: input, shape index: {}]
  %s10 = inlined_call_operand.vmem [shape: f32[2,4,16,99], index: 10, kind: output, shape index: {0}]
  %s11 = inlined_call_operand.vmem [shape: f32[2,4,16,50], index: 11, kind: output, shape index: {1}]
  %12 = xla_tuple %s10, %s11
  %s13 = sld [smem:[#allocation0]]
  $region81: #{sdpa_with_goc.2} parent=0
    _
  %s15 = ssub.s32 1, %s13
  %s16 = scalar_select 0, %s15, %s13
  loop: start=0, step=1, limit=4
  $region2: #{sdpa_with_goc.2} parent=0 // loop_pre_header
    _
  $region3: #{sdpa_with_goc.2} parent=0 // loop_header
    %s18 = sphi 0, %s22
    %p19 = scmp.ge.s32.totalorder %s18, 4
    %s25 = sphi 0, %s37
    %s26 = sphi 0, %s33
    %s27 = sphi 0, %s25
    %s28 = sphi 0, %s26
    %s29 = sphi 0, %s27
    %s30 = sphi 0, %s28
    %s42 = sphi 0, %s44
    %s45 = sphi 0, %s42
    %s46 = sphi 0, %s45
    %s62 = sphi 0, %s46
    %s68 = sphi 0, %s70
    %s71 = sphi 0, %s68
    %s72 = sphi 0, %s71
    %s88 = sphi 0, %s72
    %s94 = sphi 0, %s96
    %s97 = sphi 0, %s94
    %s98 = sphi 0, %s97
    %s114 = sphi 0, %s98
    %s122 = sphi 0, %s124
    %s125 = sphi 0, %s122
    %s126 = sphi 0, %s125
    %s142 = sphi 0, %s126
    %s146 = sphi 0, %s146
    %s148 = sphi 0, %s146
    %s149 = sphi 0, %s148
    %s163 = sphi 0, %s149
    %s167 = sphi 0, %s167
    %s169 = sphi 0, %s167
    %s170 = sphi 0, %s169
    %s184 = sphi 0, %s170
    %s188 = sphi 0, %s188
    %s190 = sphi 0, %s188
    %s191 = sphi 0, %s190
    %s205 = sphi 0, %s191
    %s209 = sphi 0, %s209
    %s211 = sphi 0, %s209
    %s212 = sphi 0, %s211
    %s226 = sphi 0, %s212
    %s230 = sphi 0, %s230
    %s232 = sphi 0, %s230
    %s233 = sphi 0, %s232
    %s247 = sphi 0, %s233
    %s251 = sphi 0, %s251
    %s253 = sphi 0, %s251
    %s254 = sphi 0, %s253
    %s268 = sphi 0, %s254
    %s276 = sphi 0, %s278
    %s279 = sphi 0, %s276
    %s280 = sphi 0, %s279
    %s296 = sphi 0, %s280
    %s304 = sphi 0, %s306
    %s307 = sphi 0, %s304
    %s308 = sphi 0, %s307
    %s324 = sphi 0, %s308
  $region4: #{sdpa_with_goc.2} parent=0 // loop_header_branch
    %21 = sbr.rel (%p19) target = $region8
  $region5: #{sdpa_with_goc.2} parent=0 // loop_body
    %s23 = ssub.s32 %s18, 1
    %s24 = ssub.s32 %s18, 2
    %s31 = sadd.s32 1, %s26
    %p32 = scmp.ge.s32.totalorder %s31, 1
    %s33 = scalar_select %p32, 0, %s31
    %s34 = sadd.s32 1, %s25
    %s35 = scalar_select %p32, %s34, %s25
    %p36 = scmp.ge.s32.totalorder %s35, 2
    %s37 = scalar_select %p36, 0, %s35
    %s38 = ssub.s32 %s25, %s37
    %s39 = ssub.s32 %s26, %s33
    %s40 = sor.u32 %s38, %s39
    %p41 = scmp.eq.s32.totalorder %s40, 0
    %s43 = sadd.s32 %s42, 1
    %s44 = scalar_select %p41, %s42, %s43
    %p47 = pneg %p41
    %p48 = scmp.eq.s32.totalorder %s18, 1
    %p49 = por %p47, %p48
    %p50 = scmp.ne.s32.totalorder %s42, %s45
    %p51 = scmp.eq.s32.totalorder %s18, 0
    %p52 = por %p50, %p51
    %p53 = scmp.ne.s32.totalorder %s42, %s45
    %p54 = scmp.eq.s32.totalorder %s23, 1
    %p55 = por %p53, %p54
    %p56 = scmp.ne.s32.totalorder %s45, %s46
    %p57 = scmp.eq.s32.totalorder %s23, 0
    %p58 = por %p56, %p57
    %p59 = scmp.ne.s32.totalorder %s45, %s46
    %p60 = scmp.eq.s32.totalorder %s24, 1
    %p61 = por %p59, %p60
    %p63 = scmp.ne.s32.totalorder %s46, %s62
    %p64 = scmp.eq.s32.totalorder %s24, 0
    %p65 = por %p63, %p64
    %s66 = ssub.s32 %s25, %s37
    %p67 = scmp.eq.s32.totalorder %s66, 0
    %s69 = sadd.s32 %s68, 1
    %s70 = scalar_select %p67, %s68, %s69
    %p73 = pneg %p67
    %p74 = scmp.eq.s32.totalorder %s18, 1
    %p75 = por %p73, %p74
    %p76 = scmp.ne.s32.totalorder %s68, %s71
    %p77 = scmp.eq.s32.totalorder %s18, 0
    %p78 = por %p76, %p77
    %p79 = scmp.ne.s32.totalorder %s68, %s71
    %p80 = scmp.eq.s32.totalorder %s23, 1
    %p81 = por %p79, %p80
    %p82 = scmp.ne.s32.totalorder %s71, %s72
    %p83 = scmp.eq.s32.totalorder %s23, 0
    %p84 = por %p82, %p83
    %p85 = scmp.ne.s32.totalorder %s71, %s72
    %p86 = scmp.eq.s32.totalorder %s24, 1
    %p87 = por %p85, %p86
    %p89 = scmp.ne.s32.totalorder %s72, %s88
    %p90 = scmp.eq.s32.totalorder %s24, 0
    %p91 = por %p89, %p90
    %s92 = ssub.s32 %s25, %s37
    %p93 = scmp.eq.s32.totalorder %s92, 0
    %s95 = sadd.s32 %s94, 1
    %s96 = scalar_select %p93, %s94, %s95
    %p99 = pneg %p93
    %p100 = scmp.eq.s32.totalorder %s18, 1
    %p101 = por %p99, %p100
    %p102 = scmp.ne.s32.totalorder %s94, %s97
    %p103 = scmp.eq.s32.totalorder %s18, 0
    %p104 = por %p102, %p103
    %p105 = scmp.ne.s32.totalorder %s94, %s97
    %p106 = scmp.eq.s32.totalorder %s23, 1
    %p107 = por %p105, %p106
    %p108 = scmp.ne.s32.totalorder %s97, %s98
    %p109 = scmp.eq.s32.totalorder %s23, 0
    %p110 = por %p108, %p109
    %p111 = scmp.ne.s32.totalorder %s97, %s98
    %p112 = scmp.eq.s32.totalorder %s24, 1
    %p113 = por %p111, %p112
    %p115 = scmp.ne.s32.totalorder %s98, %s114
    %p116 = scmp.eq.s32.totalorder %s24, 0
    %p117 = por %p115, %p116
    %s118 = ssub.s32 %s25, %s37
    %s119 = ssub.s32 %s26, %s33
    %s120 = sor.u32 %s118, %s119
    %p121 = scmp.eq.s32.totalorder %s120, 0
    %s123 = sadd.s32 %s122, 1
    %s124 = scalar_select %p121, %s122, %s123
    %p127 = pneg %p121
    %p128 = scmp.eq.s32.totalorder %s18, 1
    %p129 = por %p127, %p128
    %p130 = scmp.ne.s32.totalorder %s122, %s125
    %p131 = scmp.eq.s32.totalorder %s18, 0
    %p132 = por %p130, %p131
    %p133 = scmp.ne.s32.totalorder %s122, %s125
    %p134 = scmp.eq.s32.totalorder %s23, 1
    %p135 = por %p133, %p134
    %p136 = scmp.ne.s32.totalorder %s125, %s126
    %p137 = scmp.eq.s32.totalorder %s23, 0
    %p138 = por %p136, %p137
    %p139 = scmp.ne.s32.totalorder %s125, %s126
    %p140 = scmp.eq.s32.totalorder %s24, 1
    %p141 = por %p139, %p140
    %p143 = scmp.ne.s32.totalorder %s126, %s142
    %p144 = scmp.eq.s32.totalorder %s24, 0
    %p145 = por %p143, %p144
    %s147 = sadd.s32 %s146, 1
    %p150 = scmp.eq.s32.totalorder %s18, 1
    %p151 = scmp.ne.s32.totalorder %s146, %s148
    %p152 = scmp.eq.s32.totalorder %s18, 0
    %p153 = por %p151, %p152
    %p154 = scmp.ne.s32.totalorder %s146, %s148
    %p155 = scmp.eq.s32.totalorder %s23, 1
    %p156 = por %p154, %p155
    %p157 = scmp.ne.s32.totalorder %s148, %s149
    %p158 = scmp.eq.s32.totalorder %s23, 0
    %p159 = por %p157, %p158
    %p160 = scmp.ne.s32.totalorder %s148, %s149
    %p161 = scmp.eq.s32.totalorder %s24, 1
    %p162 = por %p160, %p161
    %p164 = scmp.ne.s32.totalorder %s149, %s163
    %p165 = scmp.eq.s32.totalorder %s24, 0
    %p166 = por %p164, %p165
    %s168 = sadd.s32 %s167, 1
    %p171 = scmp.eq.s32.totalorder %s18, 1
    %p172 = scmp.ne.s32.totalorder %s167, %s169
    %p173 = scmp.eq.s32.totalorder %s18, 0
    %p174 = por %p172, %p173
    %p175 = scmp.ne.s32.totalorder %s167, %s169
    %p176 = scmp.eq.s32.totalorder %s23, 1
    %p177 = por %p175, %p176
    %p178 = scmp.ne.s32.totalorder %s169, %s170
    %p179 = scmp.eq.s32.totalorder %s23, 0
    %p180 = por %p178, %p179
    %p181 = scmp.ne.s32.totalorder %s169, %s170
    %p182 = scmp.eq.s32.totalorder %s24, 1
    %p183 = por %p181, %p182
    %p185 = scmp.ne.s32.totalorder %s170, %s184
    %p186 = scmp.eq.s32.totalorder %s24, 0
    %p187 = por %p185, %p186
    %s189 = sadd.s32 %s188, 1
    %p192 = scmp.eq.s32.totalorder %s18, 1
    %p193 = scmp.ne.s32.totalorder %s188, %s190
    %p194 = scmp.eq.s32.totalorder %s18, 0
    %p195 = por %p193, %p194
    %p196 = scmp.ne.s32.totalorder %s188, %s190
    %p197 = scmp.eq.s32.totalorder %s23, 1
    %p198 = por %p196, %p197
    %p199 = scmp.ne.s32.totalorder %s190, %s191
    %p200 = scmp.eq.s32.totalorder %s23, 0
    %p201 = por %p199, %p200
    %p202 = scmp.ne.s32.totalorder %s190, %s191
    %p203 = scmp.eq.s32.totalorder %s24, 1
    %p204 = por %p202, %p203
    %p206 = scmp.ne.s32.totalorder %s191, %s205
    %p207 = scmp.eq.s32.totalorder %s24, 0
    %p208 = por %p206, %p207
    %s210 = sadd.s32 %s209, 1
    %p213 = scmp.eq.s32.totalorder %s18, 1
    %p214 = scmp.ne.s32.totalorder %s209, %s211
    %p215 = scmp.eq.s32.totalorder %s18, 0
    %p216 = por %p214, %p215
    %p217 = scmp.ne.s32.totalorder %s209, %s211
    %p218 = scmp.eq.s32.totalorder %s23, 1
    %p219 = por %p217, %p218
    %p220 = scmp.ne.s32.totalorder %s211, %s212
    %p221 = scmp.eq.s32.totalorder %s23, 0
    %p222 = por %p220, %p221
    %p223 = scmp.ne.s32.totalorder %s211, %s212
    %p224 = scmp.eq.s32.totalorder %s24, 1
    %p225 = por %p223, %p224
    %p227 = scmp.ne.s32.totalorder %s212, %s226
    %p228 = scmp.eq.s32.totalorder %s24, 0
    %p229 = por %p227, %p228
    %s231 = sadd.s32 %s230, 1
    %p234 = scmp.eq.s32.totalorder %s18, 1
    %p235 = scmp.ne.s32.totalorder %s230, %s232
    %p236 = scmp.eq.s32.totalorder %s18, 0
    %p237 = por %p235, %p236
    %p238 = scmp.ne.s32.totalorder %s230, %s232
    %p239 = scmp.eq.s32.totalorder %s23, 1
    %p240 = por %p238, %p239
    %p241 = scmp.ne.s32.totalorder %s232, %s233
    %p242 = scmp.eq.s32.totalorder %s23, 0
    %p243 = por %p241, %p242
    %p244 = scmp.ne.s32.totalorder %s232, %s233
    %p245 = scmp.eq.s32.totalorder %s24, 1
    %p246 = por %p244, %p245
    %p248 = scmp.ne.s32.totalorder %s233, %s247
    %p249 = scmp.eq.s32.totalorder %s24, 0
    %p250 = por %p248, %p249
    %s252 = sadd.s32 %s251, 1
    %p255 = scmp.eq.s32.totalorder %s18, 1
    %p256 = scmp.ne.s32.totalorder %s251, %s253
    %p257 = scmp.eq.s32.totalorder %s18, 0
    %p258 = por %p256, %p257
    %p259 = scmp.ne.s32.totalorder %s251, %s253
    %p260 = scmp.eq.s32.totalorder %s23, 1
    %p261 = por %p259, %p260
    %p262 = scmp.ne.s32.totalorder %s253, %s254
    %p263 = scmp.eq.s32.totalorder %s23, 0
    %p264 = por %p262, %p263
    %p265 = scmp.ne.s32.totalorder %s253, %s254
    %p266 = scmp.eq.s32.totalorder %s24, 1
    %p267 = por %p265, %p266
    %p269 = scmp.ne.s32.totalorder %s254, %s268
    %p270 = scmp.eq.s32.totalorder %s24, 0
    %p271 = por %p269, %p270
    %s272 = ssub.s32 %s25, %s37
    %s273 = ssub.s32 %s26, %s33
    %s274 = sor.u32 %s272, %s273
    %p275 = scmp.eq.s32.totalorder %s274, 0
    %s277 = sadd.s32 %s276, 1
    %s278 = scalar_select %p275, %s276, %s277
    %p281 = pneg %p275
    %p282 = scmp.eq.s32.totalorder %s18, 1
    %p283 = por %p281, %p282
    %p284 = scmp.ne.s32.totalorder %s276, %s279
    %p285 = scmp.eq.s32.totalorder %s18, 0
    %p286 = por %p284, %p285
    %p287 = scmp.ne.s32.totalorder %s276, %s279
    %p288 = scmp.eq.s32.totalorder %s23, 1
    %p289 = por %p287, %p288
    %p290 = scmp.ne.s32.totalorder %s279, %s280
    %p291 = scmp.eq.s32.totalorder %s23, 0
    %p292 = por %p290, %p291
    %p293 = scmp.ne.s32.totalorder %s279, %s280
    %p294 = scmp.eq.s32.totalorder %s24, 1
    %p295 = por %p293, %p294
    %p297 = scmp.ne.s32.totalorder %s280, %s296
    %p298 = scmp.eq.s32.totalorder %s24, 0
    %p299 = por %p297, %p298
    %s300 = ssub.s32 %s25, %s37
    %s301 = ssub.s32 %s26, %s33
    %s302 = sor.u32 %s300, %s301
    %p303 = scmp.eq.s32.totalorder %s302, 0
    %s305 = sadd.s32 %s304, 1
    %s306 = scalar_select %p303, %s304, %s305
    %p309 = pneg %p303
    %p310 = scmp.eq.s32.totalorder %s18, 1
    %p311 = por %p309, %p310
    %p312 = scmp.ne.s32.totalorder %s304, %s307
    %p313 = scmp.eq.s32.totalorder %s18, 0
    %p314 = por %p312, %p313
    %p315 = scmp.ne.s32.totalorder %s304, %s307
    %p316 = scmp.eq.s32.totalorder %s23, 1
    %p317 = por %p315, %p316
    %p318 = scmp.ne.s32.totalorder %s307, %s308
    %p319 = scmp.eq.s32.totalorder %s23, 0
    %p320 = por %p318, %p319
    %p321 = scmp.ne.s32.totalorder %s307, %s308
    %p322 = scmp.eq.s32.totalorder %s24, 1
    %p323 = por %p321, %p322
    %p325 = scmp.ne.s32.totalorder %s308, %s324
    %p326 = scmp.eq.s32.totalorder %s24, 0
    %p327 = por %p325, %p326
    %p328 = scmp.le.s32.totalorder 1, %s18
    %p329 = scmp.lt.s32.totalorder %s18, 3
    %p330 = pnand %p328, %p329
    %p331 = pneg %p330
    // Predicated region
    $region9: #{sdpa_with_goc.2} parent=5 // pred_check
      _
    $region10: #{sdpa_with_goc.2} parent=5 // pred_check_branch
      %333 = sbr.rel (%p330) target = $region12
    $region11: #{sdpa_with_goc.2} parent=5 // pred_region
      %s334 = ssub.s32 %s18, 1
      // Predicated region
      $region13: #{sdpa_with_goc.2} parent=11 // pred_check
        %p335 = pneg %p159
      $region14: #{sdpa_with_goc.2} parent=11 // pred_check_branch
        %337 = sbr.rel (%p335) target = $region16
      $region15: #{sdpa_with_goc.2} parent=11 // pred_region
        _
      $region16: #{sdpa_with_goc.2} parent=11 // pred_fallthru
        _
      // Predicated region
      $region17: #{sdpa_with_goc.2} parent=11 // pred_check
        %p338 = pneg %p180
      $region18: #{sdpa_with_goc.2} parent=11 // pred_check_branch
        %340 = sbr.rel (%p338) target = $region20
      $region19: #{sdpa_with_goc.2} parent=11 // pred_region
        _
      $region20: #{sdpa_with_goc.2} parent=11 // pred_fallthru
        _
      // Predicated region
      $region21: #{sdpa_with_goc.2} parent=11 // pred_check
        %p341 = pneg %p201
      $region22: #{sdpa_with_goc.2} parent=11 // pred_check_branch
        %343 = sbr.rel (%p341) target = $region24
      $region23: #{sdpa_with_goc.2} parent=11 // pred_region
        _
      $region24: #{sdpa_with_goc.2} parent=11 // pred_fallthru
        _
      // Predicated region
      $region25: #{sdpa_with_goc.2} parent=11 // pred_check
        %p344 = pneg %p222
      $region26: #{sdpa_with_goc.2} parent=11 // pred_check_branch
        %346 = sbr.rel (%p344) target = $region28
      $region27: #{sdpa_with_goc.2} parent=11 // pred_region
        _
      $region28: #{sdpa_with_goc.2} parent=11 // pred_fallthru
        _
      // Predicated region
      $region29: #{sdpa_with_goc.2} parent=11 // pred_check
        %p347 = pneg %p243
      $region30: #{sdpa_with_goc.2} parent=11 // pred_check_branch
        %349 = sbr.rel (%p347) target = $region32
      $region31: #{sdpa_with_goc.2} parent=11 // pred_region
        _
      $region32: #{sdpa_with_goc.2} parent=11 // pred_fallthru
        _
      // Predicated region
      $region33: #{sdpa_with_goc.2} parent=11 // pred_check
        %p350 = pneg %p264
      $region34: #{sdpa_with_goc.2} parent=11 // pred_check_branch
        %352 = sbr.rel (%p350) target = $region36
      $region35: #{sdpa_with_goc.2} parent=11 // pred_region
        _
      $region36: #{sdpa_with_goc.2} parent=11 // pred_fallthru
        _
    $region12: #{sdpa_with_goc.2} parent=5 // pred_fallthru
      _
    %p353 = scmp.lt.s32.totalorder %s18, 2
    // Predicated region
    $region37: #{sdpa_with_goc.2} parent=5 // pred_check
      %p354 = pneg %p353
    $region38: #{sdpa_with_goc.2} parent=5 // pred_check_branch
      %356 = sbr.rel (%p354) target = $region40
    $region39: #{sdpa_with_goc.2} parent=5 // pred_region
      // Predicated region
      $region41: #{sdpa_with_goc.2} parent=39 // pred_check
        %p357 = pneg %p52
      $region42: #{sdpa_with_goc.2} parent=39 // pred_check_branch
        %359 = sbr.rel (%p357) target = $region44
      $region43: #{sdpa_with_goc.2} parent=39 // pred_region
        %s360 = smul.u32 2, %s26
        %p361 = scmp.lt.s32.totalorder %s25, 1
        %s362 = scalar_select %p361, %s25, 1
        %p363 = scmp.lt.s32.totalorder %s360, 1
        %s364 = scalar_select %p363, %s360, 1
        %s365 = smul.addr %s362, 2
        %s366 = sadd.s32 %s364, %s365
        %s367 = smul.addr %s366, 8
        %s368 = scalar_lea.vmem %s0, %s367
        %s369 = smul.u32 2, %s26
      $region44: #{sdpa_with_goc.2} parent=39 // pred_fallthru
        _
      // Predicated region
      $region45: #{sdpa_with_goc.2} parent=39 // pred_check
        %p370 = pneg %p78
      $region46: #{sdpa_with_goc.2} parent=39 // pred_check_branch
        %372 = sbr.rel (%p370) target = $region48
      $region47: #{sdpa_with_goc.2} parent=39 // pred_region
        %p373 = scmp.lt.s32.totalorder %s25, 1
        %s374 = scalar_select %p373, %s25, 1
        %s375 = smul.addr %s374, 13
        %s376 = smul.addr %s375, 8
        %s377 = scalar_lea.vmem %s1, %s376
      $region48: #{sdpa_with_goc.2} parent=39 // pred_fallthru
        _
      // Predicated region
      $region49: #{sdpa_with_goc.2} parent=39 // pred_check
        %p378 = pneg %p104
      $region50: #{sdpa_with_goc.2} parent=39 // pred_check_branch
        %380 = sbr.rel (%p378) target = $region52
      $region51: #{sdpa_with_goc.2} parent=39 // pred_region
        %p381 = scmp.lt.s32.totalorder %s25, 1
        %s382 = scalar_select %p381, %s25, 1
        %s383 = smul.addr %s382, 7
        %s384 = smul.addr %s383, 8
        %s385 = scalar_lea.vmem %s2, %s384
      $region52: #{sdpa_with_goc.2} parent=39 // pred_fallthru
        _
      // Predicated region
      $region53: #{sdpa_with_goc.2} parent=39 // pred_check
        %p386 = pneg %p132
      $region54: #{sdpa_with_goc.2} parent=39 // pred_check_branch
        %388 = sbr.rel (%p386) target = $region56
      $region55: #{sdpa_with_goc.2} parent=39 // pred_region
        %s389 = smul.u32 2, %s26
        %p390 = scmp.lt.s32.totalorder %s25, 1
        %s391 = scalar_select %p390, %s25, 1
        %p392 = scmp.lt.s32.totalorder %s389, 1
        %s393 = scalar_select %p392, %s389, 1
        %s394 = smul.addr %s391, 2
        %s395 = sadd.s32 %s393, %s394
        %s396 = smul.addr %s395, 8
        %s397 = scalar_lea.vmem %s3, %s396
        %s398 = smul.u32 2, %s26
      $region56: #{sdpa_with_goc.2} parent=39 // pred_fallthru
        _
    $region40: #{sdpa_with_goc.2} parent=5 // pred_fallthru
      _
    %p399 = scmp.le.s32.totalorder 1, %s18
    %p400 = scmp.lt.s32.totalorder %s18, 3
    %p401 = pnand %p399, %p400
    %p402 = pneg %p401
    // Predicated region
    $region57: #{sdpa_with_goc.2} parent=5 // pred_check
      _
    $region58: #{sdpa_with_goc.2} parent=5 // pred_check_branch
      %404 = sbr.rel (%p401) target = $region60
    $region59: #{sdpa_with_goc.2} parent=5 // pred_region
      %s405 = ssub.s32 %s18, 1
      %s406 = smul.u32 2, %s28
      %p407 = scmp.lt.s32.totalorder %s27, 1
      %s408 = scalar_select %p407, %s27, 1
      %p409 = scmp.lt.s32.totalorder %s406, 1
      %s410 = scalar_select %p409, %s406, 1
      %s411 = smul.addr %s408, 2
      %s412 = sadd.s32 %s410, %s411
      %s413 = smul.addr %s412, 8
      %s414 = scalar_lea.vmem %s0, %s413
      %p415 = pneg %p58
      %p416 = pneg %p55
      %p417 = scmp.lt.s32.totalorder %s27, 1
      %s418 = scalar_select %p417, %s27, 1
      %s419 = smul.addr %s418, 13
      %s420 = smul.addr %s419, 8
      %s421 = scalar_lea.vmem %s1, %s420
      %p422 = pneg %p84
      %p423 = pneg %p81
      %p424 = scmp.lt.s32.totalorder %s27, 1
      %s425 = scalar_select %p424, %s27, 1
      %s426 = smul.addr %s425, 7
      %s427 = smul.addr %s426, 8
      %s428 = scalar_lea.vmem %s2, %s427
      %p429 = pneg %p110
      %p430 = pneg %p107
      %s431 = smul.u32 2, %s28
      %p432 = scmp.lt.s32.totalorder %s27, 1
      %s433 = scalar_select %p432, %s27, 1
      %p434 = scmp.lt.s32.totalorder %s431, 1
      %s435 = scalar_select %p434, %s431, 1
      %s436 = smul.addr %s433, 2
      %s437 = sadd.s32 %s435, %s436
      %s438 = smul.addr %s437, 8
      %s439 = scalar_lea.vmem %s3, %s438
      %p440 = pneg %p138
      %p441 = pneg %p135
      %p442 = pneg %p159
      %p443 = pneg %p156
      %p444 = pneg %p180
      %p445 = pneg %p177
      %p446 = pneg %p201
      %p447 = pneg %p198
      %p448 = pneg %p222
      %p449 = pneg %p219
      %p450 = pneg %p243
      %p451 = pneg %p240
      %p452 = pneg %p264
      %p453 = pneg %p261
      %p454 = pneg %p292
      %p455 = pneg %p289
      %s456 = smul.u32 2, %s28
      %p457 = scmp.lt.s32.totalorder %s27, 1
      %s458 = scalar_select %p457, %s27, 1
      %p459 = scmp.lt.s32.totalorder %s456, 1
      %s460 = scalar_select %p459, %s456, 1
      %s461 = smul.addr %s458, 8
      %s462 = sadd.s32 %s460, %s461
      %s463 = smul.addr %s462, 8
      %s464 = scalar_lea.vmem %s10, %s463
      %p465 = pneg %p320
      %p466 = pneg %p317
      %s467 = smul.u32 2, %s28
      %p468 = scmp.lt.s32.totalorder %s27, 1
      %s469 = scalar_select %p468, %s27, 1
      %p470 = scmp.lt.s32.totalorder %s467, 1
      %s471 = scalar_select %p470, %s467, 1
      %s472 = smul.addr %s469, 8
      %s473 = sadd.s32 %s471, %s472
      %s474 = smul.addr %s473, 8
      %s475 = scalar_lea.vmem %s11, %s474
      %s476 = smul.u32 2, %s28
      %p477 = scmp.lt.s32.totalorder %s27, 1
      %s478 = scalar_select %p477, %s27, 1
      %p479 = scmp.lt.s32.totalorder %s476, 1
      %s480 = scalar_select %p479, %s476, 1
      %s481 = smul.addr %s478, 2
      %s482 = sadd.s32 %s480, %s481
      %s483 = smul.addr %s482, 8
      %s484 = scalar_lea.vmem %s0, %s483
      %s485 = smul.u32 2, %s28
      %p486 = scmp.lt.s32.totalorder %s27, 1
      %s487 = scalar_select %p486, %s27, 1
      %s488 = smul.addr %s487, 13
      %s489 = smul.addr %s488, 8
      %s490 = scalar_lea.vmem %s1, %s489
      %p491 = scmp.lt.s32.totalorder %s27, 1
      %s492 = scalar_select %p491, %s27, 1
      %s493 = smul.addr %s492, 7
      %s494 = smul.addr %s493, 8
      %s495 = scalar_lea.vmem %s2, %s494
      %s496 = smul.u32 2, %s28
      %p497 = scmp.lt.s32.totalorder %s27, 1
      %s498 = scalar_select %p497, %s27, 1
      %p499 = scmp.lt.s32.totalorder %s496, 1
      %s500 = scalar_select %p499, %s496, 1
      %s501 = smul.addr %s498, 2
      %s502 = sadd.s32 %s500, %s501
      %s503 = smul.addr %s502, 8
      %s504 = scalar_lea.vmem %s3, %s503
      %s505 = smul.u32 2, %s28
      %s506 = smul.u32 2, %s28
      %p507 = scmp.lt.s32.totalorder %s27, 1
      %s508 = scalar_select %p507, %s27, 1
      %p509 = scmp.lt.s32.totalorder %s506, 1
      %s510 = scalar_select %p509, %s506, 1
      %s511 = smul.addr %s508, 8
      %s512 = sadd.s32 %s510, %s511
      %s513 = smul.addr %s512, 8
      %s514 = scalar_lea.vmem %s10, %s513
      %s515 = smul.u32 2, %s28
      %s516 = smul.u32 2, %s28
      %p517 = scmp.lt.s32.totalorder %s27, 1
      %s518 = scalar_select %p517, %s27, 1
      %p519 = scmp.lt.s32.totalorder %s516, 1
      %s520 = scalar_select %p519, %s516, 1
      %s521 = smul.addr %s518, 8
      %s522 = sadd.s32 %s520, %s521
      %s523 = smul.addr %s522, 8
      %s524 = scalar_lea.vmem %s11, %s523
      %s525 = smul.u32 2, %s28
      %v527 = vld [vmem:[%s484] sm:$0xff]
      %v528 = vld [vmem:[%s484 + $0x8] sm:$0xff]
      %v529 = vpack.c.bf16 %v528, %v527
      %v530 = vld [vmem:[%s490] sm:$0xff]
      %v531 = vld [vmem:[%s490 + $0x8] sm:$0xff]
      %v532 = vld [vmem:[%s490 + $0x10] sm:$0xff]
      %v533 = vld [vmem:[%s490 + $0x18] sm:$0xff]
      %v534 = vld [vmem:[%s490 + $0x20] sm:$0xff]
      %v535 = vld [vmem:[%s490 + $0x28] sm:$0xff]
      %v536 = vld [vmem:[%s490 + $0x30] sm:$0xff]
      %v537 = vld [vmem:[%s490 + $0x38] sm:$0xff]
      %v538 = vld [vmem:[%s490 + $0x40] sm:$0xff]
      %v539 = vld [vmem:[%s490 + $0x48] sm:$0xff]
      %v540 = vld [vmem:[%s490 + $0x50] sm:$0xff]
      %v541 = vld [vmem:[%s490 + $0x58] sm:$0xff]
      %v542 = vld [vmem:[%s490 + $0x60] sm:$0x7]
      %v543 = vpack.c.bf16 %v531, %v530
      %v544 = vpack.c.bf16 %v533, %v532
      %v545 = vpack.c.bf16 %v535, %v534
      %v546 = vpack.c.bf16 %v537, %v536
      %v547 = vpack.c.bf16 %v539, %v538
      %v548 = vpack.c.bf16 %v541, %v540
      %v549 = vpack.c.bf16 %v542, %v542
      %v550 = vld [vmem:[%s495] sm:$0xff]
      %v551 = vld [vmem:[%s495 + $0x8] sm:$0xff]
      %v552 = vld [vmem:[%s495 + $0x10] sm:$0xff]
      %v553 = vld [vmem:[%s495 + $0x18] sm:$0xff]
      %v554 = vld [vmem:[%s495 + $0x20] sm:$0xff]
      %v555 = vld [vmem:[%s495 + $0x28] sm:$0xff]
      %v556 = vld [vmem:[%s495 + $0x30] sm:$0x3]
      %v557 = vpack.c.bf16 %v551, %v550
      %v558 = vpack.c.bf16 %v553, %v552
      %v559 = vpack.c.bf16 %v555, %v554
      %v560 = vpack.c.bf16 %v556, %v556
      %v561 = vld [vmem:[%s4] sm:$0xff]
      %v562 = vld [vmem:[%s4 + $0x8] sm:$0xff]
      %v563 = vld [vmem:[%s4 + $0x10] sm:$0xff]
      %v564 = vld [vmem:[%s4 + $0x18] sm:$0xff]
      %v565 = vld [vmem:[%s4 + $0x20] sm:$0xff]
      %v566 = vld [vmem:[%s4 + $0x28] sm:$0xff]
      %v567 = vld [vmem:[%s4 + $0x30] sm:$0xff]
      %v568 = vld [vmem:[%s4 + $0x38] sm:$0xff]
      %v569 = vld [vmem:[%s4 + $0x40] sm:$0xff]
      %v570 = vld [vmem:[%s4 + $0x48] sm:$0xff]
      %v571 = vld [vmem:[%s4 + $0x50] sm:$0xff]
      %v572 = vld [vmem:[%s4 + $0x58] sm:$0xff]
      %v573 = vld [vmem:[%s4 + $0x60] sm:$0xff]
      %v574 = vld [vmem:[%s4 + $0x68] sm:$0xff]
      %v575 = vld [vmem:[%s4 + $0x70] sm:$0xff]
      %v576 = vld [vmem:[%s4 + $0x78] sm:$0xff]
      %v577 = vpack.c.bf16 %v562, %v561
      %v578 = vpack.c.bf16 %v564, %v563
      %v579 = vpack.c.bf16 %v566, %v565
      %v580 = vpack.c.bf16 %v568, %v567
      %v581 = vpack.c.bf16 %v570, %v569
      %v582 = vpack.c.bf16 %v572, %v571
      %v583 = vpack.c.bf16 %v574, %v573
      %v584 = vpack.c.bf16 %v576, %v575
      %v585 = vld [vmem:[%s5] sm:$0x1]
      %v587 = vperm.slane %v585, 0
      %589 = vmatpush.bf16.msra.mxu0 %v584
      %590 = vmatpush.bf16.msra.mxu0 %v583
      %591 = vmatpush.bf16.msra.mxu0 %v582
      %592 = vmatpush.bf16.msra.mxu0 %v581
      %593 = vmatpush.bf16.msra.mxu0 %v580
      %594 = vmatpush.bf16.msra.mxu0 %v579
      %595 = vmatpush.bf16.msra.mxu0 %v578
      %596 = vmatpush.bf16.msra.mxu0 %v577
      %597 = vmatmul.bf16.gmra.mxu0 %v529
      %v598 = vpop.f32.mrf.mxu0
      %v599 = vadd.f32 %v587, %v598
      %v600 = vpop.f32.mrf.mxu0
      %v601 = vadd.f32 %v587, %v600
      %602 = vdwg.mxu0
      %v603 = vld [vmem:[%s6] sm:$0xff]
      %v604 = vld [vmem:[%s6 + $0x8] sm:$0xff]
      %v605 = vld [vmem:[%s6 + $0x10] sm:$0xff]
      %v606 = vld [vmem:[%s6 + $0x18] sm:$0xff]
      %v607 = vld [vmem:[%s6 + $0x20] sm:$0xff]
      %v608 = vld [vmem:[%s6 + $0x28] sm:$0xff]
      %v609 = vld [vmem:[%s6 + $0x30] sm:$0xff]
      %v610 = vld [vmem:[%s6 + $0x38] sm:$0xff]
      %v611 = vld [vmem:[%s6 + $0x40] sm:$0xff]
      %v612 = vld [vmem:[%s6 + $0x48] sm:$0xff]
      %v613 = vld [vmem:[%s6 + $0x50] sm:$0xff]
      %v614 = vld [vmem:[%s6 + $0x58] sm:$0xff]
      %v615 = vld [vmem:[%s6 + $0x60] sm:$0xff]
      %v616 = vld [vmem:[%s6 + $0x68] sm:$0xff]
      %v617 = vld [vmem:[%s6 + $0x70] sm:$0xff]
      %v618 = vld [vmem:[%s6 + $0x78] sm:$0xff]
      %v619 = vpack.c.bf16 %v604, %v603
      %v620 = vpack.c.bf16 %v606, %v605
      %v621 = vpack.c.bf16 %v608, %v607
      %v622 = vpack.c.bf16 %v610, %v609
      %v623 = vpack.c.bf16 %v612, %v611
      %v624 = vpack.c.bf16 %v614, %v613
      %v625 = vpack.c.bf16 %v616, %v615
      %v626 = vpack.c.bf16 %v618, %v617
      %v627 = vld [vmem:[%s7] sm:$0x1]
      %v629 = vperm.slane %v627, 0
      %631 = vmatpush.bf16.msra.mxu0 %v626
      %632 = vmatpush.bf16.msra.mxu0 %v625
      %633 = vmatpush.bf16.msra.mxu0 %v624
      %634 = vmatpush.bf16.msra.mxu0 %v623
      %635 = vmatpush.bf16.msra.mxu0 %v622
      %636 = vmatpush.bf16.msra.mxu0 %v621
      %637 = vmatpush.bf16.msra.mxu0 %v620
      %638 = vmatpush.bf16.msra.mxu0 %v619
      %639 = vmatmul.bf16.gmra.mxu0 %v543
      %v640 = vpop.f32.mrf.mxu0
      %v641 = vadd.f32 %v629, %v640
      %v642 = vpop.f32.mrf.mxu0
      %v643 = vadd.f32 %v629, %v642
      %644 = vmatmul.bf16.gmra.mxu0 %v544
      %v645 = vpop.f32.mrf.mxu0
      %v646 = vadd.f32 %v629, %v645
      %v647 = vpop.f32.mrf.mxu0
      %v648 = vadd.f32 %v629, %v647
      %649 = vmatmul.bf16.gmra.mxu0 %v545
      %v650 = vpop.f32.mrf.mxu0
      %v651 = vadd.f32 %v629, %v650
      %v652 = vpop.f32.mrf.mxu0
      %v653 = vadd.f32 %v629, %v652
      %654 = vmatmul.bf16.gmra.mxu0 %v546
      %v655 = vpop.f32.mrf.mxu0
      %v656 = vadd.f32 %v629, %v655
      %v657 = vpop.f32.mrf.mxu0
      %v658 = vadd.f32 %v629, %v657
      %659 = vmatmul.bf16.gmra.mxu0 %v547
      %v660 = vpop.f32.mrf.mxu0
      %v661 = vadd.f32 %v629, %v660
      %v662 = vpop.f32.mrf.mxu0
      %v663 = vadd.f32 %v629, %v662
      %664 = vmatmul.bf16.gmra.mxu0 %v548
      %v665 = vpop.f32.mrf.mxu0
      %v666 = vadd.f32 %v629, %v665
      %v667 = vpop.f32.mrf.mxu0
      %v668 = vadd.f32 %v629, %v667
      %669 = vmatmul.bf16.gmra.mxu0 %v549
      %v670 = vpop.f32.mrf.mxu0
      %v671 = vadd.f32 %v629, %v670
      %v672 = vpop.f32.mrf.mxu0
      %673 = vdwg.mxu0
      %v674 = vld [vmem:[%s8] sm:$0xff]
      %v675 = vld [vmem:[%s8 + $0x8] sm:$0xff]
      %v676 = vld [vmem:[%s8 + $0x10] sm:$0xff]
      %v677 = vld [vmem:[%s8 + $0x18] sm:$0xff]
      %v678 = vld [vmem:[%s8 + $0x20] sm:$0xff]
      %v679 = vld [vmem:[%s8 + $0x28] sm:$0xff]
      %v680 = vld [vmem:[%s8 + $0x30] sm:$0xff]
      %v681 = vld [vmem:[%s8 + $0x38] sm:$0xff]
      %v682 = vld [vmem:[%s8 + $0x40] sm:$0xff]
      %v683 = vld [vmem:[%s8 + $0x48] sm:$0xff]
      %v684 = vld [vmem:[%s8 + $0x50] sm:$0xff]
      %v685 = vld [vmem:[%s8 + $0x58] sm:$0xff]
      %v686 = vld [vmem:[%s8 + $0x60] sm:$0xff]
      %v687 = vld [vmem:[%s8 + $0x68] sm:$0xff]
      %v688 = vld [vmem:[%s8 + $0x70] sm:$0xff]
      %v689 = vld [vmem:[%s8 + $0x78] sm:$0xff]
      %v690 = vpack.c.bf16 %v675, %v674
      %v691 = vpack.c.bf16 %v677, %v676
      %v692 = vpack.c.bf16 %v679, %v678
      %v693 = vpack.c.bf16 %v681, %v680
      %v694 = vpack.c.bf16 %v683, %v682
      %v695 = vpack.c.bf16 %v685, %v684
      %v696 = vpack.c.bf16 %v687, %v686
      %v697 = vpack.c.bf16 %v689, %v688
      %v698 = vld [vmem:[%s9] sm:$0x1]
      %v700 = vperm.slane %v698, 0
      %702 = vmatpush.bf16.msra.mxu0 %v697
      %703 = vmatpush.bf16.msra.mxu0 %v696
      %704 = vmatpush.bf16.msra.mxu0 %v695
      %705 = vmatpush.bf16.msra.mxu0 %v694
      %706 = vmatpush.bf16.msra.mxu0 %v693
      %707 = vmatpush.bf16.msra.mxu0 %v692
      %708 = vmatpush.bf16.msra.mxu0 %v691
      %709 = vmatpush.bf16.msra.mxu0 %v690
      %710 = vmatmul.bf16.gmra.mxu0 %v557
      %v711 = vpop.f32.mrf.mxu0
      %v712 = vadd.f32 %v700, %v711
      %v713 = vpop.f32.mrf.mxu0
      %v714 = vadd.f32 %v700, %v713
      %715 = vmatmul.bf16.gmra.mxu0 %v558
      %v716 = vpop.f32.mrf.mxu0
      %v717 = vadd.f32 %v700, %v716
      %v718 = vpop.f32.mrf.mxu0
      %v719 = vadd.f32 %v700, %v718
      %720 = vmatmul.bf16.gmra.mxu0 %v559
      %v721 = vpop.f32.mrf.mxu0
      %v722 = vadd.f32 %v700, %v721
      %v723 = vpop.f32.mrf.mxu0
      %v724 = vadd.f32 %v700, %v723
      %725 = vmatmul.bf16.gmra.mxu0 %v560
      %v726 = vpop.f32.mrf.mxu0
      %v727 = vadd.f32 %v700, %v726
      %v728 = vpop.f32.mrf.mxu0
      %729 = vdwg.mxu0
      %v730 = vld [vmem:[%s504] sm:$0xff]
      %v731 = vld [vmem:[%s504 + $0x8] sm:$0xff]
      %v732 = vpack.c.bf16 %v601, %v599
      %v733 = vpack.c.bf16 %v643, %v641
      %v734 = vpack.c.bf16 %v648, %v646
      %v735 = vpack.c.bf16 %v653, %v651
      %v736 = vpack.c.bf16 %v658, %v656
      %v737 = vpack.c.bf16 %v663, %v661
      %v738 = vpack.c.bf16 %v668, %v666
      %v739 = vpack.c.bf16 %v671, %v671
      %v740 = vpack.c.bf16 %v714, %v712
      %v741 = vpack.c.bf16 %v719, %v717
      %v742 = vpack.c.bf16 %v724, %v722
      %v743 = vpack.c.bf16 %v727, %v727
      %vm744 = vcmask 261120
      %v746 = vsel %vm744, %v732, 0
      %v749 = vsel %vm744, %v733, 0
      %v752 = vsel %vm744, %v734, 0
      %v755 = vsel %vm744, %v735, 0
      %v758 = vsel %vm744, %v736, 0
      %v761 = vsel %vm744, %v737, 0
      %v764 = vsel %vm744, %v738, 0
      %v767 = vsel %vm744, %v739, 0
      %769 = vmatpush.bf16.xpose.msra.mxu0 0
      %770 = vmatpush.bf16.xpose.msra.mxu0 %v767
      %771 = vmatpush.bf16.xpose.msra.mxu0 %v764
      %772 = vmatpush.bf16.xpose.msra.mxu0 %v761
      %773 = vmatpush.bf16.xpose.msra.mxu0 %v758
      %774 = vmatpush.bf16.xpose.msra.mxu0 %v755
      %775 = vmatpush.bf16.xpose.msra.mxu0 %v752
      %776 = vmatpush.bf16.xpose.msra.mxu0 %v749
      %777 = vmatmul.bf16.gmra.mxu0 %v746
      %v778 = vpop.f32.mrf.mxu0
      %v779 = vadd.f32 0.0, %v778
      %v780 = vpop.f32.mrf.mxu0
      %v781 = vadd.f32 0.0, %v780
      %782 = vdwg.mxu0
      %v783 = vmul.f32 %v779, 0.17677669
      %v784 = vmul.f32 %v781, 0.17677669
      %v786 = vsel %vm744, %v740, 0
      %v789 = vsel %vm744, %v741, 0
      %v792 = vsel %vm744, %v742, 0
      %v795 = vsel %vm744, %v743, 0
      %797 = vmatpush.bf16.xpose.msra.mxu0 0
      %798 = vmatpush.bf16.xpose.msra.mxu0 0
      %799 = vmatpush.bf16.xpose.msra.mxu0 0
      %800 = vmatpush.bf16.xpose.msra.mxu0 0
      %801 = vmatpush.bf16.xpose.msra.mxu0 %v795
      %802 = vmatpush.bf16.xpose.msra.mxu0 %v792
      %803 = vmatpush.bf16.xpose.msra.mxu0 %v789
      %804 = vmatpush.bf16.xpose.msra.mxu0 %v786
      %805 = vmatmul.bf16.gmra.mxu0 %v746
      %v806 = vpop.f32.mrf.mxu0
      %v807 = vadd.f32 0.0, %v806
      %v808 = vpop.f32.mrf.mxu0
      %v809 = vadd.f32 0.0, %v808
      %810 = vdwg.mxu0
      %v811 = vmul.f32 %v807, 0.17677669
      %v812 = vmul.f32 %v809, 0.17677669
      %vm813 = vcmp.gt.f32.partialorder %v730, 0.0
      %vm814 = vcmp.gt.f32.partialorder %v731, 0.0
      %v815 = vsel %vm813, 0.0, %v783
      %v816 = vsel %vm814, 0.0, %v784
      %vm817 = vcmask 809984
      %818 = vst.msk [vmem:[%s514] sm:$0xff] %vm817, %v815
      %819 = vst.msk [vmem:[%s514 + $0x8] sm:$0xff] %vm817, %v816
      %v820 = vsel %vm813, 0.0, %v811
      %v821 = vsel %vm814, 0.0, %v812
      %vm822 = vcmask 408576
      %823 = vst.msk [vmem:[%s524] sm:$0xff] %vm822, %v820
      %824 = vst.msk [vmem:[%s524 + $0x8] sm:$0xff] %vm822, %v821
      %826 = vrot.lane.b32.xlu0 %v732, 96
      %v827 = vpop.permute.xlu0 %826
      %835 = vrot.lane.b32.xlu0 %v733, 96
      %v836 = vpop.permute.xlu0 %835
      %837 = vrot.lane.b32.xlu0 %v734, 96
      %v838 = vpop.permute.xlu0 %837
      %839 = vrot.lane.b32.xlu0 %v735, 96
      %v840 = vpop.permute.xlu0 %839
      %841 = vrot.lane.b32.xlu0 %v736, 96
      %v842 = vpop.permute.xlu0 %841
      %843 = vrot.lane.b32.xlu0 %v737, 96
      %v844 = vpop.permute.xlu0 %843
      %845 = vrot.lane.b32.xlu0 %v738, 96
      %v846 = vpop.permute.xlu0 %845
      %847 = vrot.lane.b32.xlu0 %v739, 96
      %v848 = vpop.permute.xlu0 %847
      %v850 = vsel %vm744, %v827, 0
      %v853 = vsel %vm744, %v836, 0
      %v856 = vsel %vm744, %v838, 0
      %v859 = vsel %vm744, %v840, 0
      %v862 = vsel %vm744, %v842, 0
      %v865 = vsel %vm744, %v844, 0
      %v868 = vsel %vm744, %v846, 0
      %v871 = vsel %vm744, %v848, 0
      %873 = vmatpush.bf16.xpose.msra.mxu0 0
      %874 = vmatpush.bf16.xpose.msra.mxu0 %v871
      %875 = vmatpush.bf16.xpose.msra.mxu0 %v868
      %876 = vmatpush.bf16.xpose.msra.mxu0 %v865
      %877 = vmatpush.bf16.xpose.msra.mxu0 %v862
      %878 = vmatpush.bf16.xpose.msra.mxu0 %v859
      %879 = vmatpush.bf16.xpose.msra.mxu0 %v856
      %880 = vmatpush.bf16.xpose.msra.mxu0 %v853
      %881 = vmatmul.bf16.gmra.mxu0 %v850
      %v882 = vpop.f32.mrf.mxu0
      %v883 = vadd.f32 0.0, %v882
      %v884 = vpop.f32.mrf.mxu0
      %v885 = vadd.f32 0.0, %v884
      %886 = vdwg.mxu0
      %v887 = vmul.f32 %v883, 0.17677669
      %v888 = vmul.f32 %v885, 0.17677669
      %893 = vrot.lane.b32.xlu0 %v740, 96
      %v894 = vpop.permute.xlu0 %893
      %895 = vrot.lane.b32.xlu0 %v741, 96
      %v896 = vpop.permute.xlu0 %895
      %897 = vrot.lane.b32.xlu0 %v742, 96
      %v898 = vpop.permute.xlu0 %897
      %899 = vrot.lane.b32.xlu0 %v743, 96
      %v900 = vpop.permute.xlu0 %899
      %v902 = vsel %vm744, %v894, 0
      %v905 = vsel %vm744, %v896, 0
      %v908 = vsel %vm744, %v898, 0
      %v911 = vsel %vm744, %v900, 0
      %913 = vmatpush.bf16.xpose.msra.mxu0 0
      %914 = vmatpush.bf16.xpose.msra.mxu0 0
      %915 = vmatpush.bf16.xpose.msra.mxu0 0
      %916 = vmatpush.bf16.xpose.msra.mxu0 0
      %917 = vmatpush.bf16.xpose.msra.mxu0 %v911
      %918 = vmatpush.bf16.xpose.msra.mxu0 %v908
      %919 = vmatpush.bf16.xpose.msra.mxu0 %v905
      %920 = vmatpush.bf16.xpose.msra.mxu0 %v902
      %921 = vmatmul.bf16.gmra.mxu0 %v850
      %v922 = vpop.f32.mrf.mxu0
      %v923 = vadd.f32 0.0, %v922
      %v924 = vpop.f32.mrf.mxu0
      %v925 = vadd.f32 0.0, %v924
      %926 = vdwg.mxu0
      %v927 = vmul.f32 %v923, 0.17677669
      %v928 = vmul.f32 %v925, 0.17677669
      %v929 = vsel %vm813, 0.0, %v887
      %v930 = vsel %vm814, 0.0, %v888
      %s931 = scalar_lea.vmem %s514, 16
      %932 = vst.msk [vmem:[%s931] sm:$0xff] %vm817, %v929
      %933 = vst.msk [vmem:[%s931 + $0x8] sm:$0xff] %vm817, %v930
      %v934 = vsel %vm813, 0.0, %v927
      %v935 = vsel %vm814, 0.0, %v928
      %s936 = scalar_lea.vmem %s524, 16
      %937 = vst.msk [vmem:[%s936] sm:$0xff] %vm822, %v934
      %938 = vst.msk [vmem:[%s936 + $0x8] sm:$0xff] %vm822, %v935
      %939 = vrot.lane.b32.xlu0 %v732, 64
      %v940 = vpop.permute.xlu0 %939
      %941 = vrot.lane.b32.xlu0 %v733, 64
      %v942 = vpop.permute.xlu0 %941
      %943 = vrot.lane.b32.xlu0 %v734, 64
      %v944 = vpop.permute.xlu0 %943
      %945 = vrot.lane.b32.xlu0 %v735, 64
      %v946 = vpop.permute.xlu0 %945
      %947 = vrot.lane.b32.xlu0 %v736, 64
      %v948 = vpop.permute.xlu0 %947
      %949 = vrot.lane.b32.xlu0 %v737, 64
      %v950 = vpop.permute.xlu0 %949
      %951 = vrot.lane.b32.xlu0 %v738, 64
      %v952 = vpop.permute.xlu0 %951
      %953 = vrot.lane.b32.xlu0 %v739, 64
      %v954 = vpop.permute.xlu0 %953
      %v956 = vsel %vm744, %v940, 0
      %v959 = vsel %vm744, %v942, 0
      %v962 = vsel %vm744, %v944, 0
      %v965 = vsel %vm744, %v946, 0
      %v968 = vsel %vm744, %v948, 0
      %v971 = vsel %vm744, %v950, 0
      %v974 = vsel %vm744, %v952, 0
      %v977 = vsel %vm744, %v954, 0
      %979 = vmatpush.bf16.xpose.msra.mxu0 0
      %980 = vmatpush.bf16.xpose.msra.mxu0 %v977
      %981 = vmatpush.bf16.xpose.msra.mxu0 %v974
      %982 = vmatpush.bf16.xpose.msra.mxu0 %v971
      %983 = vmatpush.bf16.xpose.msra.mxu0 %v968
      %984 = vmatpush.bf16.xpose.msra.mxu0 %v965
      %985 = vmatpush.bf16.xpose.msra.mxu0 %v962
      %986 = vmatpush.bf16.xpose.msra.mxu0 %v959
      %987 = vmatmul.bf16.gmra.mxu0 %v956
      %v988 = vpop.f32.mrf.mxu0
      %v989 = vadd.f32 0.0, %v988
      %v990 = vpop.f32.mrf.mxu0
      %v991 = vadd.f32 0.0, %v990
      %992 = vdwg.mxu0
      %v993 = vmul.f32 %v989, 0.17677669
      %v994 = vmul.f32 %v991, 0.17677669
      %995 = vrot.lane.b32.xlu0 %v740, 64
      %v996 = vpop.permute.xlu0 %995
      %997 = vrot.lane.b32.xlu0 %v741, 64
      %v998 = vpop.permute.xlu0 %997
      %999 = vrot.lane.b32.xlu0 %v742, 64
      %v1000 = vpop.permute.xlu0 %999
      %1001 = vrot.lane.b32.xlu0 %v743, 64
      %v1002 = vpop.permute.xlu0 %1001
      %v1004 = vsel %vm744, %v996, 0
      %v1007 = vsel %vm744, %v998, 0
      %v1010 = vsel %vm744, %v1000, 0
      %v1013 = vsel %vm744, %v1002, 0
      %1015 = vmatpush.bf16.xpose.msra.mxu0 0
      %1016 = vmatpush.bf16.xpose.msra.mxu0 0
      %1017 = vmatpush.bf16.xpose.msra.mxu0 0
      %1018 = vmatpush.bf16.xpose.msra.mxu0 0
      %1019 = vmatpush.bf16.xpose.msra.mxu0 %v1013
      %1020 = vmatpush.bf16.xpose.msra.mxu0 %v1010
      %1021 = vmatpush.bf16.xpose.msra.mxu0 %v1007
      %1022 = vmatpush.bf16.xpose.msra.mxu0 %v1004
      %1023 = vmatmul.bf16.gmra.mxu0 %v956
      %v1024 = vpop.f32.mrf.mxu0
      %v1025 = vadd.f32 0.0, %v1024
      %v1026 = vpop.f32.mrf.mxu0
      %v1027 = vadd.f32 0.0, %v1026
      %1028 = vdwg.mxu0
      %v1029 = vmul.f32 %v1025, 0.17677669
      %v1030 = vmul.f32 %v1027, 0.17677669
      %v1031 = vsel %vm813, 0.0, %v993
      %v1032 = vsel %vm814, 0.0, %v994
      %s1033 = scalar_lea.vmem %s514, 32
      %1034 = vst.msk [vmem:[%s1033] sm:$0xff] %vm817, %v1031
      %1035 = vst.msk [vmem:[%s1033 + $0x8] sm:$0xff] %vm817, %v1032
      %v1036 = vsel %vm813, 0.0, %v1029
      %v1037 = vsel %vm814, 0.0, %v1030
      %s1038 = scalar_lea.vmem %s524, 32
      %1039 = vst.msk [vmem:[%s1038] sm:$0xff] %vm822, %v1036
      %1040 = vst.msk [vmem:[%s1038 + $0x8] sm:$0xff] %vm822, %v1037
      %1041 = vrot.lane.b32.xlu0 %v732, 32
      %v1042 = vpop.permute.xlu0 %1041
      %1043 = vrot.lane.b32.xlu0 %v733, 32
      %v1044 = vpop.permute.xlu0 %1043
      %1045 = vrot.lane.b32.xlu0 %v734, 32
      %v1046 = vpop.permute.xlu0 %1045
      %1047 = vrot.lane.b32.xlu0 %v735, 32
      %v1048 = vpop.permute.xlu0 %1047
      %1049 = vrot.lane.b32.xlu0 %v736, 32
      %v1050 = vpop.permute.xlu0 %1049
      %1051 = vrot.lane.b32.xlu0 %v737, 32
      %v1052 = vpop.permute.xlu0 %1051
      %1053 = vrot.lane.b32.xlu0 %v738, 32
      %v1054 = vpop.permute.xlu0 %1053
      %1055 = vrot.lane.b32.xlu0 %v739, 32
      %v1056 = vpop.permute.xlu0 %1055
      %v1058 = vsel %vm744, %v1042, 0
      %v1061 = vsel %vm744, %v1044, 0
      %v1064 = vsel %vm744, %v1046, 0
      %v1067 = vsel %vm744, %v1048, 0
      %v1070 = vsel %vm744, %v1050, 0
      %v1073 = vsel %vm744, %v1052, 0
      %v1076 = vsel %vm744, %v1054, 0
      %v1079 = vsel %vm744, %v1056, 0
      %1081 = vmatpush.bf16.xpose.msra.mxu0 0
      %1082 = vmatpush.bf16.xpose.msra.mxu0 %v1079
      %1083 = vmatpush.bf16.xpose.msra.mxu0 %v1076
      %1084 = vmatpush.bf16.xpose.msra.mxu0 %v1073
      %1085 = vmatpush.bf16.xpose.msra.mxu0 %v1070
      %1086 = vmatpush.bf16.xpose.msra.mxu0 %v1067
      %1087 = vmatpush.bf16.xpose.msra.mxu0 %v1064
      %1088 = vmatpush.bf16.xpose.msra.mxu0 %v1061
      %1089 = vmatmul.bf16.gmra.mxu0 %v1058
      %v1090 = vpop.f32.mrf.mxu0
      %v1091 = vadd.f32 0.0, %v1090
      %v1092 = vpop.f32.mrf.mxu0
      %v1093 = vadd.f32 0.0, %v1092
      %1094 = vdwg.mxu0
      %v1095 = vmul.f32 %v1091, 0.17677669
      %v1096 = vmul.f32 %v1093, 0.17677669
      %1097 = vrot.lane.b32.xlu0 %v740, 32
      %v1098 = vpop.permute.xlu0 %1097
      %1099 = vrot.lane.b32.xlu0 %v741, 32
      %v1100 = vpop.permute.xlu0 %1099
      %1101 = vrot.lane.b32.xlu0 %v742, 32
      %v1102 = vpop.permute.xlu0 %1101
      %1103 = vrot.lane.b32.xlu0 %v743, 32
      %v1104 = vpop.permute.xlu0 %1103
      %v1106 = vsel %vm744, %v1098, 0
      %v1109 = vsel %vm744, %v1100, 0
      %v1112 = vsel %vm744, %v1102, 0
      %v1115 = vsel %vm744, %v1104, 0
      %1117 = vmatpush.bf16.xpose.msra.mxu0 0
      %1118 = vmatpush.bf16.xpose.msra.mxu0 0
      %1119 = vmatpush.bf16.xpose.msra.mxu0 0
      %1120 = vmatpush.bf16.xpose.msra.mxu0 0
      %1121 = vmatpush.bf16.xpose.msra.mxu0 %v1115
      %1122 = vmatpush.bf16.xpose.msra.mxu0 %v1112
      %1123 = vmatpush.bf16.xpose.msra.mxu0 %v1109
      %1124 = vmatpush.bf16.xpose.msra.mxu0 %v1106
      %1125 = vmatmul.bf16.gmra.mxu0 %v1058
      %v1126 = vpop.f32.mrf.mxu0
      %v1127 = vadd.f32 0.0, %v1126
      %v1128 = vpop.f32.mrf.mxu0
      %v1129 = vadd.f32 0.0, %v1128
      %1130 = vdwg.mxu0
      %v1131 = vmul.f32 %v1127, 0.17677669
      %v1132 = vmul.f32 %v1129, 0.17677669
      %v1133 = vsel %vm813, 0.0, %v1095
      %v1134 = vsel %vm814, 0.0, %v1096
      %s1135 = scalar_lea.vmem %s514, 48
      %1136 = vst.msk [vmem:[%s1135] sm:$0xff] %vm817, %v1133
      %1137 = vst.msk [vmem:[%s1135 + $0x8] sm:$0xff] %vm817, %v1134
      %v1138 = vsel %vm813, 0.0, %v1131
      %v1139 = vsel %vm814, 0.0, %v1132
      %s1140 = scalar_lea.vmem %s524, 48
      %1141 = vst.msk [vmem:[%s1140] sm:$0xff] %vm822, %v1138
      %1142 = vst.msk [vmem:[%s1140 + $0x8] sm:$0xff] %vm822, %v1139
      %s1143 = smul.u32 2, %s28
      %p1144 = scmp.lt.s32.totalorder %s27, 1
      %s1145 = scalar_select %p1144, %s27, 1
      %p1146 = scmp.lt.s32.totalorder %s1143, 1
      %s1147 = scalar_select %p1146, %s1143, 1
      %s1148 = smul.addr %s1145, 8
      %s1149 = sadd.s32 %s1147, %s1148
      %s1150 = smul.addr %s1149, 8
      %s1151 = scalar_lea.vmem %s10, %s1150
      %s1152 = smul.u32 2, %s28
      %p1153 = scmp.lt.s32.totalorder %s27, 1
      %s1154 = scalar_select %p1153, %s27, 1
      %p1155 = scmp.lt.s32.totalorder %s1152, 1
      %s1156 = scalar_select %p1155, %s1152, 1
      %s1157 = smul.addr %s1154, 8
      %s1158 = sadd.s32 %s1156, %s1157
      %s1159 = smul.addr %s1158, 8
      %s1160 = scalar_lea.vmem %s11, %s1159
      // Predicated region
      $region61: #{sdpa_with_goc.2} parent=59 // pred_check
        %p1161 = pneg %p289
      $region62: #{sdpa_with_goc.2} parent=59 // pred_check_branch
        %1163 = sbr.rel (%p1161) target = $region64
      $region63: #{sdpa_with_goc.2} parent=59 // pred_region
        %s1164 = smul.u32 2, %s28
      $region64: #{sdpa_with_goc.2} parent=59 // pred_fallthru
        _
      // Predicated region
      $region65: #{sdpa_with_goc.2} parent=59 // pred_check
        %p1165 = pneg %p317
      $region66: #{sdpa_with_goc.2} parent=59 // pred_check_branch
        %1167 = sbr.rel (%p1165) target = $region68
      $region67: #{sdpa_with_goc.2} parent=59 // pred_region
        %s1168 = smul.u32 2, %s28
      $region68: #{sdpa_with_goc.2} parent=59 // pred_fallthru
        _
    $region60: #{sdpa_with_goc.2} parent=5 // pred_fallthru
      _
    %p1169 = scmp.le.s32.totalorder 2, %s18
    // Predicated region
    $region69: #{sdpa_with_goc.2} parent=5 // pred_check
      %p1170 = pneg %p1169
    $region70: #{sdpa_with_goc.2} parent=5 // pred_check_branch
      %1172 = sbr.rel (%p1170) target = $region72
    $region71: #{sdpa_with_goc.2} parent=5 // pred_region
      %s1173 = ssub.s32 %s18, 2
      // Predicated region
      $region73: #{sdpa_with_goc.2} parent=71 // pred_check
        %p1174 = pneg %p295
      $region74: #{sdpa_with_goc.2} parent=71 // pred_check_branch
        %1176 = sbr.rel (%p1174) target = $region76
      $region75: #{sdpa_with_goc.2} parent=71 // pred_region
        %s1177 = smul.u32 2, %s30
        %p1178 = scmp.lt.s32.totalorder %s29, 1
        %s1179 = scalar_select %p1178, %s29, 1
        %p1180 = scmp.lt.s32.totalorder %s1177, 1
        %s1181 = scalar_select %p1180, %s1177, 1
        %s1182 = smul.addr %s1179, 8
        %s1183 = sadd.s32 %s1181, %s1182
        %s1184 = smul.addr %s1183, 8
        %s1185 = scalar_lea.vmem %s10, %s1184
      $region76: #{sdpa_with_goc.2} parent=71 // pred_fallthru
        _
      // Predicated region
      $region77: #{sdpa_with_goc.2} parent=71 // pred_check
        %p1186 = pneg %p323
      $region78: #{sdpa_with_goc.2} parent=71 // pred_check_branch
        %1188 = sbr.rel (%p1186) target = $region80
      $region79: #{sdpa_with_goc.2} parent=71 // pred_region
        %s1189 = smul.u32 2, %s30
        %p1190 = scmp.lt.s32.totalorder %s29, 1
        %s1191 = scalar_select %p1190, %s29, 1
        %p1192 = scmp.lt.s32.totalorder %s1189, 1
        %s1193 = scalar_select %p1192, %s1189, 1
        %s1194 = smul.addr %s1191, 8
        %s1195 = sadd.s32 %s1193, %s1194
        %s1196 = smul.addr %s1195, 8
        %s1197 = scalar_lea.vmem %s11, %s1196
      $region80: #{sdpa_with_goc.2} parent=71 // pred_fallthru
        _
    $region72: #{sdpa_with_goc.2} parent=5 // pred_fallthru
      _
  $region6: #{sdpa_with_goc.2} parent=0 // loop_footer
    %s22 = sadd.s32 1, %s18
  $region7: #{sdpa_with_goc.2} parent=0 // loop_footer_branch
    %17 = sbr.rel target = $region3
  $region8: #{sdpa_with_goc.2} parent=0 // loop_exit
    _

</llo_original>
